<compile_context>
chip_gen: v7x
topology: tpu7x:2x2x1
jax: 0.10.0
libtpu: 0.0.40
codegen_flags: <defaults>
</compile_context>

<pallas_src>
import jax
import jax.numpy as jnp
from jax import lax
from jax.experimental import pallas as pl
from jax.experimental.pallas import tpu as pltpu

BOUND = 1.0
NUM_STEPS = 128        # T: samples per ray (num_steps in run())
RAYS_PER_TILE = 256    # TR: rays per grid step
CHUNK_RAYS = 32        # CR: rays per inner sub-chunk (each (CR,T) plane = 4 vregs)
HIDDEN = 32            # synthetic density MLP hidden width


def _softplus(x):
    xs = jnp.minimum(x, 30.0)
    return jnp.where(x > 30.0, x, jnp.log(1.0 + jnp.exp(xs)))


def _renderer_kernel(rays_ref, tri_ref,
                     w1_ref, b1_ref, wsig_ref, bsig_ref, wrgb_ref, brgb_ref, wdir_ref,
                     out_ref):
    TR = RAYS_PER_TILE
    CR = CHUNK_RAYS
    T = NUM_STEPS
    f32 = jnp.float32

    # ---- loop-invariant lane vectors (hoisted out of the chunk loop) ----
    tfrac = lax.broadcasted_iota(jnp.int32, (1, T), 1).astype(f32) * (1.0 / (T - 1))
    lane = lax.broadcasted_iota(jnp.int32, (1, T), 1)
    # deltas: uniform spacing span/(T-1), last delta = sample_dist = span/T
    dstep = jnp.where(lane == (T - 1), 1.0 / T, 1.0 / (T - 1))        # (1, T)
    lane8 = lax.broadcasted_iota(jnp.int32, (1, 8), 1)

    def chunk_body(c, carry):
        r0 = pl.multiple_of(c * CR, CR)
        rays = rays_ref[pl.ds(r0, CR), :]                              # (CR, 8)
        ox, oy, oz = rays[:, 0:1], rays[:, 1:2], rays[:, 2:3]
        dx, dy, dz = rays[:, 3:4], rays[:, 4:5], rays[:, 5:6]

        # ---- near / far (type='sphere'): near = |o| - bound, far = |o| + bound ----
        radius = jnp.sqrt(ox * ox + oy * oy + oz * oz)                 # (CR, 1)
        nears = radius - BOUND
        fars = radius + BOUND
        span = fars - nears                                            # (CR, 1)

        # ---- z_vals = near + (far-near)*linspace(0,1,T); samples lane-dense ----
        z_vals = nears + span * tfrac                                  # (CR, T)

        # ---- sample positions clipped to the AABB ----
        px = jnp.clip(ox + dx * z_vals, -BOUND, BOUND)
        py = jnp.clip(oy + dy * z_vals, -BOUND, BOUND)
        pz = jnp.clip(oz + dz * z_vals, -BOUND, BOUND)

        # ---- synthetic density/color MLP: one fused pass over the hidden units
        #      (scalar weights from SMEM broadcast onto (CR,T) planes) ----
        sig_acc = None
        rgb_acc = [None, None, None]
        for j in range(HIDDEN):
            hj = jnp.maximum(
                w1_ref[0, j] * px + w1_ref[1, j] * py + w1_ref[2, j] * pz
                + b1_ref[0, j], 0.0)                                   # (CR, T)
            s = wsig_ref[0, j] * hj
            sig_acc = s if sig_acc is None else sig_acc + s
            for cc in range(3):
                r = wrgb_ref[cc, j] * hj
                rgb_acc[cc] = r if rgb_acc[cc] is None else rgb_acc[cc] + r

        sigma = _softplus(sig_acc + bsig_ref[0, 0])                    # (CR, T)

        rgbs = []
        for cc in range(3):
            dir_c = dx * wdir_ref[0, cc] + dy * wdir_ref[1, cc] + dz * wdir_ref[2, cc]
            raw = rgb_acc[cc] + dir_c + brgb_ref[0, cc]
            # sigmoid via EUP exp + approximate reciprocal (tolerance 1e-2)
            rgbs.append(pl.reciprocal(1.0 + jnp.exp(-raw), approx=True))  # (CR, T)

        deltas = span * dstep                                          # (CR, T)

        # ---- alpha compositing: exclusive per-ray cumprod as one
        #      (CR,T)@(T,T) strict-upper-triangular MXU matmul on
        #      logs = log(1-alpha) = -delta*sigma (mask is VMEM-resident) ----
        logs = -(deltas * sigma)                                       # (CR, T)
        alphas = 1.0 - jnp.exp(logs)
        trans = jnp.exp(jnp.dot(logs, tri_ref[...], preferred_element_type=f32))
        weights = alphas * trans                                       # (CR, T)

        # ---- per-ray reductions along the lane axis ----
        wsum = jnp.sum(weights, axis=-1, keepdims=True)                # (CR, 1)
        depth = jnp.sum(weights * z_vals, axis=-1, keepdims=True)      # (CR, 1)
        bg = 1.0 - wsum                                                # bg_color = 1
        img = [jnp.sum(weights * rgbs[cc], axis=-1, keepdims=True) + bg
               for cc in range(3)]
        mask = jnp.where(nears < fars, 1.0, 0.0)                       # (CR, 1)

        # ---- pack into one lane-dense (CR,8) slab: [r,g,b,depth,wsum,mask,0,0] ----
        packed = (jnp.where(lane8 == 0, img[0], 0.0)
                  + jnp.where(lane8 == 1, img[1], 0.0)
                  + jnp.where(lane8 == 2, img[2], 0.0)
                  + jnp.where(lane8 == 3, depth, 0.0)
                  + jnp.where(lane8 == 4, wsum, 0.0)
                  + jnp.where(lane8 == 5, mask, 0.0))                  # (CR, 8)
        out_ref[pl.ds(r0, CR), :] = packed.astype(f32)
        return carry

    lax.fori_loop(0, TR // CR, chunk_body, 0)


def init_params(key):
    ks = jax.random.split(key, 5)
    return dict(
        w1=jax.random.normal(ks[0], (3, HIDDEN), jnp.float32),
        b1=0.1 * jax.random.normal(ks[1], (1, HIDDEN), jnp.float32),
        wsig=0.5 * jax.random.normal(ks[2], (HIDDEN, 1), jnp.float32),
        bsig=jnp.full((1, 1), 0.5, jnp.float32),
        wrgb=0.5 * jax.random.normal(ks[3], (HIDDEN, 3), jnp.float32),
        brgb=jnp.zeros((1, 3), jnp.float32),
        wdir=0.5 * jax.random.normal(ks[4], (3, 3), jnp.float32),
    )


def nerf_render(rays_o, rays_d, params):
    """Pallas equivalent of NeRFRenderer.render()/run() (see header comment)."""
    prefix = rays_o.shape[:-1]
    ro = rays_o.reshape(-1, 3).astype(jnp.float32)
    rd = rays_d.reshape(-1, 3).astype(jnp.float32)
    N = ro.shape[0]
    TR = RAYS_PER_TILE
    T = NUM_STEPS

    # single packed lane-dense ray slab [ox,oy,oz,dx,dy,dz,0,0] -> one DMA/step
    rays = jnp.concatenate([ro, rd, jnp.zeros((N, 2), jnp.float32)], axis=-1)

    # pad the ray count up to a multiple of the tile; padded rows sliced off
    n_pad = (-N) % TR
    if n_pad:
        rays = jnp.concatenate([rays, jnp.zeros((n_pad, 8), jnp.float32)], axis=0)
    n_total = N + n_pad
    grid = (n_total // TR,)

    # strict upper-triangular (T,T) mask, built once host-side, VMEM-resident
    r_i = lax.broadcasted_iota(jnp.int32, (T, T), 0)
    c_i = lax.broadcasted_iota(jnp.int32, (T, T), 1)
    tri = (r_i < c_i).astype(jnp.float32)

    # Small parameter tables live in SMEM; long (H) axis last -> tiny padding.
    w1 = params['w1'].astype(jnp.float32)                   # (3, H)
    b1 = params['b1'].astype(jnp.float32)                   # (1, H)
    wsig_t = params['wsig'].astype(jnp.float32).T           # (1, H)
    bsig = params['bsig'].astype(jnp.float32)               # (1, 1)
    wrgb_t = params['wrgb'].astype(jnp.float32).T           # (3, H)
    brgb = params['brgb'].astype(jnp.float32)               # (1, 3)
    wdir = params['wdir'].astype(jnp.float32)               # (3, 3)

    def smem_spec():
        return pl.BlockSpec(memory_space=pltpu.MemorySpace.SMEM)

    in_specs = [
        pl.BlockSpec((TR, 8), lambda i: (i, 0)),            # packed rays
        pl.BlockSpec((T, T), lambda i: (0, 0)),              # triangular mask (resident)
        smem_spec(), smem_spec(), smem_spec(), smem_spec(),
        smem_spec(), smem_spec(), smem_spec(),
    ]
    # single packed output: [r, g, b, depth, weights_sum, mask, pad, pad]
    out_specs = pl.BlockSpec((TR, 8), lambda i: (i, 0))
    out_shape = jax.ShapeDtypeStruct((n_total, 8), jnp.float32)

    packed = pl.pallas_call(
        _renderer_kernel,
        out_shape=out_shape,
        grid_spec=pltpu.PrefetchScalarGridSpec(
            num_scalar_prefetch=0, grid=grid,
            in_specs=in_specs, out_specs=out_specs),
        compiler_params=pltpu.CompilerParams(
            dimension_semantics=("parallel",)),
    )(rays, tri, w1, b1, wsig_t, bsig, wrgb_t, brgb, wdir)

    packed = packed[:N]
    image = packed[:, 0:3]
    depth = packed[:, 3]
    wsum = packed[:, 4]
    mask = packed[:, 5] > 0.5
    return {
        'image': image.reshape(*prefix, 3),
        'depth': depth.reshape(*prefix),
        'weights_sum': wsum.reshape(*prefix),
        'mask': mask.reshape(*prefix),
    }


def nerf_render_ref(rays_o, rays_d, params):
    """Pure-JAX transcription of NeRFRenderer.run() (upsample_steps=0) for checking."""
    prefix = rays_o.shape[:-1]
    o = rays_o.reshape(-1, 3).astype(jnp.float32)
    d = rays_d.reshape(-1, 3).astype(jnp.float32)
    N, T = o.shape[0], NUM_STEPS
    radius = jnp.linalg.norm(o, axis=-1, keepdims=True)
    near, far = radius - BOUND, radius + BOUND
    t = jnp.linspace(0.0, 1.0, T)[None, :]
    z = near + (far - near) * t
    sd = (far - near) / T
    xyz = jnp.clip(o[:, None, :] + d[:, None, :] * z[:, :, None], -BOUND, BOUND)
    x = xyz.reshape(-1, 3)
    dd = jnp.broadcast_to(d[:, None, :], (N, T, 3)).reshape(-1, 3)
    h = jnp.maximum(x @ params['w1'] + params['b1'], 0.0)
    sigma = _softplus(h @ params['wsig'] + params['bsig']).reshape(N, T)
    rgb_raw = h @ params['wrgb'] + dd @ params['wdir'] + params['brgb']
    rgb = (1.0 / (1.0 + jnp.exp(-rgb_raw))).reshape(N, T, 3)
    deltas = jnp.concatenate([z[:, 1:] - z[:, :-1], sd], axis=-1)
    alphas = 1.0 - jnp.exp(-deltas * sigma)
    shifted = jnp.concatenate([jnp.ones_like(alphas[:, :1]), 1.0 - alphas + 1e-15], axis=-1)
    weights = alphas * jnp.cumprod(shifted, axis=-1)[:, :-1]
    ws = weights.sum(-1)
    depth = (weights * z).sum(-1)
    image = (weights[..., None] * rgb).sum(1) + (1.0 - ws)[..., None] * 1.0
    mask = (near < far)[:, 0]
    return {'image': image.reshape(*prefix, 3), 'depth': depth.reshape(*prefix),
            'weights_sum': ws.reshape(*prefix), 'mask': mask.reshape(*prefix)}


if __name__ == "__main__":
    key = jax.random.PRNGKey(0)
    kp, ko, kd = jax.random.split(key, 3)
    params = init_params(kp)

    B, NR = 2, 64   # 128 rays total, 128 samples per ray
    rays_o = jnp.array([1.2, 0.3, 0.4], jnp.float32) + 0.3 * jax.random.normal(ko, (B, NR, 3), jnp.float32)
    rays_d = jax.random.normal(kd, (B, NR, 3), jnp.float32)
    rays_d = rays_d / jnp.linalg.norm(rays_d, axis=-1, keepdims=True)

    out = nerf_render(rays_o, rays_d, params)
    jax.block_until_ready(out)

    ref = nerf_render_ref(rays_o, rays_d, params)
    for k in ('image', 'depth', 'weights_sum'):
        assert jnp.allclose(out[k], ref[k], atol=1e-2, rtol=1e-2), f"mismatch in {k}"
    assert bool(jnp.all(out['mask'] == ref['mask']))

    print("KERNEL_OK")
</pallas_src>

<mosaic_0001>
module attributes {stable_mosaic.version = 11 : i64} {
  func.func @_renderer_kernel(%arg0: i32, %arg1: memref<256x8xf32, #tpu.memory_space<vmem>>, %arg2: memref<128x128xf32, #tpu.memory_space<vmem>>, %arg3: memref<3x32xf32, #tpu.memory_space<smem>>, %arg4: memref<1x32xf32, #tpu.memory_space<smem>>, %arg5: memref<1x32xf32, #tpu.memory_space<smem>>, %arg6: memref<1x1xf32, #tpu.memory_space<smem>>, %arg7: memref<3x32xf32, #tpu.memory_space<smem>>, %arg8: memref<1x3xf32, #tpu.memory_space<smem>>, %arg9: memref<3x3xf32, #tpu.memory_space<smem>>, %arg10: memref<256x8xf32, #tpu.memory_space<vmem>>) attributes {dimension_semantics = [#tpu.dimension_semantics<parallel>], iteration_bounds = array<i64: 1>, scalar_prefetch = 0 : i64, scratch_operands = 0 : i64, tpu.core_type = #tpu.core_type<tc>, window_params = [{transform_indices = @transform_0, window_bounds = array<i64: 256, 8>}, {pipeline_mode = #tpu.pipeline_mode<synchronous>, transform_indices = @transform_1, window_bounds = array<i64: 128, 128>}, {transform_indices = @transform_2, window_bounds = array<i64: 3, 32>}, {transform_indices = @transform_3, window_bounds = array<i64: 1, 32>}, {transform_indices = @transform_4, window_bounds = array<i64: 1, 32>}, {transform_indices = @transform_5, window_bounds = array<i64: 1, 1>}, {transform_indices = @transform_6, window_bounds = array<i64: 3, 32>}, {transform_indices = @transform_7, window_bounds = array<i64: 1, 3>}, {transform_indices = @transform_8, window_bounds = array<i64: 3, 3>}, {transform_indices = @transform_9, window_bounds = array<i64: 256, 8>}]} {
    %0 = tpu.iota {dimensions = array<i32: 1>} : vector<1x128xi32>
    %1 = arith.sitofp %0 : vector<1x128xi32> to vector<1x128xf32>
    %cst = arith.constant 0.00787401571 : f32
    %2 = vector.broadcast %cst : f32 to vector<1x128xf32>
    %3 = arith.mulf %1, %2 : vector<1x128xf32>
    %4 = tpu.iota {dimensions = array<i32: 1>} : vector<1x128xi32>
    %c127_i32 = arith.constant 127 : i32
    %5 = vector.broadcast %c127_i32 : i32 to vector<1x128xi32>
    %6 = arith.cmpi eq, %4, %5 : vector<1x128xi32>
    %cst_0 = arith.constant 7.812500e-03 : f32
    %cst_1 = arith.constant 0.00787401571 : f32
    %7 = vector.broadcast %cst_0 : f32 to vector<1x128xf32>
    %8 = vector.broadcast %cst_1 : f32 to vector<1x128xf32>
    %9 = arith.select %6, %7, %8 : vector<1x128xi1>, vector<1x128xf32>
    %10 = tpu.iota {dimensions = array<i32: 1>} : vector<1x8xi32>
    %c0_i32 = arith.constant 0 : i32
    %c8_i32 = arith.constant 8 : i32
    %11 = arith.addi %c0_i32, %c8_i32 : i32
    %c1_i32 = arith.constant 1 : i32
    scf.for %arg11 = %c0_i32 to %11 step %c1_i32  : i32 {
      %c32_i32 = arith.constant 32 : i32
      %12 = arith.muli %arg11, %c32_i32 : i32
      %13 = tpu.assume_multiple %12, 32 : i32
      %14 = arith.index_cast %13 : i32 to index
      %c0 = arith.constant 0 : index
      %15 = vector.load %arg1[%14, %c0] : memref<256x8xf32, #tpu.memory_space<vmem>>, vector<32x8xf32>
      %16 = vector.extract_strided_slice %15 {offsets = [0, 0], sizes = [32, 1], strides = [1, 1]} : vector<32x8xf32> to vector<32x1xf32>
      %17 = vector.extract_strided_slice %15 {offsets = [0, 1], sizes = [32, 1], strides = [1, 1]} : vector<32x8xf32> to vector<32x1xf32>
      %18 = vector.extract_strided_slice %15 {offsets = [0, 2], sizes = [32, 1], strides = [1, 1]} : vector<32x8xf32> to vector<32x1xf32>
      %19 = vector.extract_strided_slice %15 {offsets = [0, 3], sizes = [32, 1], strides = [1, 1]} : vector<32x8xf32> to vector<32x1xf32>
      %20 = vector.extract_strided_slice %15 {offsets = [0, 4], sizes = [32, 1], strides = [1, 1]} : vector<32x8xf32> to vector<32x1xf32>
      %21 = vector.extract_strided_slice %15 {offsets = [0, 5], sizes = [32, 1], strides = [1, 1]} : vector<32x8xf32> to vector<32x1xf32>
      %22 = arith.mulf %16, %16 : vector<32x1xf32>
      %23 = arith.mulf %17, %17 : vector<32x1xf32>
      %24 = arith.addf %22, %23 : vector<32x1xf32>
      %25 = arith.mulf %18, %18 : vector<32x1xf32>
      %26 = arith.addf %24, %25 : vector<32x1xf32>
      %27 = math.sqrt %26 : vector<32x1xf32>
      %cst_3 = arith.constant 1.000000e+00 : f32
      %28 = vector.broadcast %cst_3 : f32 to vector<32x1xf32>
      %29 = arith.subf %27, %28 : vector<32x1xf32>
      %cst_4 = arith.constant 1.000000e+00 : f32
      %30 = vector.broadcast %cst_4 : f32 to vector<32x1xf32>
      %31 = arith.addf %27, %30 : vector<32x1xf32>
      %32 = arith.subf %31, %29 : vector<32x1xf32>
      %33 = vector.broadcast %32 : vector<32x1xf32> to vector<32x128xf32>
      %34 = vector.broadcast %3 : vector<1x128xf32> to vector<32x128xf32>
      %35 = arith.mulf %33, %34 : vector<32x128xf32>
      %36 = vector.broadcast %29 : vector<32x1xf32> to vector<32x128xf32>
      %37 = arith.addf %36, %35 : vector<32x128xf32>
      %38 = vector.broadcast %19 : vector<32x1xf32> to vector<32x128xf32>
      %39 = arith.mulf %38, %37 : vector<32x128xf32>
      %40 = vector.broadcast %16 : vector<32x1xf32> to vector<32x128xf32>
      %41 = arith.addf %40, %39 : vector<32x128xf32>
      %cst_5 = arith.constant -1.000000e+00 : f32
      %cst_6 = arith.constant 1.000000e+00 : f32
      %42 = vector.broadcast %cst_5 : f32 to vector<32x128xf32>
      %43 = arith.maximumf %42, %41 : vector<32x128xf32>
      %44 = vector.broadcast %cst_6 : f32 to vector<32x128xf32>
      %45 = arith.minimumf %44, %43 : vector<32x128xf32>
      %46 = vector.broadcast %20 : vector<32x1xf32> to vector<32x128xf32>
      %47 = arith.mulf %46, %37 : vector<32x128xf32>
      %48 = vector.broadcast %17 : vector<32x1xf32> to vector<32x128xf32>
      %49 = arith.addf %48, %47 : vector<32x128xf32>
      %cst_7 = arith.constant -1.000000e+00 : f32
      %cst_8 = arith.constant 1.000000e+00 : f32
      %50 = vector.broadcast %cst_7 : f32 to vector<32x128xf32>
      %51 = arith.maximumf %50, %49 : vector<32x128xf32>
      %52 = vector.broadcast %cst_8 : f32 to vector<32x128xf32>
      %53 = arith.minimumf %52, %51 : vector<32x128xf32>
      %54 = vector.broadcast %21 : vector<32x1xf32> to vector<32x128xf32>
      %55 = arith.mulf %54, %37 : vector<32x128xf32>
      %56 = vector.broadcast %18 : vector<32x1xf32> to vector<32x128xf32>
      %57 = arith.addf %56, %55 : vector<32x128xf32>
      %cst_9 = arith.constant -1.000000e+00 : f32
      %cst_10 = arith.constant 1.000000e+00 : f32
      %58 = vector.broadcast %cst_9 : f32 to vector<32x128xf32>
      %59 = arith.maximumf %58, %57 : vector<32x128xf32>
      %60 = vector.broadcast %cst_10 : f32 to vector<32x128xf32>
      %61 = arith.minimumf %60, %59 : vector<32x128xf32>
      %c0_11 = arith.constant 0 : index
      %c0_12 = arith.constant 0 : index
      %62 = memref.load %arg3[%c0_11, %c0_12] : memref<3x32xf32, #tpu.memory_space<smem>>
      %63 = vector.broadcast %62 : f32 to vector<32x128xf32>
      %64 = arith.mulf %63, %45 : vector<32x128xf32>
      %c1 = arith.constant 1 : index
      %c0_13 = arith.constant 0 : index
      %65 = memref.load %arg3[%c1, %c0_13] : memref<3x32xf32, #tpu.memory_space<smem>>
      %66 = vector.broadcast %65 : f32 to vector<32x128xf32>
      %67 = arith.mulf %66, %53 : vector<32x128xf32>
      %68 = arith.addf %64, %67 : vector<32x128xf32>
      %c2 = arith.constant 2 : index
      %c0_14 = arith.constant 0 : index
      %69 = memref.load %arg3[%c2, %c0_14] : memref<3x32xf32, #tpu.memory_space<smem>>
      %70 = vector.broadcast %69 : f32 to vector<32x128xf32>
      %71 = arith.mulf %70, %61 : vector<32x128xf32>
      %72 = arith.addf %68, %71 : vector<32x128xf32>
      %c0_15 = arith.constant 0 : index
      %c0_16 = arith.constant 0 : index
      %73 = memref.load %arg4[%c0_15, %c0_16] : memref<1x32xf32, #tpu.memory_space<smem>>
      %74 = vector.broadcast %73 : f32 to vector<32x128xf32>
      %75 = arith.addf %72, %74 : vector<32x128xf32>
      %cst_17 = arith.constant 0.000000e+00 : f32
      %76 = vector.broadcast %cst_17 : f32 to vector<32x128xf32>
      %77 = arith.maximumf %75, %76 : vector<32x128xf32>
      %c0_18 = arith.constant 0 : index
      %c0_19 = arith.constant 0 : index
      %78 = memref.load %arg5[%c0_18, %c0_19] : memref<1x32xf32, #tpu.memory_space<smem>>
      %79 = vector.broadcast %78 : f32 to vector<32x128xf32>
      %80 = arith.mulf %79, %77 : vector<32x128xf32>
      %c0_20 = arith.constant 0 : index
      %c0_21 = arith.constant 0 : index
      %81 = memref.load %arg7[%c0_20, %c0_21] : memref<3x32xf32, #tpu.memory_space<smem>>
      %82 = vector.broadcast %81 : f32 to vector<32x128xf32>
      %83 = arith.mulf %82, %77 : vector<32x128xf32>
      %c1_22 = arith.constant 1 : index
      %c0_23 = arith.constant 0 : index
      %84 = memref.load %arg7[%c1_22, %c0_23] : memref<3x32xf32, #tpu.memory_space<smem>>
      %85 = vector.broadcast %84 : f32 to vector<32x128xf32>
      %86 = arith.mulf %85, %77 : vector<32x128xf32>
      %c2_24 = arith.constant 2 : index
      %c0_25 = arith.constant 0 : index
      %87 = memref.load %arg7[%c2_24, %c0_25] : memref<3x32xf32, #tpu.memory_space<smem>>
      %88 = vector.broadcast %87 : f32 to vector<32x128xf32>
      %89 = arith.mulf %88, %77 : vector<32x128xf32>
      %c0_26 = arith.constant 0 : index
      %c1_27 = arith.constant 1 : index
      %90 = memref.load %arg3[%c0_26, %c1_27] : memref<3x32xf32, #tpu.memory_space<smem>>
      %91 = vector.broadcast %90 : f32 to vector<32x128xf32>
      %92 = arith.mulf %91, %45 : vector<32x128xf32>
      %c1_28 = arith.constant 1 : index
      %c1_29 = arith.constant 1 : index
      %93 = memref.load %arg3[%c1_28, %c1_29] : memref<3x32xf32, #tpu.memory_space<smem>>
      %94 = vector.broadcast %93 : f32 to vector<32x128xf32>
      %95 = arith.mulf %94, %53 : vector<32x128xf32>
      %96 = arith.addf %92, %95 : vector<32x128xf32>
      %c2_30 = arith.constant 2 : index
      %c1_31 = arith.constant 1 : index
      %97 = memref.load %arg3[%c2_30, %c1_31] : memref<3x32xf32, #tpu.memory_space<smem>>
      %98 = vector.broadcast %97 : f32 to vector<32x128xf32>
      %99 = arith.mulf %98, %61 : vector<32x128xf32>
      %100 = arith.addf %96, %99 : vector<32x128xf32>
      %c0_32 = arith.constant 0 : index
      %c1_33 = arith.constant 1 : index
      %101 = memref.load %arg4[%c0_32, %c1_33] : memref<1x32xf32, #tpu.memory_space<smem>>
      %102 = vector.broadcast %101 : f32 to vector<32x128xf32>
      %103 = arith.addf %100, %102 : vector<32x128xf32>
      %cst_34 = arith.constant 0.000000e+00 : f32
      %104 = vector.broadcast %cst_34 : f32 to vector<32x128xf32>
      %105 = arith.maximumf %103, %104 : vector<32x128xf32>
      %c0_35 = arith.constant 0 : index
      %c1_36 = arith.constant 1 : index
      %106 = memref.load %arg5[%c0_35, %c1_36] : memref<1x32xf32, #tpu.memory_space<smem>>
      %107 = vector.broadcast %106 : f32 to vector<32x128xf32>
      %108 = arith.mulf %107, %105 : vector<32x128xf32>
      %109 = arith.addf %80, %108 : vector<32x128xf32>
      %c0_37 = arith.constant 0 : index
      %c1_38 = arith.constant 1 : index
      %110 = memref.load %arg7[%c0_37, %c1_38] : memref<3x32xf32, #tpu.memory_space<smem>>
      %111 = vector.broadcast %110 : f32 to vector<32x128xf32>
      %112 = arith.mulf %111, %105 : vector<32x128xf32>
      %113 = arith.addf %83, %112 : vector<32x128xf32>
      %c1_39 = arith.constant 1 : index
      %c1_40 = arith.constant 1 : index
      %114 = memref.load %arg7[%c1_39, %c1_40] : memref<3x32xf32, #tpu.memory_space<smem>>
      %115 = vector.broadcast %114 : f32 to vector<32x128xf32>
      %116 = arith.mulf %115, %105 : vector<32x128xf32>
      %117 = arith.addf %86, %116 : vector<32x128xf32>
      %c2_41 = arith.constant 2 : index
      %c1_42 = arith.constant 1 : index
      %118 = memref.load %arg7[%c2_41, %c1_42] : memref<3x32xf32, #tpu.memory_space<smem>>
      %119 = vector.broadcast %118 : f32 to vector<32x128xf32>
      %120 = arith.mulf %119, %105 : vector<32x128xf32>
      %121 = arith.addf %89, %120 : vector<32x128xf32>
      %c0_43 = arith.constant 0 : index
      %c2_44 = arith.constant 2 : index
      %122 = memref.load %arg3[%c0_43, %c2_44] : memref<3x32xf32, #tpu.memory_space<smem>>
      %123 = vector.broadcast %122 : f32 to vector<32x128xf32>
      %124 = arith.mulf %123, %45 : vector<32x128xf32>
      %c1_45 = arith.constant 1 : index
      %c2_46 = arith.constant 2 : index
      %125 = memref.load %arg3[%c1_45, %c2_46] : memref<3x32xf32, #tpu.memory_space<smem>>
      %126 = vector.broadcast %125 : f32 to vector<32x128xf32>
      %127 = arith.mulf %126, %53 : vector<32x128xf32>
      %128 = arith.addf %124, %127 : vector<32x128xf32>
      %c2_47 = arith.constant 2 : index
      %c2_48 = arith.constant 2 : index
      %129 = memref.load %arg3[%c2_47, %c2_48] : memref<3x32xf32, #tpu.memory_space<smem>>
      %130 = vector.broadcast %129 : f32 to vector<32x128xf32>
      %131 = arith.mulf %130, %61 : vector<32x128xf32>
      %132 = arith.addf %128, %131 : vector<32x128xf32>
      %c0_49 = arith.constant 0 : index
      %c2_50 = arith.constant 2 : index
      %133 = memref.load %arg4[%c0_49, %c2_50] : memref<1x32xf32, #tpu.memory_space<smem>>
      %134 = vector.broadcast %133 : f32 to vector<32x128xf32>
      %135 = arith.addf %132, %134 : vector<32x128xf32>
      %cst_51 = arith.constant 0.000000e+00 : f32
      %136 = vector.broadcast %cst_51 : f32 to vector<32x128xf32>
      %137 = arith.maximumf %135, %136 : vector<32x128xf32>
      %c0_52 = arith.constant 0 : index
      %c2_53 = arith.constant 2 : index
      %138 = memref.load %arg5[%c0_52, %c2_53] : memref<1x32xf32, #tpu.memory_space<smem>>
      %139 = vector.broadcast %138 : f32 to vector<32x128xf32>
      %140 = arith.mulf %139, %137 : vector<32x128xf32>
      %141 = arith.addf %109, %140 : vector<32x128xf32>
      %c0_54 = arith.constant 0 : index
      %c2_55 = arith.constant 2 : index
      %142 = memref.load %arg7[%c0_54, %c2_55] : memref<3x32xf32, #tpu.memory_space<smem>>
      %143 = vector.broadcast %142 : f32 to vector<32x128xf32>
      %144 = arith.mulf %143, %137 : vector<32x128xf32>
      %145 = arith.addf %113, %144 : vector<32x128xf32>
      %c1_56 = arith.constant 1 : index
      %c2_57 = arith.constant 2 : index
      %146 = memref.load %arg7[%c1_56, %c2_57] : memref<3x32xf32, #tpu.memory_space<smem>>
      %147 = vector.broadcast %146 : f32 to vector<32x128xf32>
      %148 = arith.mulf %147, %137 : vector<32x128xf32>
      %149 = arith.addf %117, %148 : vector<32x128xf32>
      %c2_58 = arith.constant 2 : index
      %c2_59 = arith.constant 2 : index
      %150 = memref.load %arg7[%c2_58, %c2_59] : memref<3x32xf32, #tpu.memory_space<smem>>
      %151 = vector.broadcast %150 : f32 to vector<32x128xf32>
      %152 = arith.mulf %151, %137 : vector<32x128xf32>
      %153 = arith.addf %121, %152 : vector<32x128xf32>
      %c0_60 = arith.constant 0 : index
      %c3 = arith.constant 3 : index
      %154 = memref.load %arg3[%c0_60, %c3] : memref<3x32xf32, #tpu.memory_space<smem>>
      %155 = vector.broadcast %154 : f32 to vector<32x128xf32>
      %156 = arith.mulf %155, %45 : vector<32x128xf32>
      %c1_61 = arith.constant 1 : index
      %c3_62 = arith.constant 3 : index
      %157 = memref.load %arg3[%c1_61, %c3_62] : memref<3x32xf32, #tpu.memory_space<smem>>
      %158 = vector.broadcast %157 : f32 to vector<32x128xf32>
      %159 = arith.mulf %158, %53 : vector<32x128xf32>
      %160 = arith.addf %156, %159 : vector<32x128xf32>
      %c2_63 = arith.constant 2 : index
      %c3_64 = arith.constant 3 : index
      %161 = memref.load %arg3[%c2_63, %c3_64] : memref<3x32xf32, #tpu.memory_space<smem>>
      %162 = vector.broadcast %161 : f32 to vector<32x128xf32>
      %163 = arith.mulf %162, %61 : vector<32x128xf32>
      %164 = arith.addf %160, %163 : vector<32x128xf32>
      %c0_65 = arith.constant 0 : index
      %c3_66 = arith.constant 3 : index
      %165 = memref.load %arg4[%c0_65, %c3_66] : memref<1x32xf32, #tpu.memory_space<smem>>
      %166 = vector.broadcast %165 : f32 to vector<32x128xf32>
      %167 = arith.addf %164, %166 : vector<32x128xf32>
      %cst_67 = arith.constant 0.000000e+00 : f32
      %168 = vector.broadcast %cst_67 : f32 to vector<32x128xf32>
      %169 = arith.maximumf %167, %168 : vector<32x128xf32>
      %c0_68 = arith.constant 0 : index
      %c3_69 = arith.constant 3 : index
      %170 = memref.load %arg5[%c0_68, %c3_69] : memref<1x32xf32, #tpu.memory_space<smem>>
      %171 = vector.broadcast %170 : f32 to vector<32x128xf32>
      %172 = arith.mulf %171, %169 : vector<32x128xf32>
      %173 = arith.addf %141, %172 : vector<32x128xf32>
      %c0_70 = arith.constant 0 : index
      %c3_71 = arith.constant 3 : index
      %174 = memref.load %arg7[%c0_70, %c3_71] : memref<3x32xf32, #tpu.memory_space<smem>>
      %175 = vector.broadcast %174 : f32 to vector<32x128xf32>
      %176 = arith.mulf %175, %169 : vector<32x128xf32>
      %177 = arith.addf %145, %176 : vector<32x128xf32>
      %c1_72 = arith.constant 1 : index
      %c3_73 = arith.constant 3 : index
      %178 = memref.load %arg7[%c1_72, %c3_73] : memref<3x32xf32, #tpu.memory_space<smem>>
      %179 = vector.broadcast %178 : f32 to vector<32x128xf32>
      %180 = arith.mulf %179, %169 : vector<32x128xf32>
      %181 = arith.addf %149, %180 : vector<32x128xf32>
      %c2_74 = arith.constant 2 : index
      %c3_75 = arith.constant 3 : index
      %182 = memref.load %arg7[%c2_74, %c3_75] : memref<3x32xf32, #tpu.memory_space<smem>>
      %183 = vector.broadcast %182 : f32 to vector<32x128xf32>
      %184 = arith.mulf %183, %169 : vector<32x128xf32>
      %185 = arith.addf %153, %184 : vector<32x128xf32>
      %c0_76 = arith.constant 0 : index
      %c4 = arith.constant 4 : index
      %186 = memref.load %arg3[%c0_76, %c4] : memref<3x32xf32, #tpu.memory_space<smem>>
      %187 = vector.broadcast %186 : f32 to vector<32x128xf32>
      %188 = arith.mulf %187, %45 : vector<32x128xf32>
      %c1_77 = arith.constant 1 : index
      %c4_78 = arith.constant 4 : index
      %189 = memref.load %arg3[%c1_77, %c4_78] : memref<3x32xf32, #tpu.memory_space<smem>>
      %190 = vector.broadcast %189 : f32 to vector<32x128xf32>
      %191 = arith.mulf %190, %53 : vector<32x128xf32>
      %192 = arith.addf %188, %191 : vector<32x128xf32>
      %c2_79 = arith.constant 2 : index
      %c4_80 = arith.constant 4 : index
      %193 = memref.load %arg3[%c2_79, %c4_80] : memref<3x32xf32, #tpu.memory_space<smem>>
      %194 = vector.broadcast %193 : f32 to vector<32x128xf32>
      %195 = arith.mulf %194, %61 : vector<32x128xf32>
      %196 = arith.addf %192, %195 : vector<32x128xf32>
      %c0_81 = arith.constant 0 : index
      %c4_82 = arith.constant 4 : index
      %197 = memref.load %arg4[%c0_81, %c4_82] : memref<1x32xf32, #tpu.memory_space<smem>>
      %198 = vector.broadcast %197 : f32 to vector<32x128xf32>
      %199 = arith.addf %196, %198 : vector<32x128xf32>
      %cst_83 = arith.constant 0.000000e+00 : f32
      %200 = vector.broadcast %cst_83 : f32 to vector<32x128xf32>
      %201 = arith.maximumf %199, %200 : vector<32x128xf32>
      %c0_84 = arith.constant 0 : index
      %c4_85 = arith.constant 4 : index
      %202 = memref.load %arg5[%c0_84, %c4_85] : memref<1x32xf32, #tpu.memory_space<smem>>
      %203 = vector.broadcast %202 : f32 to vector<32x128xf32>
      %204 = arith.mulf %203, %201 : vector<32x128xf32>
      %205 = arith.addf %173, %204 : vector<32x128xf32>
      %c0_86 = arith.constant 0 : index
      %c4_87 = arith.constant 4 : index
      %206 = memref.load %arg7[%c0_86, %c4_87] : memref<3x32xf32, #tpu.memory_space<smem>>
      %207 = vector.broadcast %206 : f32 to vector<32x128xf32>
      %208 = arith.mulf %207, %201 : vector<32x128xf32>
      %209 = arith.addf %177, %208 : vector<32x128xf32>
      %c1_88 = arith.constant 1 : index
      %c4_89 = arith.constant 4 : index
      %210 = memref.load %arg7[%c1_88, %c4_89] : memref<3x32xf32, #tpu.memory_space<smem>>
      %211 = vector.broadcast %210 : f32 to vector<32x128xf32>
      %212 = arith.mulf %211, %201 : vector<32x128xf32>
      %213 = arith.addf %181, %212 : vector<32x128xf32>
      %c2_90 = arith.constant 2 : index
      %c4_91 = arith.constant 4 : index
      %214 = memref.load %arg7[%c2_90, %c4_91] : memref<3x32xf32, #tpu.memory_space<smem>>
      %215 = vector.broadcast %214 : f32 to vector<32x128xf32>
      %216 = arith.mulf %215, %201 : vector<32x128xf32>
      %217 = arith.addf %185, %216 : vector<32x128xf32>
      %c0_92 = arith.constant 0 : index
      %c5 = arith.constant 5 : index
      %218 = memref.load %arg3[%c0_92, %c5] : memref<3x32xf32, #tpu.memory_space<smem>>
      %219 = vector.broadcast %218 : f32 to vector<32x128xf32>
      %220 = arith.mulf %219, %45 : vector<32x128xf32>
      %c1_93 = arith.constant 1 : index
      %c5_94 = arith.constant 5 : index
      %221 = memref.load %arg3[%c1_93, %c5_94] : memref<3x32xf32, #tpu.memory_space<smem>>
      %222 = vector.broadcast %221 : f32 to vector<32x128xf32>
      %223 = arith.mulf %222, %53 : vector<32x128xf32>
      %224 = arith.addf %220, %223 : vector<32x128xf32>
      %c2_95 = arith.constant 2 : index
      %c5_96 = arith.constant 5 : index
      %225 = memref.load %arg3[%c2_95, %c5_96] : memref<3x32xf32, #tpu.memory_space<smem>>
      %226 = vector.broadcast %225 : f32 to vector<32x128xf32>
      %227 = arith.mulf %226, %61 : vector<32x128xf32>
      %228 = arith.addf %224, %227 : vector<32x128xf32>
      %c0_97 = arith.constant 0 : index
      %c5_98 = arith.constant 5 : index
      %229 = memref.load %arg4[%c0_97, %c5_98] : memref<1x32xf32, #tpu.memory_space<smem>>
      %230 = vector.broadcast %229 : f32 to vector<32x128xf32>
      %231 = arith.addf %228, %230 : vector<32x128xf32>
      %cst_99 = arith.constant 0.000000e+00 : f32
      %232 = vector.broadcast %cst_99 : f32 to vector<32x128xf32>
      %233 = arith.maximumf %231, %232 : vector<32x128xf32>
      %c0_100 = arith.constant 0 : index
      %c5_101 = arith.constant 5 : index
      %234 = memref.load %arg5[%c0_100, %c5_101] : memref<1x32xf32, #tpu.memory_space<smem>>
      %235 = vector.broadcast %234 : f32 to vector<32x128xf32>
      %236 = arith.mulf %235, %233 : vector<32x128xf32>
      %237 = arith.addf %205, %236 : vector<32x128xf32>
      %c0_102 = arith.constant 0 : index
      %c5_103 = arith.constant 5 : index
      %238 = memref.load %arg7[%c0_102, %c5_103] : memref<3x32xf32, #tpu.memory_space<smem>>
      %239 = vector.broadcast %238 : f32 to vector<32x128xf32>
      %240 = arith.mulf %239, %233 : vector<32x128xf32>
      %241 = arith.addf %209, %240 : vector<32x128xf32>
      %c1_104 = arith.constant 1 : index
      %c5_105 = arith.constant 5 : index
      %242 = memref.load %arg7[%c1_104, %c5_105] : memref<3x32xf32, #tpu.memory_space<smem>>
      %243 = vector.broadcast %242 : f32 to vector<32x128xf32>
      %244 = arith.mulf %243, %233 : vector<32x128xf32>
      %245 = arith.addf %213, %244 : vector<32x128xf32>
      %c2_106 = arith.constant 2 : index
      %c5_107 = arith.constant 5 : index
      %246 = memref.load %arg7[%c2_106, %c5_107] : memref<3x32xf32, #tpu.memory_space<smem>>
      %247 = vector.broadcast %246 : f32 to vector<32x128xf32>
      %248 = arith.mulf %247, %233 : vector<32x128xf32>
      %249 = arith.addf %217, %248 : vector<32x128xf32>
      %c0_108 = arith.constant 0 : index
      %c6 = arith.constant 6 : index
      %250 = memref.load %arg3[%c0_108, %c6] : memref<3x32xf32, #tpu.memory_space<smem>>
      %251 = vector.broadcast %250 : f32 to vector<32x128xf32>
      %252 = arith.mulf %251, %45 : vector<32x128xf32>
      %c1_109 = arith.constant 1 : index
      %c6_110 = arith.constant 6 : index
      %253 = memref.load %arg3[%c1_109, %c6_110] : memref<3x32xf32, #tpu.memory_space<smem>>
      %254 = vector.broadcast %253 : f32 to vector<32x128xf32>
      %255 = arith.mulf %254, %53 : vector<32x128xf32>
      %256 = arith.addf %252, %255 : vector<32x128xf32>
      %c2_111 = arith.constant 2 : index
      %c6_112 = arith.constant 6 : index
      %257 = memref.load %arg3[%c2_111, %c6_112] : memref<3x32xf32, #tpu.memory_space<smem>>
      %258 = vector.broadcast %257 : f32 to vector<32x128xf32>
      %259 = arith.mulf %258, %61 : vector<32x128xf32>
      %260 = arith.addf %256, %259 : vector<32x128xf32>
      %c0_113 = arith.constant 0 : index
      %c6_114 = arith.constant 6 : index
      %261 = memref.load %arg4[%c0_113, %c6_114] : memref<1x32xf32, #tpu.memory_space<smem>>
      %262 = vector.broadcast %261 : f32 to vector<32x128xf32>
      %263 = arith.addf %260, %262 : vector<32x128xf32>
      %cst_115 = arith.constant 0.000000e+00 : f32
      %264 = vector.broadcast %cst_115 : f32 to vector<32x128xf32>
      %265 = arith.maximumf %263, %264 : vector<32x128xf32>
      %c0_116 = arith.constant 0 : index
      %c6_117 = arith.constant 6 : index
      %266 = memref.load %arg5[%c0_116, %c6_117] : memref<1x32xf32, #tpu.memory_space<smem>>
      %267 = vector.broadcast %266 : f32 to vector<32x128xf32>
      %268 = arith.mulf %267, %265 : vector<32x128xf32>
      %269 = arith.addf %237, %268 : vector<32x128xf32>
      %c0_118 = arith.constant 0 : index
      %c6_119 = arith.constant 6 : index
      %270 = memref.load %arg7[%c0_118, %c6_119] : memref<3x32xf32, #tpu.memory_space<smem>>
      %271 = vector.broadcast %270 : f32 to vector<32x128xf32>
      %272 = arith.mulf %271, %265 : vector<32x128xf32>
      %273 = arith.addf %241, %272 : vector<32x128xf32>
      %c1_120 = arith.constant 1 : index
      %c6_121 = arith.constant 6 : index
      %274 = memref.load %arg7[%c1_120, %c6_121] : memref<3x32xf32, #tpu.memory_space<smem>>
      %275 = vector.broadcast %274 : f32 to vector<32x128xf32>
      %276 = arith.mulf %275, %265 : vector<32x128xf32>
      %277 = arith.addf %245, %276 : vector<32x128xf32>
      %c2_122 = arith.constant 2 : index
      %c6_123 = arith.constant 6 : index
      %278 = memref.load %arg7[%c2_122, %c6_123] : memref<3x32xf32, #tpu.memory_space<smem>>
      %279 = vector.broadcast %278 : f32 to vector<32x128xf32>
      %280 = arith.mulf %279, %265 : vector<32x128xf32>
      %281 = arith.addf %249, %280 : vector<32x128xf32>
      %c0_124 = arith.constant 0 : index
      %c7 = arith.constant 7 : index
      %282 = memref.load %arg3[%c0_124, %c7] : memref<3x32xf32, #tpu.memory_space<smem>>
      %283 = vector.broadcast %282 : f32 to vector<32x128xf32>
      %284 = arith.mulf %283, %45 : vector<32x128xf32>
      %c1_125 = arith.constant 1 : index
      %c7_126 = arith.constant 7 : index
      %285 = memref.load %arg3[%c1_125, %c7_126] : memref<3x32xf32, #tpu.memory_space<smem>>
      %286 = vector.broadcast %285 : f32 to vector<32x128xf32>
      %287 = arith.mulf %286, %53 : vector<32x128xf32>
      %288 = arith.addf %284, %287 : vector<32x128xf32>
      %c2_127 = arith.constant 2 : index
      %c7_128 = arith.constant 7 : index
      %289 = memref.load %arg3[%c2_127, %c7_128] : memref<3x32xf32, #tpu.memory_space<smem>>
      %290 = vector.broadcast %289 : f32 to vector<32x128xf32>
      %291 = arith.mulf %290, %61 : vector<32x128xf32>
      %292 = arith.addf %288, %291 : vector<32x128xf32>
      %c0_129 = arith.constant 0 : index
      %c7_130 = arith.constant 7 : index
      %293 = memref.load %arg4[%c0_129, %c7_130] : memref<1x32xf32, #tpu.memory_space<smem>>
      %294 = vector.broadcast %293 : f32 to vector<32x128xf32>
      %295 = arith.addf %292, %294 : vector<32x128xf32>
      %cst_131 = arith.constant 0.000000e+00 : f32
      %296 = vector.broadcast %cst_131 : f32 to vector<32x128xf32>
      %297 = arith.maximumf %295, %296 : vector<32x128xf32>
      %c0_132 = arith.constant 0 : index
      %c7_133 = arith.constant 7 : index
      %298 = memref.load %arg5[%c0_132, %c7_133] : memref<1x32xf32, #tpu.memory_space<smem>>
      %299 = vector.broadcast %298 : f32 to vector<32x128xf32>
      %300 = arith.mulf %299, %297 : vector<32x128xf32>
      %301 = arith.addf %269, %300 : vector<32x128xf32>
      %c0_134 = arith.constant 0 : index
      %c7_135 = arith.constant 7 : index
      %302 = memref.load %arg7[%c0_134, %c7_135] : memref<3x32xf32, #tpu.memory_space<smem>>
      %303 = vector.broadcast %302 : f32 to vector<32x128xf32>
      %304 = arith.mulf %303, %297 : vector<32x128xf32>
      %305 = arith.addf %273, %304 : vector<32x128xf32>
      %c1_136 = arith.constant 1 : index
      %c7_137 = arith.constant 7 : index
      %306 = memref.load %arg7[%c1_136, %c7_137] : memref<3x32xf32, #tpu.memory_space<smem>>
      %307 = vector.broadcast %306 : f32 to vector<32x128xf32>
      %308 = arith.mulf %307, %297 : vector<32x128xf32>
      %309 = arith.addf %277, %308 : vector<32x128xf32>
      %c2_138 = arith.constant 2 : index
      %c7_139 = arith.constant 7 : index
      %310 = memref.load %arg7[%c2_138, %c7_139] : memref<3x32xf32, #tpu.memory_space<smem>>
      %311 = vector.broadcast %310 : f32 to vector<32x128xf32>
      %312 = arith.mulf %311, %297 : vector<32x128xf32>
      %313 = arith.addf %281, %312 : vector<32x128xf32>
      %c0_140 = arith.constant 0 : index
      %c8 = arith.constant 8 : index
      %314 = memref.load %arg3[%c0_140, %c8] : memref<3x32xf32, #tpu.memory_space<smem>>
      %315 = vector.broadcast %314 : f32 to vector<32x128xf32>
      %316 = arith.mulf %315, %45 : vector<32x128xf32>
      %c1_141 = arith.constant 1 : index
      %c8_142 = arith.constant 8 : index
      %317 = memref.load %arg3[%c1_141, %c8_142] : memref<3x32xf32, #tpu.memory_space<smem>>
      %318 = vector.broadcast %317 : f32 to vector<32x128xf32>
      %319 = arith.mulf %318, %53 : vector<32x128xf32>
      %320 = arith.addf %316, %319 : vector<32x128xf32>
      %c2_143 = arith.constant 2 : index
      %c8_144 = arith.constant 8 : index
      %321 = memref.load %arg3[%c2_143, %c8_144] : memref<3x32xf32, #tpu.memory_space<smem>>
      %322 = vector.broadcast %321 : f32 to vector<32x128xf32>
      %323 = arith.mulf %322, %61 : vector<32x128xf32>
      %324 = arith.addf %320, %323 : vector<32x128xf32>
      %c0_145 = arith.constant 0 : index
      %c8_146 = arith.constant 8 : index
      %325 = memref.load %arg4[%c0_145, %c8_146] : memref<1x32xf32, #tpu.memory_space<smem>>
      %326 = vector.broadcast %325 : f32 to vector<32x128xf32>
      %327 = arith.addf %324, %326 : vector<32x128xf32>
      %cst_147 = arith.constant 0.000000e+00 : f32
      %328 = vector.broadcast %cst_147 : f32 to vector<32x128xf32>
      %329 = arith.maximumf %327, %328 : vector<32x128xf32>
      %c0_148 = arith.constant 0 : index
      %c8_149 = arith.constant 8 : index
      %330 = memref.load %arg5[%c0_148, %c8_149] : memref<1x32xf32, #tpu.memory_space<smem>>
      %331 = vector.broadcast %330 : f32 to vector<32x128xf32>
      %332 = arith.mulf %331, %329 : vector<32x128xf32>
      %333 = arith.addf %301, %332 : vector<32x128xf32>
      %c0_150 = arith.constant 0 : index
      %c8_151 = arith.constant 8 : index
      %334 = memref.load %arg7[%c0_150, %c8_151] : memref<3x32xf32, #tpu.memory_space<smem>>
      %335 = vector.broadcast %334 : f32 to vector<32x128xf32>
      %336 = arith.mulf %335, %329 : vector<32x128xf32>
      %337 = arith.addf %305, %336 : vector<32x128xf32>
      %c1_152 = arith.constant 1 : index
      %c8_153 = arith.constant 8 : index
      %338 = memref.load %arg7[%c1_152, %c8_153] : memref<3x32xf32, #tpu.memory_space<smem>>
      %339 = vector.broadcast %338 : f32 to vector<32x128xf32>
      %340 = arith.mulf %339, %329 : vector<32x128xf32>
      %341 = arith.addf %309, %340 : vector<32x128xf32>
      %c2_154 = arith.constant 2 : index
      %c8_155 = arith.constant 8 : index
      %342 = memref.load %arg7[%c2_154, %c8_155] : memref<3x32xf32, #tpu.memory_space<smem>>
      %343 = vector.broadcast %342 : f32 to vector<32x128xf32>
      %344 = arith.mulf %343, %329 : vector<32x128xf32>
      %345 = arith.addf %313, %344 : vector<32x128xf32>
      %c0_156 = arith.constant 0 : index
      %c9 = arith.constant 9 : index
      %346 = memref.load %arg3[%c0_156, %c9] : memref<3x32xf32, #tpu.memory_space<smem>>
      %347 = vector.broadcast %346 : f32 to vector<32x128xf32>
      %348 = arith.mulf %347, %45 : vector<32x128xf32>
      %c1_157 = arith.constant 1 : index
      %c9_158 = arith.constant 9 : index
      %349 = memref.load %arg3[%c1_157, %c9_158] : memref<3x32xf32, #tpu.memory_space<smem>>
      %350 = vector.broadcast %349 : f32 to vector<32x128xf32>
      %351 = arith.mulf %350, %53 : vector<32x128xf32>
      %352 = arith.addf %348, %351 : vector<32x128xf32>
      %c2_159 = arith.constant 2 : index
      %c9_160 = arith.constant 9 : index
      %353 = memref.load %arg3[%c2_159, %c9_160] : memref<3x32xf32, #tpu.memory_space<smem>>
      %354 = vector.broadcast %353 : f32 to vector<32x128xf32>
      %355 = arith.mulf %354, %61 : vector<32x128xf32>
      %356 = arith.addf %352, %355 : vector<32x128xf32>
      %c0_161 = arith.constant 0 : index
      %c9_162 = arith.constant 9 : index
      %357 = memref.load %arg4[%c0_161, %c9_162] : memref<1x32xf32, #tpu.memory_space<smem>>
      %358 = vector.broadcast %357 : f32 to vector<32x128xf32>
      %359 = arith.addf %356, %358 : vector<32x128xf32>
      %cst_163 = arith.constant 0.000000e+00 : f32
      %360 = vector.broadcast %cst_163 : f32 to vector<32x128xf32>
      %361 = arith.maximumf %359, %360 : vector<32x128xf32>
      %c0_164 = arith.constant 0 : index
      %c9_165 = arith.constant 9 : index
      %362 = memref.load %arg5[%c0_164, %c9_165] : memref<1x32xf32, #tpu.memory_space<smem>>
      %363 = vector.broadcast %362 : f32 to vector<32x128xf32>
      %364 = arith.mulf %363, %361 : vector<32x128xf32>
      %365 = arith.addf %333, %364 : vector<32x128xf32>
      %c0_166 = arith.constant 0 : index
      %c9_167 = arith.constant 9 : index
      %366 = memref.load %arg7[%c0_166, %c9_167] : memref<3x32xf32, #tpu.memory_space<smem>>
      %367 = vector.broadcast %366 : f32 to vector<32x128xf32>
      %368 = arith.mulf %367, %361 : vector<32x128xf32>
      %369 = arith.addf %337, %368 : vector<32x128xf32>
      %c1_168 = arith.constant 1 : index
      %c9_169 = arith.constant 9 : index
      %370 = memref.load %arg7[%c1_168, %c9_169] : memref<3x32xf32, #tpu.memory_space<smem>>
      %371 = vector.broadcast %370 : f32 to vector<32x128xf32>
      %372 = arith.mulf %371, %361 : vector<32x128xf32>
      %373 = arith.addf %341, %372 : vector<32x128xf32>
      %c2_170 = arith.constant 2 : index
      %c9_171 = arith.constant 9 : index
      %374 = memref.load %arg7[%c2_170, %c9_171] : memref<3x32xf32, #tpu.memory_space<smem>>
      %375 = vector.broadcast %374 : f32 to vector<32x128xf32>
      %376 = arith.mulf %375, %361 : vector<32x128xf32>
      %377 = arith.addf %345, %376 : vector<32x128xf32>
      %c0_172 = arith.constant 0 : index
      %c10 = arith.constant 10 : index
      %378 = memref.load %arg3[%c0_172, %c10] : memref<3x32xf32, #tpu.memory_space<smem>>
      %379 = vector.broadcast %378 : f32 to vector<32x128xf32>
      %380 = arith.mulf %379, %45 : vector<32x128xf32>
      %c1_173 = arith.constant 1 : index
      %c10_174 = arith.constant 10 : index
      %381 = memref.load %arg3[%c1_173, %c10_174] : memref<3x32xf32, #tpu.memory_space<smem>>
      %382 = vector.broadcast %381 : f32 to vector<32x128xf32>
      %383 = arith.mulf %382, %53 : vector<32x128xf32>
      %384 = arith.addf %380, %383 : vector<32x128xf32>
      %c2_175 = arith.constant 2 : index
      %c10_176 = arith.constant 10 : index
      %385 = memref.load %arg3[%c2_175, %c10_176] : memref<3x32xf32, #tpu.memory_space<smem>>
      %386 = vector.broadcast %385 : f32 to vector<32x128xf32>
      %387 = arith.mulf %386, %61 : vector<32x128xf32>
      %388 = arith.addf %384, %387 : vector<32x128xf32>
      %c0_177 = arith.constant 0 : index
      %c10_178 = arith.constant 10 : index
      %389 = memref.load %arg4[%c0_177, %c10_178] : memref<1x32xf32, #tpu.memory_space<smem>>
      %390 = vector.broadcast %389 : f32 to vector<32x128xf32>
      %391 = arith.addf %388, %390 : vector<32x128xf32>
      %cst_179 = arith.constant 0.000000e+00 : f32
      %392 = vector.broadcast %cst_179 : f32 to vector<32x128xf32>
      %393 = arith.maximumf %391, %392 : vector<32x128xf32>
      %c0_180 = arith.constant 0 : index
      %c10_181 = arith.constant 10 : index
      %394 = memref.load %arg5[%c0_180, %c10_181] : memref<1x32xf32, #tpu.memory_space<smem>>
      %395 = vector.broadcast %394 : f32 to vector<32x128xf32>
      %396 = arith.mulf %395, %393 : vector<32x128xf32>
      %397 = arith.addf %365, %396 : vector<32x128xf32>
      %c0_182 = arith.constant 0 : index
      %c10_183 = arith.constant 10 : index
      %398 = memref.load %arg7[%c0_182, %c10_183] : memref<3x32xf32, #tpu.memory_space<smem>>
      %399 = vector.broadcast %398 : f32 to vector<32x128xf32>
      %400 = arith.mulf %399, %393 : vector<32x128xf32>
      %401 = arith.addf %369, %400 : vector<32x128xf32>
      %c1_184 = arith.constant 1 : index
      %c10_185 = arith.constant 10 : index
      %402 = memref.load %arg7[%c1_184, %c10_185] : memref<3x32xf32, #tpu.memory_space<smem>>
      %403 = vector.broadcast %402 : f32 to vector<32x128xf32>
      %404 = arith.mulf %403, %393 : vector<32x128xf32>
      %405 = arith.addf %373, %404 : vector<32x128xf32>
      %c2_186 = arith.constant 2 : index
      %c10_187 = arith.constant 10 : index
      %406 = memref.load %arg7[%c2_186, %c10_187] : memref<3x32xf32, #tpu.memory_space<smem>>
      %407 = vector.broadcast %406 : f32 to vector<32x128xf32>
      %408 = arith.mulf %407, %393 : vector<32x128xf32>
      %409 = arith.addf %377, %408 : vector<32x128xf32>
      %c0_188 = arith.constant 0 : index
      %c11 = arith.constant 11 : index
      %410 = memref.load %arg3[%c0_188, %c11] : memref<3x32xf32, #tpu.memory_space<smem>>
      %411 = vector.broadcast %410 : f32 to vector<32x128xf32>
      %412 = arith.mulf %411, %45 : vector<32x128xf32>
      %c1_189 = arith.constant 1 : index
      %c11_190 = arith.constant 11 : index
      %413 = memref.load %arg3[%c1_189, %c11_190] : memref<3x32xf32, #tpu.memory_space<smem>>
      %414 = vector.broadcast %413 : f32 to vector<32x128xf32>
      %415 = arith.mulf %414, %53 : vector<32x128xf32>
      %416 = arith.addf %412, %415 : vector<32x128xf32>
      %c2_191 = arith.constant 2 : index
      %c11_192 = arith.constant 11 : index
      %417 = memref.load %arg3[%c2_191, %c11_192] : memref<3x32xf32, #tpu.memory_space<smem>>
      %418 = vector.broadcast %417 : f32 to vector<32x128xf32>
      %419 = arith.mulf %418, %61 : vector<32x128xf32>
      %420 = arith.addf %416, %419 : vector<32x128xf32>
      %c0_193 = arith.constant 0 : index
      %c11_194 = arith.constant 11 : index
      %421 = memref.load %arg4[%c0_193, %c11_194] : memref<1x32xf32, #tpu.memory_space<smem>>
      %422 = vector.broadcast %421 : f32 to vector<32x128xf32>
      %423 = arith.addf %420, %422 : vector<32x128xf32>
      %cst_195 = arith.constant 0.000000e+00 : f32
      %424 = vector.broadcast %cst_195 : f32 to vector<32x128xf32>
      %425 = arith.maximumf %423, %424 : vector<32x128xf32>
      %c0_196 = arith.constant 0 : index
      %c11_197 = arith.constant 11 : index
      %426 = memref.load %arg5[%c0_196, %c11_197] : memref<1x32xf32, #tpu.memory_space<smem>>
      %427 = vector.broadcast %426 : f32 to vector<32x128xf32>
      %428 = arith.mulf %427, %425 : vector<32x128xf32>
      %429 = arith.addf %397, %428 : vector<32x128xf32>
      %c0_198 = arith.constant 0 : index
      %c11_199 = arith.constant 11 : index
      %430 = memref.load %arg7[%c0_198, %c11_199] : memref<3x32xf32, #tpu.memory_space<smem>>
      %431 = vector.broadcast %430 : f32 to vector<32x128xf32>
      %432 = arith.mulf %431, %425 : vector<32x128xf32>
      %433 = arith.addf %401, %432 : vector<32x128xf32>
      %c1_200 = arith.constant 1 : index
      %c11_201 = arith.constant 11 : index
      %434 = memref.load %arg7[%c1_200, %c11_201] : memref<3x32xf32, #tpu.memory_space<smem>>
      %435 = vector.broadcast %434 : f32 to vector<32x128xf32>
      %436 = arith.mulf %435, %425 : vector<32x128xf32>
      %437 = arith.addf %405, %436 : vector<32x128xf32>
      %c2_202 = arith.constant 2 : index
      %c11_203 = arith.constant 11 : index
      %438 = memref.load %arg7[%c2_202, %c11_203] : memref<3x32xf32, #tpu.memory_space<smem>>
      %439 = vector.broadcast %438 : f32 to vector<32x128xf32>
      %440 = arith.mulf %439, %425 : vector<32x128xf32>
      %441 = arith.addf %409, %440 : vector<32x128xf32>
      %c0_204 = arith.constant 0 : index
      %c12 = arith.constant 12 : index
      %442 = memref.load %arg3[%c0_204, %c12] : memref<3x32xf32, #tpu.memory_space<smem>>
      %443 = vector.broadcast %442 : f32 to vector<32x128xf32>
      %444 = arith.mulf %443, %45 : vector<32x128xf32>
      %c1_205 = arith.constant 1 : index
      %c12_206 = arith.constant 12 : index
      %445 = memref.load %arg3[%c1_205, %c12_206] : memref<3x32xf32, #tpu.memory_space<smem>>
      %446 = vector.broadcast %445 : f32 to vector<32x128xf32>
      %447 = arith.mulf %446, %53 : vector<32x128xf32>
      %448 = arith.addf %444, %447 : vector<32x128xf32>
      %c2_207 = arith.constant 2 : index
      %c12_208 = arith.constant 12 : index
      %449 = memref.load %arg3[%c2_207, %c12_208] : memref<3x32xf32, #tpu.memory_space<smem>>
      %450 = vector.broadcast %449 : f32 to vector<32x128xf32>
      %451 = arith.mulf %450, %61 : vector<32x128xf32>
      %452 = arith.addf %448, %451 : vector<32x128xf32>
      %c0_209 = arith.constant 0 : index
      %c12_210 = arith.constant 12 : index
      %453 = memref.load %arg4[%c0_209, %c12_210] : memref<1x32xf32, #tpu.memory_space<smem>>
      %454 = vector.broadcast %453 : f32 to vector<32x128xf32>
      %455 = arith.addf %452, %454 : vector<32x128xf32>
      %cst_211 = arith.constant 0.000000e+00 : f32
      %456 = vector.broadcast %cst_211 : f32 to vector<32x128xf32>
      %457 = arith.maximumf %455, %456 : vector<32x128xf32>
      %c0_212 = arith.constant 0 : index
      %c12_213 = arith.constant 12 : index
      %458 = memref.load %arg5[%c0_212, %c12_213] : memref<1x32xf32, #tpu.memory_space<smem>>
      %459 = vector.broadcast %458 : f32 to vector<32x128xf32>
      %460 = arith.mulf %459, %457 : vector<32x128xf32>
      %461 = arith.addf %429, %460 : vector<32x128xf32>
      %c0_214 = arith.constant 0 : index
      %c12_215 = arith.constant 12 : index
      %462 = memref.load %arg7[%c0_214, %c12_215] : memref<3x32xf32, #tpu.memory_space<smem>>
      %463 = vector.broadcast %462 : f32 to vector<32x128xf32>
      %464 = arith.mulf %463, %457 : vector<32x128xf32>
      %465 = arith.addf %433, %464 : vector<32x128xf32>
      %c1_216 = arith.constant 1 : index
      %c12_217 = arith.constant 12 : index
      %466 = memref.load %arg7[%c1_216, %c12_217] : memref<3x32xf32, #tpu.memory_space<smem>>
      %467 = vector.broadcast %466 : f32 to vector<32x128xf32>
      %468 = arith.mulf %467, %457 : vector<32x128xf32>
      %469 = arith.addf %437, %468 : vector<32x128xf32>
      %c2_218 = arith.constant 2 : index
      %c12_219 = arith.constant 12 : index
      %470 = memref.load %arg7[%c2_218, %c12_219] : memref<3x32xf32, #tpu.memory_space<smem>>
      %471 = vector.broadcast %470 : f32 to vector<32x128xf32>
      %472 = arith.mulf %471, %457 : vector<32x128xf32>
      %473 = arith.addf %441, %472 : vector<32x128xf32>
      %c0_220 = arith.constant 0 : index
      %c13 = arith.constant 13 : index
      %474 = memref.load %arg3[%c0_220, %c13] : memref<3x32xf32, #tpu.memory_space<smem>>
      %475 = vector.broadcast %474 : f32 to vector<32x128xf32>
      %476 = arith.mulf %475, %45 : vector<32x128xf32>
      %c1_221 = arith.constant 1 : index
      %c13_222 = arith.constant 13 : index
      %477 = memref.load %arg3[%c1_221, %c13_222] : memref<3x32xf32, #tpu.memory_space<smem>>
      %478 = vector.broadcast %477 : f32 to vector<32x128xf32>
      %479 = arith.mulf %478, %53 : vector<32x128xf32>
      %480 = arith.addf %476, %479 : vector<32x128xf32>
      %c2_223 = arith.constant 2 : index
      %c13_224 = arith.constant 13 : index
      %481 = memref.load %arg3[%c2_223, %c13_224] : memref<3x32xf32, #tpu.memory_space<smem>>
      %482 = vector.broadcast %481 : f32 to vector<32x128xf32>
      %483 = arith.mulf %482, %61 : vector<32x128xf32>
      %484 = arith.addf %480, %483 : vector<32x128xf32>
      %c0_225 = arith.constant 0 : index
      %c13_226 = arith.constant 13 : index
      %485 = memref.load %arg4[%c0_225, %c13_226] : memref<1x32xf32, #tpu.memory_space<smem>>
      %486 = vector.broadcast %485 : f32 to vector<32x128xf32>
      %487 = arith.addf %484, %486 : vector<32x128xf32>
      %cst_227 = arith.constant 0.000000e+00 : f32
      %488 = vector.broadcast %cst_227 : f32 to vector<32x128xf32>
      %489 = arith.maximumf %487, %488 : vector<32x128xf32>
      %c0_228 = arith.constant 0 : index
      %c13_229 = arith.constant 13 : index
      %490 = memref.load %arg5[%c0_228, %c13_229] : memref<1x32xf32, #tpu.memory_space<smem>>
      %491 = vector.broadcast %490 : f32 to vector<32x128xf32>
      %492 = arith.mulf %491, %489 : vector<32x128xf32>
      %493 = arith.addf %461, %492 : vector<32x128xf32>
      %c0_230 = arith.constant 0 : index
      %c13_231 = arith.constant 13 : index
      %494 = memref.load %arg7[%c0_230, %c13_231] : memref<3x32xf32, #tpu.memory_space<smem>>
      %495 = vector.broadcast %494 : f32 to vector<32x128xf32>
      %496 = arith.mulf %495, %489 : vector<32x128xf32>
      %497 = arith.addf %465, %496 : vector<32x128xf32>
      %c1_232 = arith.constant 1 : index
      %c13_233 = arith.constant 13 : index
      %498 = memref.load %arg7[%c1_232, %c13_233] : memref<3x32xf32, #tpu.memory_space<smem>>
      %499 = vector.broadcast %498 : f32 to vector<32x128xf32>
      %500 = arith.mulf %499, %489 : vector<32x128xf32>
      %501 = arith.addf %469, %500 : vector<32x128xf32>
      %c2_234 = arith.constant 2 : index
      %c13_235 = arith.constant 13 : index
      %502 = memref.load %arg7[%c2_234, %c13_235] : memref<3x32xf32, #tpu.memory_space<smem>>
      %503 = vector.broadcast %502 : f32 to vector<32x128xf32>
      %504 = arith.mulf %503, %489 : vector<32x128xf32>
      %505 = arith.addf %473, %504 : vector<32x128xf32>
      %c0_236 = arith.constant 0 : index
      %c14 = arith.constant 14 : index
      %506 = memref.load %arg3[%c0_236, %c14] : memref<3x32xf32, #tpu.memory_space<smem>>
      %507 = vector.broadcast %506 : f32 to vector<32x128xf32>
      %508 = arith.mulf %507, %45 : vector<32x128xf32>
      %c1_237 = arith.constant 1 : index
      %c14_238 = arith.constant 14 : index
      %509 = memref.load %arg3[%c1_237, %c14_238] : memref<3x32xf32, #tpu.memory_space<smem>>
      %510 = vector.broadcast %509 : f32 to vector<32x128xf32>
      %511 = arith.mulf %510, %53 : vector<32x128xf32>
      %512 = arith.addf %508, %511 : vector<32x128xf32>
      %c2_239 = arith.constant 2 : index
      %c14_240 = arith.constant 14 : index
      %513 = memref.load %arg3[%c2_239, %c14_240] : memref<3x32xf32, #tpu.memory_space<smem>>
      %514 = vector.broadcast %513 : f32 to vector<32x128xf32>
      %515 = arith.mulf %514, %61 : vector<32x128xf32>
      %516 = arith.addf %512, %515 : vector<32x128xf32>
      %c0_241 = arith.constant 0 : index
      %c14_242 = arith.constant 14 : index
      %517 = memref.load %arg4[%c0_241, %c14_242] : memref<1x32xf32, #tpu.memory_space<smem>>
      %518 = vector.broadcast %517 : f32 to vector<32x128xf32>
      %519 = arith.addf %516, %518 : vector<32x128xf32>
      %cst_243 = arith.constant 0.000000e+00 : f32
      %520 = vector.broadcast %cst_243 : f32 to vector<32x128xf32>
      %521 = arith.maximumf %519, %520 : vector<32x128xf32>
      %c0_244 = arith.constant 0 : index
      %c14_245 = arith.constant 14 : index
      %522 = memref.load %arg5[%c0_244, %c14_245] : memref<1x32xf32, #tpu.memory_space<smem>>
      %523 = vector.broadcast %522 : f32 to vector<32x128xf32>
      %524 = arith.mulf %523, %521 : vector<32x128xf32>
      %525 = arith.addf %493, %524 : vector<32x128xf32>
      %c0_246 = arith.constant 0 : index
      %c14_247 = arith.constant 14 : index
      %526 = memref.load %arg7[%c0_246, %c14_247] : memref<3x32xf32, #tpu.memory_space<smem>>
      %527 = vector.broadcast %526 : f32 to vector<32x128xf32>
      %528 = arith.mulf %527, %521 : vector<32x128xf32>
      %529 = arith.addf %497, %528 : vector<32x128xf32>
      %c1_248 = arith.constant 1 : index
      %c14_249 = arith.constant 14 : index
      %530 = memref.load %arg7[%c1_248, %c14_249] : memref<3x32xf32, #tpu.memory_space<smem>>
      %531 = vector.broadcast %530 : f32 to vector<32x128xf32>
      %532 = arith.mulf %531, %521 : vector<32x128xf32>
      %533 = arith.addf %501, %532 : vector<32x128xf32>
      %c2_250 = arith.constant 2 : index
      %c14_251 = arith.constant 14 : index
      %534 = memref.load %arg7[%c2_250, %c14_251] : memref<3x32xf32, #tpu.memory_space<smem>>
      %535 = vector.broadcast %534 : f32 to vector<32x128xf32>
      %536 = arith.mulf %535, %521 : vector<32x128xf32>
      %537 = arith.addf %505, %536 : vector<32x128xf32>
      %c0_252 = arith.constant 0 : index
      %c15 = arith.constant 15 : index
      %538 = memref.load %arg3[%c0_252, %c15] : memref<3x32xf32, #tpu.memory_space<smem>>
      %539 = vector.broadcast %538 : f32 to vector<32x128xf32>
      %540 = arith.mulf %539, %45 : vector<32x128xf32>
      %c1_253 = arith.constant 1 : index
      %c15_254 = arith.constant 15 : index
      %541 = memref.load %arg3[%c1_253, %c15_254] : memref<3x32xf32, #tpu.memory_space<smem>>
      %542 = vector.broadcast %541 : f32 to vector<32x128xf32>
      %543 = arith.mulf %542, %53 : vector<32x128xf32>
      %544 = arith.addf %540, %543 : vector<32x128xf32>
      %c2_255 = arith.constant 2 : index
      %c15_256 = arith.constant 15 : index
      %545 = memref.load %arg3[%c2_255, %c15_256] : memref<3x32xf32, #tpu.memory_space<smem>>
      %546 = vector.broadcast %545 : f32 to vector<32x128xf32>
      %547 = arith.mulf %546, %61 : vector<32x128xf32>
      %548 = arith.addf %544, %547 : vector<32x128xf32>
      %c0_257 = arith.constant 0 : index
      %c15_258 = arith.constant 15 : index
      %549 = memref.load %arg4[%c0_257, %c15_258] : memref<1x32xf32, #tpu.memory_space<smem>>
      %550 = vector.broadcast %549 : f32 to vector<32x128xf32>
      %551 = arith.addf %548, %550 : vector<32x128xf32>
      %cst_259 = arith.constant 0.000000e+00 : f32
      %552 = vector.broadcast %cst_259 : f32 to vector<32x128xf32>
      %553 = arith.maximumf %551, %552 : vector<32x128xf32>
      %c0_260 = arith.constant 0 : index
      %c15_261 = arith.constant 15 : index
      %554 = memref.load %arg5[%c0_260, %c15_261] : memref<1x32xf32, #tpu.memory_space<smem>>
      %555 = vector.broadcast %554 : f32 to vector<32x128xf32>
      %556 = arith.mulf %555, %553 : vector<32x128xf32>
      %557 = arith.addf %525, %556 : vector<32x128xf32>
      %c0_262 = arith.constant 0 : index
      %c15_263 = arith.constant 15 : index
      %558 = memref.load %arg7[%c0_262, %c15_263] : memref<3x32xf32, #tpu.memory_space<smem>>
      %559 = vector.broadcast %558 : f32 to vector<32x128xf32>
      %560 = arith.mulf %559, %553 : vector<32x128xf32>
      %561 = arith.addf %529, %560 : vector<32x128xf32>
      %c1_264 = arith.constant 1 : index
      %c15_265 = arith.constant 15 : index
      %562 = memref.load %arg7[%c1_264, %c15_265] : memref<3x32xf32, #tpu.memory_space<smem>>
      %563 = vector.broadcast %562 : f32 to vector<32x128xf32>
      %564 = arith.mulf %563, %553 : vector<32x128xf32>
      %565 = arith.addf %533, %564 : vector<32x128xf32>
      %c2_266 = arith.constant 2 : index
      %c15_267 = arith.constant 15 : index
      %566 = memref.load %arg7[%c2_266, %c15_267] : memref<3x32xf32, #tpu.memory_space<smem>>
      %567 = vector.broadcast %566 : f32 to vector<32x128xf32>
      %568 = arith.mulf %567, %553 : vector<32x128xf32>
      %569 = arith.addf %537, %568 : vector<32x128xf32>
      %c0_268 = arith.constant 0 : index
      %c16 = arith.constant 16 : index
      %570 = memref.load %arg3[%c0_268, %c16] : memref<3x32xf32, #tpu.memory_space<smem>>
      %571 = vector.broadcast %570 : f32 to vector<32x128xf32>
      %572 = arith.mulf %571, %45 : vector<32x128xf32>
      %c1_269 = arith.constant 1 : index
      %c16_270 = arith.constant 16 : index
      %573 = memref.load %arg3[%c1_269, %c16_270] : memref<3x32xf32, #tpu.memory_space<smem>>
      %574 = vector.broadcast %573 : f32 to vector<32x128xf32>
      %575 = arith.mulf %574, %53 : vector<32x128xf32>
      %576 = arith.addf %572, %575 : vector<32x128xf32>
      %c2_271 = arith.constant 2 : index
      %c16_272 = arith.constant 16 : index
      %577 = memref.load %arg3[%c2_271, %c16_272] : memref<3x32xf32, #tpu.memory_space<smem>>
      %578 = vector.broadcast %577 : f32 to vector<32x128xf32>
      %579 = arith.mulf %578, %61 : vector<32x128xf32>
      %580 = arith.addf %576, %579 : vector<32x128xf32>
      %c0_273 = arith.constant 0 : index
      %c16_274 = arith.constant 16 : index
      %581 = memref.load %arg4[%c0_273, %c16_274] : memref<1x32xf32, #tpu.memory_space<smem>>
      %582 = vector.broadcast %581 : f32 to vector<32x128xf32>
      %583 = arith.addf %580, %582 : vector<32x128xf32>
      %cst_275 = arith.constant 0.000000e+00 : f32
      %584 = vector.broadcast %cst_275 : f32 to vector<32x128xf32>
      %585 = arith.maximumf %583, %584 : vector<32x128xf32>
      %c0_276 = arith.constant 0 : index
      %c16_277 = arith.constant 16 : index
      %586 = memref.load %arg5[%c0_276, %c16_277] : memref<1x32xf32, #tpu.memory_space<smem>>
      %587 = vector.broadcast %586 : f32 to vector<32x128xf32>
      %588 = arith.mulf %587, %585 : vector<32x128xf32>
      %589 = arith.addf %557, %588 : vector<32x128xf32>
      %c0_278 = arith.constant 0 : index
      %c16_279 = arith.constant 16 : index
      %590 = memref.load %arg7[%c0_278, %c16_279] : memref<3x32xf32, #tpu.memory_space<smem>>
      %591 = vector.broadcast %590 : f32 to vector<32x128xf32>
      %592 = arith.mulf %591, %585 : vector<32x128xf32>
      %593 = arith.addf %561, %592 : vector<32x128xf32>
      %c1_280 = arith.constant 1 : index
      %c16_281 = arith.constant 16 : index
      %594 = memref.load %arg7[%c1_280, %c16_281] : memref<3x32xf32, #tpu.memory_space<smem>>
      %595 = vector.broadcast %594 : f32 to vector<32x128xf32>
      %596 = arith.mulf %595, %585 : vector<32x128xf32>
      %597 = arith.addf %565, %596 : vector<32x128xf32>
      %c2_282 = arith.constant 2 : index
      %c16_283 = arith.constant 16 : index
      %598 = memref.load %arg7[%c2_282, %c16_283] : memref<3x32xf32, #tpu.memory_space<smem>>
      %599 = vector.broadcast %598 : f32 to vector<32x128xf32>
      %600 = arith.mulf %599, %585 : vector<32x128xf32>
      %601 = arith.addf %569, %600 : vector<32x128xf32>
      %c0_284 = arith.constant 0 : index
      %c17 = arith.constant 17 : index
      %602 = memref.load %arg3[%c0_284, %c17] : memref<3x32xf32, #tpu.memory_space<smem>>
      %603 = vector.broadcast %602 : f32 to vector<32x128xf32>
      %604 = arith.mulf %603, %45 : vector<32x128xf32>
      %c1_285 = arith.constant 1 : index
      %c17_286 = arith.constant 17 : index
      %605 = memref.load %arg3[%c1_285, %c17_286] : memref<3x32xf32, #tpu.memory_space<smem>>
      %606 = vector.broadcast %605 : f32 to vector<32x128xf32>
      %607 = arith.mulf %606, %53 : vector<32x128xf32>
      %608 = arith.addf %604, %607 : vector<32x128xf32>
      %c2_287 = arith.constant 2 : index
      %c17_288 = arith.constant 17 : index
      %609 = memref.load %arg3[%c2_287, %c17_288] : memref<3x32xf32, #tpu.memory_space<smem>>
      %610 = vector.broadcast %609 : f32 to vector<32x128xf32>
      %611 = arith.mulf %610, %61 : vector<32x128xf32>
      %612 = arith.addf %608, %611 : vector<32x128xf32>
      %c0_289 = arith.constant 0 : index
      %c17_290 = arith.constant 17 : index
      %613 = memref.load %arg4[%c0_289, %c17_290] : memref<1x32xf32, #tpu.memory_space<smem>>
      %614 = vector.broadcast %613 : f32 to vector<32x128xf32>
      %615 = arith.addf %612, %614 : vector<32x128xf32>
      %cst_291 = arith.constant 0.000000e+00 : f32
      %616 = vector.broadcast %cst_291 : f32 to vector<32x128xf32>
      %617 = arith.maximumf %615, %616 : vector<32x128xf32>
      %c0_292 = arith.constant 0 : index
      %c17_293 = arith.constant 17 : index
      %618 = memref.load %arg5[%c0_292, %c17_293] : memref<1x32xf32, #tpu.memory_space<smem>>
      %619 = vector.broadcast %618 : f32 to vector<32x128xf32>
      %620 = arith.mulf %619, %617 : vector<32x128xf32>
      %621 = arith.addf %589, %620 : vector<32x128xf32>
      %c0_294 = arith.constant 0 : index
      %c17_295 = arith.constant 17 : index
      %622 = memref.load %arg7[%c0_294, %c17_295] : memref<3x32xf32, #tpu.memory_space<smem>>
      %623 = vector.broadcast %622 : f32 to vector<32x128xf32>
      %624 = arith.mulf %623, %617 : vector<32x128xf32>
      %625 = arith.addf %593, %624 : vector<32x128xf32>
      %c1_296 = arith.constant 1 : index
      %c17_297 = arith.constant 17 : index
      %626 = memref.load %arg7[%c1_296, %c17_297] : memref<3x32xf32, #tpu.memory_space<smem>>
      %627 = vector.broadcast %626 : f32 to vector<32x128xf32>
      %628 = arith.mulf %627, %617 : vector<32x128xf32>
      %629 = arith.addf %597, %628 : vector<32x128xf32>
      %c2_298 = arith.constant 2 : index
      %c17_299 = arith.constant 17 : index
      %630 = memref.load %arg7[%c2_298, %c17_299] : memref<3x32xf32, #tpu.memory_space<smem>>
      %631 = vector.broadcast %630 : f32 to vector<32x128xf32>
      %632 = arith.mulf %631, %617 : vector<32x128xf32>
      %633 = arith.addf %601, %632 : vector<32x128xf32>
      %c0_300 = arith.constant 0 : index
      %c18 = arith.constant 18 : index
      %634 = memref.load %arg3[%c0_300, %c18] : memref<3x32xf32, #tpu.memory_space<smem>>
      %635 = vector.broadcast %634 : f32 to vector<32x128xf32>
      %636 = arith.mulf %635, %45 : vector<32x128xf32>
      %c1_301 = arith.constant 1 : index
      %c18_302 = arith.constant 18 : index
      %637 = memref.load %arg3[%c1_301, %c18_302] : memref<3x32xf32, #tpu.memory_space<smem>>
      %638 = vector.broadcast %637 : f32 to vector<32x128xf32>
      %639 = arith.mulf %638, %53 : vector<32x128xf32>
      %640 = arith.addf %636, %639 : vector<32x128xf32>
      %c2_303 = arith.constant 2 : index
      %c18_304 = arith.constant 18 : index
      %641 = memref.load %arg3[%c2_303, %c18_304] : memref<3x32xf32, #tpu.memory_space<smem>>
      %642 = vector.broadcast %641 : f32 to vector<32x128xf32>
      %643 = arith.mulf %642, %61 : vector<32x128xf32>
      %644 = arith.addf %640, %643 : vector<32x128xf32>
      %c0_305 = arith.constant 0 : index
      %c18_306 = arith.constant 18 : index
      %645 = memref.load %arg4[%c0_305, %c18_306] : memref<1x32xf32, #tpu.memory_space<smem>>
      %646 = vector.broadcast %645 : f32 to vector<32x128xf32>
      %647 = arith.addf %644, %646 : vector<32x128xf32>
      %cst_307 = arith.constant 0.000000e+00 : f32
      %648 = vector.broadcast %cst_307 : f32 to vector<32x128xf32>
      %649 = arith.maximumf %647, %648 : vector<32x128xf32>
      %c0_308 = arith.constant 0 : index
      %c18_309 = arith.constant 18 : index
      %650 = memref.load %arg5[%c0_308, %c18_309] : memref<1x32xf32, #tpu.memory_space<smem>>
      %651 = vector.broadcast %650 : f32 to vector<32x128xf32>
      %652 = arith.mulf %651, %649 : vector<32x128xf32>
      %653 = arith.addf %621, %652 : vector<32x128xf32>
      %c0_310 = arith.constant 0 : index
      %c18_311 = arith.constant 18 : index
      %654 = memref.load %arg7[%c0_310, %c18_311] : memref<3x32xf32, #tpu.memory_space<smem>>
      %655 = vector.broadcast %654 : f32 to vector<32x128xf32>
      %656 = arith.mulf %655, %649 : vector<32x128xf32>
      %657 = arith.addf %625, %656 : vector<32x128xf32>
      %c1_312 = arith.constant 1 : index
      %c18_313 = arith.constant 18 : index
      %658 = memref.load %arg7[%c1_312, %c18_313] : memref<3x32xf32, #tpu.memory_space<smem>>
      %659 = vector.broadcast %658 : f32 to vector<32x128xf32>
      %660 = arith.mulf %659, %649 : vector<32x128xf32>
      %661 = arith.addf %629, %660 : vector<32x128xf32>
      %c2_314 = arith.constant 2 : index
      %c18_315 = arith.constant 18 : index
      %662 = memref.load %arg7[%c2_314, %c18_315] : memref<3x32xf32, #tpu.memory_space<smem>>
      %663 = vector.broadcast %662 : f32 to vector<32x128xf32>
      %664 = arith.mulf %663, %649 : vector<32x128xf32>
      %665 = arith.addf %633, %664 : vector<32x128xf32>
      %c0_316 = arith.constant 0 : index
      %c19 = arith.constant 19 : index
      %666 = memref.load %arg3[%c0_316, %c19] : memref<3x32xf32, #tpu.memory_space<smem>>
      %667 = vector.broadcast %666 : f32 to vector<32x128xf32>
      %668 = arith.mulf %667, %45 : vector<32x128xf32>
      %c1_317 = arith.constant 1 : index
      %c19_318 = arith.constant 19 : index
      %669 = memref.load %arg3[%c1_317, %c19_318] : memref<3x32xf32, #tpu.memory_space<smem>>
      %670 = vector.broadcast %669 : f32 to vector<32x128xf32>
      %671 = arith.mulf %670, %53 : vector<32x128xf32>
      %672 = arith.addf %668, %671 : vector<32x128xf32>
      %c2_319 = arith.constant 2 : index
      %c19_320 = arith.constant 19 : index
      %673 = memref.load %arg3[%c2_319, %c19_320] : memref<3x32xf32, #tpu.memory_space<smem>>
      %674 = vector.broadcast %673 : f32 to vector<32x128xf32>
      %675 = arith.mulf %674, %61 : vector<32x128xf32>
      %676 = arith.addf %672, %675 : vector<32x128xf32>
      %c0_321 = arith.constant 0 : index
      %c19_322 = arith.constant 19 : index
      %677 = memref.load %arg4[%c0_321, %c19_322] : memref<1x32xf32, #tpu.memory_space<smem>>
      %678 = vector.broadcast %677 : f32 to vector<32x128xf32>
      %679 = arith.addf %676, %678 : vector<32x128xf32>
      %cst_323 = arith.constant 0.000000e+00 : f32
      %680 = vector.broadcast %cst_323 : f32 to vector<32x128xf32>
      %681 = arith.maximumf %679, %680 : vector<32x128xf32>
      %c0_324 = arith.constant 0 : index
      %c19_325 = arith.constant 19 : index
      %682 = memref.load %arg5[%c0_324, %c19_325] : memref<1x32xf32, #tpu.memory_space<smem>>
      %683 = vector.broadcast %682 : f32 to vector<32x128xf32>
      %684 = arith.mulf %683, %681 : vector<32x128xf32>
      %685 = arith.addf %653, %684 : vector<32x128xf32>
      %c0_326 = arith.constant 0 : index
      %c19_327 = arith.constant 19 : index
      %686 = memref.load %arg7[%c0_326, %c19_327] : memref<3x32xf32, #tpu.memory_space<smem>>
      %687 = vector.broadcast %686 : f32 to vector<32x128xf32>
      %688 = arith.mulf %687, %681 : vector<32x128xf32>
      %689 = arith.addf %657, %688 : vector<32x128xf32>
      %c1_328 = arith.constant 1 : index
      %c19_329 = arith.constant 19 : index
      %690 = memref.load %arg7[%c1_328, %c19_329] : memref<3x32xf32, #tpu.memory_space<smem>>
      %691 = vector.broadcast %690 : f32 to vector<32x128xf32>
      %692 = arith.mulf %691, %681 : vector<32x128xf32>
      %693 = arith.addf %661, %692 : vector<32x128xf32>
      %c2_330 = arith.constant 2 : index
      %c19_331 = arith.constant 19 : index
      %694 = memref.load %arg7[%c2_330, %c19_331] : memref<3x32xf32, #tpu.memory_space<smem>>
      %695 = vector.broadcast %694 : f32 to vector<32x128xf32>
      %696 = arith.mulf %695, %681 : vector<32x128xf32>
      %697 = arith.addf %665, %696 : vector<32x128xf32>
      %c0_332 = arith.constant 0 : index
      %c20 = arith.constant 20 : index
      %698 = memref.load %arg3[%c0_332, %c20] : memref<3x32xf32, #tpu.memory_space<smem>>
      %699 = vector.broadcast %698 : f32 to vector<32x128xf32>
      %700 = arith.mulf %699, %45 : vector<32x128xf32>
      %c1_333 = arith.constant 1 : index
      %c20_334 = arith.constant 20 : index
      %701 = memref.load %arg3[%c1_333, %c20_334] : memref<3x32xf32, #tpu.memory_space<smem>>
      %702 = vector.broadcast %701 : f32 to vector<32x128xf32>
      %703 = arith.mulf %702, %53 : vector<32x128xf32>
      %704 = arith.addf %700, %703 : vector<32x128xf32>
      %c2_335 = arith.constant 2 : index
      %c20_336 = arith.constant 20 : index
      %705 = memref.load %arg3[%c2_335, %c20_336] : memref<3x32xf32, #tpu.memory_space<smem>>
      %706 = vector.broadcast %705 : f32 to vector<32x128xf32>
      %707 = arith.mulf %706, %61 : vector<32x128xf32>
      %708 = arith.addf %704, %707 : vector<32x128xf32>
      %c0_337 = arith.constant 0 : index
      %c20_338 = arith.constant 20 : index
      %709 = memref.load %arg4[%c0_337, %c20_338] : memref<1x32xf32, #tpu.memory_space<smem>>
      %710 = vector.broadcast %709 : f32 to vector<32x128xf32>
      %711 = arith.addf %708, %710 : vector<32x128xf32>
      %cst_339 = arith.constant 0.000000e+00 : f32
      %712 = vector.broadcast %cst_339 : f32 to vector<32x128xf32>
      %713 = arith.maximumf %711, %712 : vector<32x128xf32>
      %c0_340 = arith.constant 0 : index
      %c20_341 = arith.constant 20 : index
      %714 = memref.load %arg5[%c0_340, %c20_341] : memref<1x32xf32, #tpu.memory_space<smem>>
      %715 = vector.broadcast %714 : f32 to vector<32x128xf32>
      %716 = arith.mulf %715, %713 : vector<32x128xf32>
      %717 = arith.addf %685, %716 : vector<32x128xf32>
      %c0_342 = arith.constant 0 : index
      %c20_343 = arith.constant 20 : index
      %718 = memref.load %arg7[%c0_342, %c20_343] : memref<3x32xf32, #tpu.memory_space<smem>>
      %719 = vector.broadcast %718 : f32 to vector<32x128xf32>
      %720 = arith.mulf %719, %713 : vector<32x128xf32>
      %721 = arith.addf %689, %720 : vector<32x128xf32>
      %c1_344 = arith.constant 1 : index
      %c20_345 = arith.constant 20 : index
      %722 = memref.load %arg7[%c1_344, %c20_345] : memref<3x32xf32, #tpu.memory_space<smem>>
      %723 = vector.broadcast %722 : f32 to vector<32x128xf32>
      %724 = arith.mulf %723, %713 : vector<32x128xf32>
      %725 = arith.addf %693, %724 : vector<32x128xf32>
      %c2_346 = arith.constant 2 : index
      %c20_347 = arith.constant 20 : index
      %726 = memref.load %arg7[%c2_346, %c20_347] : memref<3x32xf32, #tpu.memory_space<smem>>
      %727 = vector.broadcast %726 : f32 to vector<32x128xf32>
      %728 = arith.mulf %727, %713 : vector<32x128xf32>
      %729 = arith.addf %697, %728 : vector<32x128xf32>
      %c0_348 = arith.constant 0 : index
      %c21 = arith.constant 21 : index
      %730 = memref.load %arg3[%c0_348, %c21] : memref<3x32xf32, #tpu.memory_space<smem>>
      %731 = vector.broadcast %730 : f32 to vector<32x128xf32>
      %732 = arith.mulf %731, %45 : vector<32x128xf32>
      %c1_349 = arith.constant 1 : index
      %c21_350 = arith.constant 21 : index
      %733 = memref.load %arg3[%c1_349, %c21_350] : memref<3x32xf32, #tpu.memory_space<smem>>
      %734 = vector.broadcast %733 : f32 to vector<32x128xf32>
      %735 = arith.mulf %734, %53 : vector<32x128xf32>
      %736 = arith.addf %732, %735 : vector<32x128xf32>
      %c2_351 = arith.constant 2 : index
      %c21_352 = arith.constant 21 : index
      %737 = memref.load %arg3[%c2_351, %c21_352] : memref<3x32xf32, #tpu.memory_space<smem>>
      %738 = vector.broadcast %737 : f32 to vector<32x128xf32>
      %739 = arith.mulf %738, %61 : vector<32x128xf32>
      %740 = arith.addf %736, %739 : vector<32x128xf32>
      %c0_353 = arith.constant 0 : index
      %c21_354 = arith.constant 21 : index
      %741 = memref.load %arg4[%c0_353, %c21_354] : memref<1x32xf32, #tpu.memory_space<smem>>
      %742 = vector.broadcast %741 : f32 to vector<32x128xf32>
      %743 = arith.addf %740, %742 : vector<32x128xf32>
      %cst_355 = arith.constant 0.000000e+00 : f32
      %744 = vector.broadcast %cst_355 : f32 to vector<32x128xf32>
      %745 = arith.maximumf %743, %744 : vector<32x128xf32>
      %c0_356 = arith.constant 0 : index
      %c21_357 = arith.constant 21 : index
      %746 = memref.load %arg5[%c0_356, %c21_357] : memref<1x32xf32, #tpu.memory_space<smem>>
      %747 = vector.broadcast %746 : f32 to vector<32x128xf32>
      %748 = arith.mulf %747, %745 : vector<32x128xf32>
      %749 = arith.addf %717, %748 : vector<32x128xf32>
      %c0_358 = arith.constant 0 : index
      %c21_359 = arith.constant 21 : index
      %750 = memref.load %arg7[%c0_358, %c21_359] : memref<3x32xf32, #tpu.memory_space<smem>>
      %751 = vector.broadcast %750 : f32 to vector<32x128xf32>
      %752 = arith.mulf %751, %745 : vector<32x128xf32>
      %753 = arith.addf %721, %752 : vector<32x128xf32>
      %c1_360 = arith.constant 1 : index
      %c21_361 = arith.constant 21 : index
      %754 = memref.load %arg7[%c1_360, %c21_361] : memref<3x32xf32, #tpu.memory_space<smem>>
      %755 = vector.broadcast %754 : f32 to vector<32x128xf32>
      %756 = arith.mulf %755, %745 : vector<32x128xf32>
      %757 = arith.addf %725, %756 : vector<32x128xf32>
      %c2_362 = arith.constant 2 : index
      %c21_363 = arith.constant 21 : index
      %758 = memref.load %arg7[%c2_362, %c21_363] : memref<3x32xf32, #tpu.memory_space<smem>>
      %759 = vector.broadcast %758 : f32 to vector<32x128xf32>
      %760 = arith.mulf %759, %745 : vector<32x128xf32>
      %761 = arith.addf %729, %760 : vector<32x128xf32>
      %c0_364 = arith.constant 0 : index
      %c22 = arith.constant 22 : index
      %762 = memref.load %arg3[%c0_364, %c22] : memref<3x32xf32, #tpu.memory_space<smem>>
      %763 = vector.broadcast %762 : f32 to vector<32x128xf32>
      %764 = arith.mulf %763, %45 : vector<32x128xf32>
      %c1_365 = arith.constant 1 : index
      %c22_366 = arith.constant 22 : index
      %765 = memref.load %arg3[%c1_365, %c22_366] : memref<3x32xf32, #tpu.memory_space<smem>>
      %766 = vector.broadcast %765 : f32 to vector<32x128xf32>
      %767 = arith.mulf %766, %53 : vector<32x128xf32>
      %768 = arith.addf %764, %767 : vector<32x128xf32>
      %c2_367 = arith.constant 2 : index
      %c22_368 = arith.constant 22 : index
      %769 = memref.load %arg3[%c2_367, %c22_368] : memref<3x32xf32, #tpu.memory_space<smem>>
      %770 = vector.broadcast %769 : f32 to vector<32x128xf32>
      %771 = arith.mulf %770, %61 : vector<32x128xf32>
      %772 = arith.addf %768, %771 : vector<32x128xf32>
      %c0_369 = arith.constant 0 : index
      %c22_370 = arith.constant 22 : index
      %773 = memref.load %arg4[%c0_369, %c22_370] : memref<1x32xf32, #tpu.memory_space<smem>>
      %774 = vector.broadcast %773 : f32 to vector<32x128xf32>
      %775 = arith.addf %772, %774 : vector<32x128xf32>
      %cst_371 = arith.constant 0.000000e+00 : f32
      %776 = vector.broadcast %cst_371 : f32 to vector<32x128xf32>
      %777 = arith.maximumf %775, %776 : vector<32x128xf32>
      %c0_372 = arith.constant 0 : index
      %c22_373 = arith.constant 22 : index
      %778 = memref.load %arg5[%c0_372, %c22_373] : memref<1x32xf32, #tpu.memory_space<smem>>
      %779 = vector.broadcast %778 : f32 to vector<32x128xf32>
      %780 = arith.mulf %779, %777 : vector<32x128xf32>
      %781 = arith.addf %749, %780 : vector<32x128xf32>
      %c0_374 = arith.constant 0 : index
      %c22_375 = arith.constant 22 : index
      %782 = memref.load %arg7[%c0_374, %c22_375] : memref<3x32xf32, #tpu.memory_space<smem>>
      %783 = vector.broadcast %782 : f32 to vector<32x128xf32>
      %784 = arith.mulf %783, %777 : vector<32x128xf32>
      %785 = arith.addf %753, %784 : vector<32x128xf32>
      %c1_376 = arith.constant 1 : index
      %c22_377 = arith.constant 22 : index
      %786 = memref.load %arg7[%c1_376, %c22_377] : memref<3x32xf32, #tpu.memory_space<smem>>
      %787 = vector.broadcast %786 : f32 to vector<32x128xf32>
      %788 = arith.mulf %787, %777 : vector<32x128xf32>
      %789 = arith.addf %757, %788 : vector<32x128xf32>
      %c2_378 = arith.constant 2 : index
      %c22_379 = arith.constant 22 : index
      %790 = memref.load %arg7[%c2_378, %c22_379] : memref<3x32xf32, #tpu.memory_space<smem>>
      %791 = vector.broadcast %790 : f32 to vector<32x128xf32>
      %792 = arith.mulf %791, %777 : vector<32x128xf32>
      %793 = arith.addf %761, %792 : vector<32x128xf32>
      %c0_380 = arith.constant 0 : index
      %c23 = arith.constant 23 : index
      %794 = memref.load %arg3[%c0_380, %c23] : memref<3x32xf32, #tpu.memory_space<smem>>
      %795 = vector.broadcast %794 : f32 to vector<32x128xf32>
      %796 = arith.mulf %795, %45 : vector<32x128xf32>
      %c1_381 = arith.constant 1 : index
      %c23_382 = arith.constant 23 : index
      %797 = memref.load %arg3[%c1_381, %c23_382] : memref<3x32xf32, #tpu.memory_space<smem>>
      %798 = vector.broadcast %797 : f32 to vector<32x128xf32>
      %799 = arith.mulf %798, %53 : vector<32x128xf32>
      %800 = arith.addf %796, %799 : vector<32x128xf32>
      %c2_383 = arith.constant 2 : index
      %c23_384 = arith.constant 23 : index
      %801 = memref.load %arg3[%c2_383, %c23_384] : memref<3x32xf32, #tpu.memory_space<smem>>
      %802 = vector.broadcast %801 : f32 to vector<32x128xf32>
      %803 = arith.mulf %802, %61 : vector<32x128xf32>
      %804 = arith.addf %800, %803 : vector<32x128xf32>
      %c0_385 = arith.constant 0 : index
      %c23_386 = arith.constant 23 : index
      %805 = memref.load %arg4[%c0_385, %c23_386] : memref<1x32xf32, #tpu.memory_space<smem>>
      %806 = vector.broadcast %805 : f32 to vector<32x128xf32>
      %807 = arith.addf %804, %806 : vector<32x128xf32>
      %cst_387 = arith.constant 0.000000e+00 : f32
      %808 = vector.broadcast %cst_387 : f32 to vector<32x128xf32>
      %809 = arith.maximumf %807, %808 : vector<32x128xf32>
      %c0_388 = arith.constant 0 : index
      %c23_389 = arith.constant 23 : index
      %810 = memref.load %arg5[%c0_388, %c23_389] : memref<1x32xf32, #tpu.memory_space<smem>>
      %811 = vector.broadcast %810 : f32 to vector<32x128xf32>
      %812 = arith.mulf %811, %809 : vector<32x128xf32>
      %813 = arith.addf %781, %812 : vector<32x128xf32>
      %c0_390 = arith.constant 0 : index
      %c23_391 = arith.constant 23 : index
      %814 = memref.load %arg7[%c0_390, %c23_391] : memref<3x32xf32, #tpu.memory_space<smem>>
      %815 = vector.broadcast %814 : f32 to vector<32x128xf32>
      %816 = arith.mulf %815, %809 : vector<32x128xf32>
      %817 = arith.addf %785, %816 : vector<32x128xf32>
      %c1_392 = arith.constant 1 : index
      %c23_393 = arith.constant 23 : index
      %818 = memref.load %arg7[%c1_392, %c23_393] : memref<3x32xf32, #tpu.memory_space<smem>>
      %819 = vector.broadcast %818 : f32 to vector<32x128xf32>
      %820 = arith.mulf %819, %809 : vector<32x128xf32>
      %821 = arith.addf %789, %820 : vector<32x128xf32>
      %c2_394 = arith.constant 2 : index
      %c23_395 = arith.constant 23 : index
      %822 = memref.load %arg7[%c2_394, %c23_395] : memref<3x32xf32, #tpu.memory_space<smem>>
      %823 = vector.broadcast %822 : f32 to vector<32x128xf32>
      %824 = arith.mulf %823, %809 : vector<32x128xf32>
      %825 = arith.addf %793, %824 : vector<32x128xf32>
      %c0_396 = arith.constant 0 : index
      %c24 = arith.constant 24 : index
      %826 = memref.load %arg3[%c0_396, %c24] : memref<3x32xf32, #tpu.memory_space<smem>>
      %827 = vector.broadcast %826 : f32 to vector<32x128xf32>
      %828 = arith.mulf %827, %45 : vector<32x128xf32>
      %c1_397 = arith.constant 1 : index
      %c24_398 = arith.constant 24 : index
      %829 = memref.load %arg3[%c1_397, %c24_398] : memref<3x32xf32, #tpu.memory_space<smem>>
      %830 = vector.broadcast %829 : f32 to vector<32x128xf32>
      %831 = arith.mulf %830, %53 : vector<32x128xf32>
      %832 = arith.addf %828, %831 : vector<32x128xf32>
      %c2_399 = arith.constant 2 : index
      %c24_400 = arith.constant 24 : index
      %833 = memref.load %arg3[%c2_399, %c24_400] : memref<3x32xf32, #tpu.memory_space<smem>>
      %834 = vector.broadcast %833 : f32 to vector<32x128xf32>
      %835 = arith.mulf %834, %61 : vector<32x128xf32>
      %836 = arith.addf %832, %835 : vector<32x128xf32>
      %c0_401 = arith.constant 0 : index
      %c24_402 = arith.constant 24 : index
      %837 = memref.load %arg4[%c0_401, %c24_402] : memref<1x32xf32, #tpu.memory_space<smem>>
      %838 = vector.broadcast %837 : f32 to vector<32x128xf32>
      %839 = arith.addf %836, %838 : vector<32x128xf32>
      %cst_403 = arith.constant 0.000000e+00 : f32
      %840 = vector.broadcast %cst_403 : f32 to vector<32x128xf32>
      %841 = arith.maximumf %839, %840 : vector<32x128xf32>
      %c0_404 = arith.constant 0 : index
      %c24_405 = arith.constant 24 : index
      %842 = memref.load %arg5[%c0_404, %c24_405] : memref<1x32xf32, #tpu.memory_space<smem>>
      %843 = vector.broadcast %842 : f32 to vector<32x128xf32>
      %844 = arith.mulf %843, %841 : vector<32x128xf32>
      %845 = arith.addf %813, %844 : vector<32x128xf32>
      %c0_406 = arith.constant 0 : index
      %c24_407 = arith.constant 24 : index
      %846 = memref.load %arg7[%c0_406, %c24_407] : memref<3x32xf32, #tpu.memory_space<smem>>
      %847 = vector.broadcast %846 : f32 to vector<32x128xf32>
      %848 = arith.mulf %847, %841 : vector<32x128xf32>
      %849 = arith.addf %817, %848 : vector<32x128xf32>
      %c1_408 = arith.constant 1 : index
      %c24_409 = arith.constant 24 : index
      %850 = memref.load %arg7[%c1_408, %c24_409] : memref<3x32xf32, #tpu.memory_space<smem>>
      %851 = vector.broadcast %850 : f32 to vector<32x128xf32>
      %852 = arith.mulf %851, %841 : vector<32x128xf32>
      %853 = arith.addf %821, %852 : vector<32x128xf32>
      %c2_410 = arith.constant 2 : index
      %c24_411 = arith.constant 24 : index
      %854 = memref.load %arg7[%c2_410, %c24_411] : memref<3x32xf32, #tpu.memory_space<smem>>
      %855 = vector.broadcast %854 : f32 to vector<32x128xf32>
      %856 = arith.mulf %855, %841 : vector<32x128xf32>
      %857 = arith.addf %825, %856 : vector<32x128xf32>
      %c0_412 = arith.constant 0 : index
      %c25 = arith.constant 25 : index
      %858 = memref.load %arg3[%c0_412, %c25] : memref<3x32xf32, #tpu.memory_space<smem>>
      %859 = vector.broadcast %858 : f32 to vector<32x128xf32>
      %860 = arith.mulf %859, %45 : vector<32x128xf32>
      %c1_413 = arith.constant 1 : index
      %c25_414 = arith.constant 25 : index
      %861 = memref.load %arg3[%c1_413, %c25_414] : memref<3x32xf32, #tpu.memory_space<smem>>
      %862 = vector.broadcast %861 : f32 to vector<32x128xf32>
      %863 = arith.mulf %862, %53 : vector<32x128xf32>
      %864 = arith.addf %860, %863 : vector<32x128xf32>
      %c2_415 = arith.constant 2 : index
      %c25_416 = arith.constant 25 : index
      %865 = memref.load %arg3[%c2_415, %c25_416] : memref<3x32xf32, #tpu.memory_space<smem>>
      %866 = vector.broadcast %865 : f32 to vector<32x128xf32>
      %867 = arith.mulf %866, %61 : vector<32x128xf32>
      %868 = arith.addf %864, %867 : vector<32x128xf32>
      %c0_417 = arith.constant 0 : index
      %c25_418 = arith.constant 25 : index
      %869 = memref.load %arg4[%c0_417, %c25_418] : memref<1x32xf32, #tpu.memory_space<smem>>
      %870 = vector.broadcast %869 : f32 to vector<32x128xf32>
      %871 = arith.addf %868, %870 : vector<32x128xf32>
      %cst_419 = arith.constant 0.000000e+00 : f32
      %872 = vector.broadcast %cst_419 : f32 to vector<32x128xf32>
      %873 = arith.maximumf %871, %872 : vector<32x128xf32>
      %c0_420 = arith.constant 0 : index
      %c25_421 = arith.constant 25 : index
      %874 = memref.load %arg5[%c0_420, %c25_421] : memref<1x32xf32, #tpu.memory_space<smem>>
      %875 = vector.broadcast %874 : f32 to vector<32x128xf32>
      %876 = arith.mulf %875, %873 : vector<32x128xf32>
      %877 = arith.addf %845, %876 : vector<32x128xf32>
      %c0_422 = arith.constant 0 : index
      %c25_423 = arith.constant 25 : index
      %878 = memref.load %arg7[%c0_422, %c25_423] : memref<3x32xf32, #tpu.memory_space<smem>>
      %879 = vector.broadcast %878 : f32 to vector<32x128xf32>
      %880 = arith.mulf %879, %873 : vector<32x128xf32>
      %881 = arith.addf %849, %880 : vector<32x128xf32>
      %c1_424 = arith.constant 1 : index
      %c25_425 = arith.constant 25 : index
      %882 = memref.load %arg7[%c1_424, %c25_425] : memref<3x32xf32, #tpu.memory_space<smem>>
      %883 = vector.broadcast %882 : f32 to vector<32x128xf32>
      %884 = arith.mulf %883, %873 : vector<32x128xf32>
      %885 = arith.addf %853, %884 : vector<32x128xf32>
      %c2_426 = arith.constant 2 : index
      %c25_427 = arith.constant 25 : index
      %886 = memref.load %arg7[%c2_426, %c25_427] : memref<3x32xf32, #tpu.memory_space<smem>>
      %887 = vector.broadcast %886 : f32 to vector<32x128xf32>
      %888 = arith.mulf %887, %873 : vector<32x128xf32>
      %889 = arith.addf %857, %888 : vector<32x128xf32>
      %c0_428 = arith.constant 0 : index
      %c26 = arith.constant 26 : index
      %890 = memref.load %arg3[%c0_428, %c26] : memref<3x32xf32, #tpu.memory_space<smem>>
      %891 = vector.broadcast %890 : f32 to vector<32x128xf32>
      %892 = arith.mulf %891, %45 : vector<32x128xf32>
      %c1_429 = arith.constant 1 : index
      %c26_430 = arith.constant 26 : index
      %893 = memref.load %arg3[%c1_429, %c26_430] : memref<3x32xf32, #tpu.memory_space<smem>>
      %894 = vector.broadcast %893 : f32 to vector<32x128xf32>
      %895 = arith.mulf %894, %53 : vector<32x128xf32>
      %896 = arith.addf %892, %895 : vector<32x128xf32>
      %c2_431 = arith.constant 2 : index
      %c26_432 = arith.constant 26 : index
      %897 = memref.load %arg3[%c2_431, %c26_432] : memref<3x32xf32, #tpu.memory_space<smem>>
      %898 = vector.broadcast %897 : f32 to vector<32x128xf32>
      %899 = arith.mulf %898, %61 : vector<32x128xf32>
      %900 = arith.addf %896, %899 : vector<32x128xf32>
      %c0_433 = arith.constant 0 : index
      %c26_434 = arith.constant 26 : index
      %901 = memref.load %arg4[%c0_433, %c26_434] : memref<1x32xf32, #tpu.memory_space<smem>>
      %902 = vector.broadcast %901 : f32 to vector<32x128xf32>
      %903 = arith.addf %900, %902 : vector<32x128xf32>
      %cst_435 = arith.constant 0.000000e+00 : f32
      %904 = vector.broadcast %cst_435 : f32 to vector<32x128xf32>
      %905 = arith.maximumf %903, %904 : vector<32x128xf32>
      %c0_436 = arith.constant 0 : index
      %c26_437 = arith.constant 26 : index
      %906 = memref.load %arg5[%c0_436, %c26_437] : memref<1x32xf32, #tpu.memory_space<smem>>
      %907 = vector.broadcast %906 : f32 to vector<32x128xf32>
      %908 = arith.mulf %907, %905 : vector<32x128xf32>
      %909 = arith.addf %877, %908 : vector<32x128xf32>
      %c0_438 = arith.constant 0 : index
      %c26_439 = arith.constant 26 : index
      %910 = memref.load %arg7[%c0_438, %c26_439] : memref<3x32xf32, #tpu.memory_space<smem>>
      %911 = vector.broadcast %910 : f32 to vector<32x128xf32>
      %912 = arith.mulf %911, %905 : vector<32x128xf32>
      %913 = arith.addf %881, %912 : vector<32x128xf32>
      %c1_440 = arith.constant 1 : index
      %c26_441 = arith.constant 26 : index
      %914 = memref.load %arg7[%c1_440, %c26_441] : memref<3x32xf32, #tpu.memory_space<smem>>
      %915 = vector.broadcast %914 : f32 to vector<32x128xf32>
      %916 = arith.mulf %915, %905 : vector<32x128xf32>
      %917 = arith.addf %885, %916 : vector<32x128xf32>
      %c2_442 = arith.constant 2 : index
      %c26_443 = arith.constant 26 : index
      %918 = memref.load %arg7[%c2_442, %c26_443] : memref<3x32xf32, #tpu.memory_space<smem>>
      %919 = vector.broadcast %918 : f32 to vector<32x128xf32>
      %920 = arith.mulf %919, %905 : vector<32x128xf32>
      %921 = arith.addf %889, %920 : vector<32x128xf32>
      %c0_444 = arith.constant 0 : index
      %c27 = arith.constant 27 : index
      %922 = memref.load %arg3[%c0_444, %c27] : memref<3x32xf32, #tpu.memory_space<smem>>
      %923 = vector.broadcast %922 : f32 to vector<32x128xf32>
      %924 = arith.mulf %923, %45 : vector<32x128xf32>
      %c1_445 = arith.constant 1 : index
      %c27_446 = arith.constant 27 : index
      %925 = memref.load %arg3[%c1_445, %c27_446] : memref<3x32xf32, #tpu.memory_space<smem>>
      %926 = vector.broadcast %925 : f32 to vector<32x128xf32>
      %927 = arith.mulf %926, %53 : vector<32x128xf32>
      %928 = arith.addf %924, %927 : vector<32x128xf32>
      %c2_447 = arith.constant 2 : index
      %c27_448 = arith.constant 27 : index
      %929 = memref.load %arg3[%c2_447, %c27_448] : memref<3x32xf32, #tpu.memory_space<smem>>
      %930 = vector.broadcast %929 : f32 to vector<32x128xf32>
      %931 = arith.mulf %930, %61 : vector<32x128xf32>
      %932 = arith.addf %928, %931 : vector<32x128xf32>
      %c0_449 = arith.constant 0 : index
      %c27_450 = arith.constant 27 : index
      %933 = memref.load %arg4[%c0_449, %c27_450] : memref<1x32xf32, #tpu.memory_space<smem>>
      %934 = vector.broadcast %933 : f32 to vector<32x128xf32>
      %935 = arith.addf %932, %934 : vector<32x128xf32>
      %cst_451 = arith.constant 0.000000e+00 : f32
      %936 = vector.broadcast %cst_451 : f32 to vector<32x128xf32>
      %937 = arith.maximumf %935, %936 : vector<32x128xf32>
      %c0_452 = arith.constant 0 : index
      %c27_453 = arith.constant 27 : index
      %938 = memref.load %arg5[%c0_452, %c27_453] : memref<1x32xf32, #tpu.memory_space<smem>>
      %939 = vector.broadcast %938 : f32 to vector<32x128xf32>
      %940 = arith.mulf %939, %937 : vector<32x128xf32>
      %941 = arith.addf %909, %940 : vector<32x128xf32>
      %c0_454 = arith.constant 0 : index
      %c27_455 = arith.constant 27 : index
      %942 = memref.load %arg7[%c0_454, %c27_455] : memref<3x32xf32, #tpu.memory_space<smem>>
      %943 = vector.broadcast %942 : f32 to vector<32x128xf32>
      %944 = arith.mulf %943, %937 : vector<32x128xf32>
      %945 = arith.addf %913, %944 : vector<32x128xf32>
      %c1_456 = arith.constant 1 : index
      %c27_457 = arith.constant 27 : index
      %946 = memref.load %arg7[%c1_456, %c27_457] : memref<3x32xf32, #tpu.memory_space<smem>>
      %947 = vector.broadcast %946 : f32 to vector<32x128xf32>
      %948 = arith.mulf %947, %937 : vector<32x128xf32>
      %949 = arith.addf %917, %948 : vector<32x128xf32>
      %c2_458 = arith.constant 2 : index
      %c27_459 = arith.constant 27 : index
      %950 = memref.load %arg7[%c2_458, %c27_459] : memref<3x32xf32, #tpu.memory_space<smem>>
      %951 = vector.broadcast %950 : f32 to vector<32x128xf32>
      %952 = arith.mulf %951, %937 : vector<32x128xf32>
      %953 = arith.addf %921, %952 : vector<32x128xf32>
      %c0_460 = arith.constant 0 : index
      %c28 = arith.constant 28 : index
      %954 = memref.load %arg3[%c0_460, %c28] : memref<3x32xf32, #tpu.memory_space<smem>>
      %955 = vector.broadcast %954 : f32 to vector<32x128xf32>
      %956 = arith.mulf %955, %45 : vector<32x128xf32>
      %c1_461 = arith.constant 1 : index
      %c28_462 = arith.constant 28 : index
      %957 = memref.load %arg3[%c1_461, %c28_462] : memref<3x32xf32, #tpu.memory_space<smem>>
      %958 = vector.broadcast %957 : f32 to vector<32x128xf32>
      %959 = arith.mulf %958, %53 : vector<32x128xf32>
      %960 = arith.addf %956, %959 : vector<32x128xf32>
      %c2_463 = arith.constant 2 : index
      %c28_464 = arith.constant 28 : index
      %961 = memref.load %arg3[%c2_463, %c28_464] : memref<3x32xf32, #tpu.memory_space<smem>>
      %962 = vector.broadcast %961 : f32 to vector<32x128xf32>
      %963 = arith.mulf %962, %61 : vector<32x128xf32>
      %964 = arith.addf %960, %963 : vector<32x128xf32>
      %c0_465 = arith.constant 0 : index
      %c28_466 = arith.constant 28 : index
      %965 = memref.load %arg4[%c0_465, %c28_466] : memref<1x32xf32, #tpu.memory_space<smem>>
      %966 = vector.broadcast %965 : f32 to vector<32x128xf32>
      %967 = arith.addf %964, %966 : vector<32x128xf32>
      %cst_467 = arith.constant 0.000000e+00 : f32
      %968 = vector.broadcast %cst_467 : f32 to vector<32x128xf32>
      %969 = arith.maximumf %967, %968 : vector<32x128xf32>
      %c0_468 = arith.constant 0 : index
      %c28_469 = arith.constant 28 : index
      %970 = memref.load %arg5[%c0_468, %c28_469] : memref<1x32xf32, #tpu.memory_space<smem>>
      %971 = vector.broadcast %970 : f32 to vector<32x128xf32>
      %972 = arith.mulf %971, %969 : vector<32x128xf32>
      %973 = arith.addf %941, %972 : vector<32x128xf32>
      %c0_470 = arith.constant 0 : index
      %c28_471 = arith.constant 28 : index
      %974 = memref.load %arg7[%c0_470, %c28_471] : memref<3x32xf32, #tpu.memory_space<smem>>
      %975 = vector.broadcast %974 : f32 to vector<32x128xf32>
      %976 = arith.mulf %975, %969 : vector<32x128xf32>
      %977 = arith.addf %945, %976 : vector<32x128xf32>
      %c1_472 = arith.constant 1 : index
      %c28_473 = arith.constant 28 : index
      %978 = memref.load %arg7[%c1_472, %c28_473] : memref<3x32xf32, #tpu.memory_space<smem>>
      %979 = vector.broadcast %978 : f32 to vector<32x128xf32>
      %980 = arith.mulf %979, %969 : vector<32x128xf32>
      %981 = arith.addf %949, %980 : vector<32x128xf32>
      %c2_474 = arith.constant 2 : index
      %c28_475 = arith.constant 28 : index
      %982 = memref.load %arg7[%c2_474, %c28_475] : memref<3x32xf32, #tpu.memory_space<smem>>
      %983 = vector.broadcast %982 : f32 to vector<32x128xf32>
      %984 = arith.mulf %983, %969 : vector<32x128xf32>
      %985 = arith.addf %953, %984 : vector<32x128xf32>
      %c0_476 = arith.constant 0 : index
      %c29 = arith.constant 29 : index
      %986 = memref.load %arg3[%c0_476, %c29] : memref<3x32xf32, #tpu.memory_space<smem>>
      %987 = vector.broadcast %986 : f32 to vector<32x128xf32>
      %988 = arith.mulf %987, %45 : vector<32x128xf32>
      %c1_477 = arith.constant 1 : index
      %c29_478 = arith.constant 29 : index
      %989 = memref.load %arg3[%c1_477, %c29_478] : memref<3x32xf32, #tpu.memory_space<smem>>
      %990 = vector.broadcast %989 : f32 to vector<32x128xf32>
      %991 = arith.mulf %990, %53 : vector<32x128xf32>
      %992 = arith.addf %988, %991 : vector<32x128xf32>
      %c2_479 = arith.constant 2 : index
      %c29_480 = arith.constant 29 : index
      %993 = memref.load %arg3[%c2_479, %c29_480] : memref<3x32xf32, #tpu.memory_space<smem>>
      %994 = vector.broadcast %993 : f32 to vector<32x128xf32>
      %995 = arith.mulf %994, %61 : vector<32x128xf32>
      %996 = arith.addf %992, %995 : vector<32x128xf32>
      %c0_481 = arith.constant 0 : index
      %c29_482 = arith.constant 29 : index
      %997 = memref.load %arg4[%c0_481, %c29_482] : memref<1x32xf32, #tpu.memory_space<smem>>
      %998 = vector.broadcast %997 : f32 to vector<32x128xf32>
      %999 = arith.addf %996, %998 : vector<32x128xf32>
      %cst_483 = arith.constant 0.000000e+00 : f32
      %1000 = vector.broadcast %cst_483 : f32 to vector<32x128xf32>
      %1001 = arith.maximumf %999, %1000 : vector<32x128xf32>
      %c0_484 = arith.constant 0 : index
      %c29_485 = arith.constant 29 : index
      %1002 = memref.load %arg5[%c0_484, %c29_485] : memref<1x32xf32, #tpu.memory_space<smem>>
      %1003 = vector.broadcast %1002 : f32 to vector<32x128xf32>
      %1004 = arith.mulf %1003, %1001 : vector<32x128xf32>
      %1005 = arith.addf %973, %1004 : vector<32x128xf32>
      %c0_486 = arith.constant 0 : index
      %c29_487 = arith.constant 29 : index
      %1006 = memref.load %arg7[%c0_486, %c29_487] : memref<3x32xf32, #tpu.memory_space<smem>>
      %1007 = vector.broadcast %1006 : f32 to vector<32x128xf32>
      %1008 = arith.mulf %1007, %1001 : vector<32x128xf32>
      %1009 = arith.addf %977, %1008 : vector<32x128xf32>
      %c1_488 = arith.constant 1 : index
      %c29_489 = arith.constant 29 : index
      %1010 = memref.load %arg7[%c1_488, %c29_489] : memref<3x32xf32, #tpu.memory_space<smem>>
      %1011 = vector.broadcast %1010 : f32 to vector<32x128xf32>
      %1012 = arith.mulf %1011, %1001 : vector<32x128xf32>
      %1013 = arith.addf %981, %1012 : vector<32x128xf32>
      %c2_490 = arith.constant 2 : index
      %c29_491 = arith.constant 29 : index
      %1014 = memref.load %arg7[%c2_490, %c29_491] : memref<3x32xf32, #tpu.memory_space<smem>>
      %1015 = vector.broadcast %1014 : f32 to vector<32x128xf32>
      %1016 = arith.mulf %1015, %1001 : vector<32x128xf32>
      %1017 = arith.addf %985, %1016 : vector<32x128xf32>
      %c0_492 = arith.constant 0 : index
      %c30 = arith.constant 30 : index
      %1018 = memref.load %arg3[%c0_492, %c30] : memref<3x32xf32, #tpu.memory_space<smem>>
      %1019 = vector.broadcast %1018 : f32 to vector<32x128xf32>
      %1020 = arith.mulf %1019, %45 : vector<32x128xf32>
      %c1_493 = arith.constant 1 : index
      %c30_494 = arith.constant 30 : index
      %1021 = memref.load %arg3[%c1_493, %c30_494] : memref<3x32xf32, #tpu.memory_space<smem>>
      %1022 = vector.broadcast %1021 : f32 to vector<32x128xf32>
      %1023 = arith.mulf %1022, %53 : vector<32x128xf32>
      %1024 = arith.addf %1020, %1023 : vector<32x128xf32>
      %c2_495 = arith.constant 2 : index
      %c30_496 = arith.constant 30 : index
      %1025 = memref.load %arg3[%c2_495, %c30_496] : memref<3x32xf32, #tpu.memory_space<smem>>
      %1026 = vector.broadcast %1025 : f32 to vector<32x128xf32>
      %1027 = arith.mulf %1026, %61 : vector<32x128xf32>
      %1028 = arith.addf %1024, %1027 : vector<32x128xf32>
      %c0_497 = arith.constant 0 : index
      %c30_498 = arith.constant 30 : index
      %1029 = memref.load %arg4[%c0_497, %c30_498] : memref<1x32xf32, #tpu.memory_space<smem>>
      %1030 = vector.broadcast %1029 : f32 to vector<32x128xf32>
      %1031 = arith.addf %1028, %1030 : vector<32x128xf32>
      %cst_499 = arith.constant 0.000000e+00 : f32
      %1032 = vector.broadcast %cst_499 : f32 to vector<32x128xf32>
      %1033 = arith.maximumf %1031, %1032 : vector<32x128xf32>
      %c0_500 = arith.constant 0 : index
      %c30_501 = arith.constant 30 : index
      %1034 = memref.load %arg5[%c0_500, %c30_501] : memref<1x32xf32, #tpu.memory_space<smem>>
      %1035 = vector.broadcast %1034 : f32 to vector<32x128xf32>
      %1036 = arith.mulf %1035, %1033 : vector<32x128xf32>
      %1037 = arith.addf %1005, %1036 : vector<32x128xf32>
      %c0_502 = arith.constant 0 : index
      %c30_503 = arith.constant 30 : index
      %1038 = memref.load %arg7[%c0_502, %c30_503] : memref<3x32xf32, #tpu.memory_space<smem>>
      %1039 = vector.broadcast %1038 : f32 to vector<32x128xf32>
      %1040 = arith.mulf %1039, %1033 : vector<32x128xf32>
      %1041 = arith.addf %1009, %1040 : vector<32x128xf32>
      %c1_504 = arith.constant 1 : index
      %c30_505 = arith.constant 30 : index
      %1042 = memref.load %arg7[%c1_504, %c30_505] : memref<3x32xf32, #tpu.memory_space<smem>>
      %1043 = vector.broadcast %1042 : f32 to vector<32x128xf32>
      %1044 = arith.mulf %1043, %1033 : vector<32x128xf32>
      %1045 = arith.addf %1013, %1044 : vector<32x128xf32>
      %c2_506 = arith.constant 2 : index
      %c30_507 = arith.constant 30 : index
      %1046 = memref.load %arg7[%c2_506, %c30_507] : memref<3x32xf32, #tpu.memory_space<smem>>
      %1047 = vector.broadcast %1046 : f32 to vector<32x128xf32>
      %1048 = arith.mulf %1047, %1033 : vector<32x128xf32>
      %1049 = arith.addf %1017, %1048 : vector<32x128xf32>
      %c0_508 = arith.constant 0 : index
      %c31 = arith.constant 31 : index
      %1050 = memref.load %arg3[%c0_508, %c31] : memref<3x32xf32, #tpu.memory_space<smem>>
      %1051 = vector.broadcast %1050 : f32 to vector<32x128xf32>
      %1052 = arith.mulf %1051, %45 : vector<32x128xf32>
      %c1_509 = arith.constant 1 : index
      %c31_510 = arith.constant 31 : index
      %1053 = memref.load %arg3[%c1_509, %c31_510] : memref<3x32xf32, #tpu.memory_space<smem>>
      %1054 = vector.broadcast %1053 : f32 to vector<32x128xf32>
      %1055 = arith.mulf %1054, %53 : vector<32x128xf32>
      %1056 = arith.addf %1052, %1055 : vector<32x128xf32>
      %c2_511 = arith.constant 2 : index
      %c31_512 = arith.constant 31 : index
      %1057 = memref.load %arg3[%c2_511, %c31_512] : memref<3x32xf32, #tpu.memory_space<smem>>
      %1058 = vector.broadcast %1057 : f32 to vector<32x128xf32>
      %1059 = arith.mulf %1058, %61 : vector<32x128xf32>
      %1060 = arith.addf %1056, %1059 : vector<32x128xf32>
      %c0_513 = arith.constant 0 : index
      %c31_514 = arith.constant 31 : index
      %1061 = memref.load %arg4[%c0_513, %c31_514] : memref<1x32xf32, #tpu.memory_space<smem>>
      %1062 = vector.broadcast %1061 : f32 to vector<32x128xf32>
      %1063 = arith.addf %1060, %1062 : vector<32x128xf32>
      %cst_515 = arith.constant 0.000000e+00 : f32
      %1064 = vector.broadcast %cst_515 : f32 to vector<32x128xf32>
      %1065 = arith.maximumf %1063, %1064 : vector<32x128xf32>
      %c0_516 = arith.constant 0 : index
      %c31_517 = arith.constant 31 : index
      %1066 = memref.load %arg5[%c0_516, %c31_517] : memref<1x32xf32, #tpu.memory_space<smem>>
      %1067 = vector.broadcast %1066 : f32 to vector<32x128xf32>
      %1068 = arith.mulf %1067, %1065 : vector<32x128xf32>
      %1069 = arith.addf %1037, %1068 : vector<32x128xf32>
      %c0_518 = arith.constant 0 : index
      %c31_519 = arith.constant 31 : index
      %1070 = memref.load %arg7[%c0_518, %c31_519] : memref<3x32xf32, #tpu.memory_space<smem>>
      %1071 = vector.broadcast %1070 : f32 to vector<32x128xf32>
      %1072 = arith.mulf %1071, %1065 : vector<32x128xf32>
      %1073 = arith.addf %1041, %1072 : vector<32x128xf32>
      %c1_520 = arith.constant 1 : index
      %c31_521 = arith.constant 31 : index
      %1074 = memref.load %arg7[%c1_520, %c31_521] : memref<3x32xf32, #tpu.memory_space<smem>>
      %1075 = vector.broadcast %1074 : f32 to vector<32x128xf32>
      %1076 = arith.mulf %1075, %1065 : vector<32x128xf32>
      %1077 = arith.addf %1045, %1076 : vector<32x128xf32>
      %c2_522 = arith.constant 2 : index
      %c31_523 = arith.constant 31 : index
      %1078 = memref.load %arg7[%c2_522, %c31_523] : memref<3x32xf32, #tpu.memory_space<smem>>
      %1079 = vector.broadcast %1078 : f32 to vector<32x128xf32>
      %1080 = arith.mulf %1079, %1065 : vector<32x128xf32>
      %1081 = arith.addf %1049, %1080 : vector<32x128xf32>
      %c0_524 = arith.constant 0 : index
      %c0_525 = arith.constant 0 : index
      %1082 = memref.load %arg6[%c0_524, %c0_525] : memref<1x1xf32, #tpu.memory_space<smem>>
      %1083 = vector.broadcast %1082 : f32 to vector<32x128xf32>
      %1084 = arith.addf %1069, %1083 : vector<32x128xf32>
      %cst_526 = arith.constant 3.000000e+01 : f32
      %1085 = vector.broadcast %cst_526 : f32 to vector<32x128xf32>
      %1086 = arith.minimumf %1084, %1085 : vector<32x128xf32>
      %cst_527 = arith.constant 3.000000e+01 : f32
      %1087 = vector.broadcast %cst_527 : f32 to vector<32x128xf32>
      %1088 = arith.cmpf ogt, %1084, %1087 : vector<32x128xf32>
      %1089 = math.exp %1086 : vector<32x128xf32>
      %cst_528 = arith.constant 1.000000e+00 : f32
      %1090 = vector.broadcast %cst_528 : f32 to vector<32x128xf32>
      %1091 = arith.addf %1090, %1089 : vector<32x128xf32>
      %1092 = math.log %1091 : vector<32x128xf32>
      %1093 = arith.select %1088, %1084, %1092 : vector<32x128xi1>, vector<32x128xf32>
      %c0_529 = arith.constant 0 : index
      %c0_530 = arith.constant 0 : index
      %1094 = memref.load %arg9[%c0_529, %c0_530] : memref<3x3xf32, #tpu.memory_space<smem>>
      %1095 = vector.broadcast %1094 : f32 to vector<32x1xf32>
      %1096 = arith.mulf %19, %1095 : vector<32x1xf32>
      %c1_531 = arith.constant 1 : index
      %c0_532 = arith.constant 0 : index
      %1097 = memref.load %arg9[%c1_531, %c0_532] : memref<3x3xf32, #tpu.memory_space<smem>>
      %1098 = vector.broadcast %1097 : f32 to vector<32x1xf32>
      %1099 = arith.mulf %20, %1098 : vector<32x1xf32>
      %1100 = arith.addf %1096, %1099 : vector<32x1xf32>
      %c2_533 = arith.constant 2 : index
      %c0_534 = arith.constant 0 : index
      %1101 = memref.load %arg9[%c2_533, %c0_534] : memref<3x3xf32, #tpu.memory_space<smem>>
      %1102 = vector.broadcast %1101 : f32 to vector<32x1xf32>
      %1103 = arith.mulf %21, %1102 : vector<32x1xf32>
      %1104 = arith.addf %1100, %1103 : vector<32x1xf32>
      %1105 = vector.broadcast %1104 : vector<32x1xf32> to vector<32x128xf32>
      %1106 = arith.addf %1073, %1105 : vector<32x128xf32>
      %c0_535 = arith.constant 0 : index
      %c0_536 = arith.constant 0 : index
      %1107 = memref.load %arg8[%c0_535, %c0_536] : memref<1x3xf32, #tpu.memory_space<smem>>
      %1108 = vector.broadcast %1107 : f32 to vector<32x128xf32>
      %1109 = arith.addf %1106, %1108 : vector<32x128xf32>
      %cst_537 = arith.constant 0.000000e+00 : f32
      %1110 = vector.broadcast %cst_537 : f32 to vector<32x128xf32>
      %1111 = arith.subf %1110, %1109 : vector<32x128xf32>
      %1112 = math.exp %1111 : vector<32x128xf32>
      %cst_538 = arith.constant 1.000000e+00 : f32
      %1113 = vector.broadcast %cst_538 : f32 to vector<32x128xf32>
      %1114 = arith.addf %1113, %1112 : vector<32x128xf32>
      %1115 = tpu.reciprocal %1114 {approx = true} : vector<32x128xf32> -> vector<32x128xf32>
      %c0_539 = arith.constant 0 : index
      %c1_540 = arith.constant 1 : index
      %1116 = memref.load %arg9[%c0_539, %c1_540] : memref<3x3xf32, #tpu.memory_space<smem>>
      %1117 = vector.broadcast %1116 : f32 to vector<32x1xf32>
      %1118 = arith.mulf %19, %1117 : vector<32x1xf32>
      %c1_541 = arith.constant 1 : index
      %c1_542 = arith.constant 1 : index
      %1119 = memref.load %arg9[%c1_541, %c1_542] : memref<3x3xf32, #tpu.memory_space<smem>>
      %1120 = vector.broadcast %1119 : f32 to vector<32x1xf32>
      %1121 = arith.mulf %20, %1120 : vector<32x1xf32>
      %1122 = arith.addf %1118, %1121 : vector<32x1xf32>
      %c2_543 = arith.constant 2 : index
      %c1_544 = arith.constant 1 : index
      %1123 = memref.load %arg9[%c2_543, %c1_544] : memref<3x3xf32, #tpu.memory_space<smem>>
      %1124 = vector.broadcast %1123 : f32 to vector<32x1xf32>
      %1125 = arith.mulf %21, %1124 : vector<32x1xf32>
      %1126 = arith.addf %1122, %1125 : vector<32x1xf32>
      %1127 = vector.broadcast %1126 : vector<32x1xf32> to vector<32x128xf32>
      %1128 = arith.addf %1077, %1127 : vector<32x128xf32>
      %c0_545 = arith.constant 0 : index
      %c1_546 = arith.constant 1 : index
      %1129 = memref.load %arg8[%c0_545, %c1_546] : memref<1x3xf32, #tpu.memory_space<smem>>
      %1130 = vector.broadcast %1129 : f32 to vector<32x128xf32>
      %1131 = arith.addf %1128, %1130 : vector<32x128xf32>
      %cst_547 = arith.constant 0.000000e+00 : f32
      %1132 = vector.broadcast %cst_547 : f32 to vector<32x128xf32>
      %1133 = arith.subf %1132, %1131 : vector<32x128xf32>
      %1134 = math.exp %1133 : vector<32x128xf32>
      %cst_548 = arith.constant 1.000000e+00 : f32
      %1135 = vector.broadcast %cst_548 : f32 to vector<32x128xf32>
      %1136 = arith.addf %1135, %1134 : vector<32x128xf32>
      %1137 = tpu.reciprocal %1136 {approx = true} : vector<32x128xf32> -> vector<32x128xf32>
      %c0_549 = arith.constant 0 : index
      %c2_550 = arith.constant 2 : index
      %1138 = memref.load %arg9[%c0_549, %c2_550] : memref<3x3xf32, #tpu.memory_space<smem>>
      %1139 = vector.broadcast %1138 : f32 to vector<32x1xf32>
      %1140 = arith.mulf %19, %1139 : vector<32x1xf32>
      %c1_551 = arith.constant 1 : index
      %c2_552 = arith.constant 2 : index
      %1141 = memref.load %arg9[%c1_551, %c2_552] : memref<3x3xf32, #tpu.memory_space<smem>>
      %1142 = vector.broadcast %1141 : f32 to vector<32x1xf32>
      %1143 = arith.mulf %20, %1142 : vector<32x1xf32>
      %1144 = arith.addf %1140, %1143 : vector<32x1xf32>
      %c2_553 = arith.constant 2 : index
      %c2_554 = arith.constant 2 : index
      %1145 = memref.load %arg9[%c2_553, %c2_554] : memref<3x3xf32, #tpu.memory_space<smem>>
      %1146 = vector.broadcast %1145 : f32 to vector<32x1xf32>
      %1147 = arith.mulf %21, %1146 : vector<32x1xf32>
      %1148 = arith.addf %1144, %1147 : vector<32x1xf32>
      %1149 = vector.broadcast %1148 : vector<32x1xf32> to vector<32x128xf32>
      %1150 = arith.addf %1081, %1149 : vector<32x128xf32>
      %c0_555 = arith.constant 0 : index
      %c2_556 = arith.constant 2 : index
      %1151 = memref.load %arg8[%c0_555, %c2_556] : memref<1x3xf32, #tpu.memory_space<smem>>
      %1152 = vector.broadcast %1151 : f32 to vector<32x128xf32>
      %1153 = arith.addf %1150, %1152 : vector<32x128xf32>
      %cst_557 = arith.constant 0.000000e+00 : f32
      %1154 = vector.broadcast %cst_557 : f32 to vector<32x128xf32>
      %1155 = arith.subf %1154, %1153 : vector<32x128xf32>
      %1156 = math.exp %1155 : vector<32x128xf32>
      %cst_558 = arith.constant 1.000000e+00 : f32
      %1157 = vector.broadcast %cst_558 : f32 to vector<32x128xf32>
      %1158 = arith.addf %1157, %1156 : vector<32x128xf32>
      %1159 = tpu.reciprocal %1158 {approx = true} : vector<32x128xf32> -> vector<32x128xf32>
      %1160 = vector.broadcast %32 : vector<32x1xf32> to vector<32x128xf32>
      %1161 = vector.broadcast %9 : vector<1x128xf32> to vector<32x128xf32>
      %1162 = arith.mulf %1160, %1161 : vector<32x128xf32>
      %1163 = arith.mulf %1162, %1093 : vector<32x128xf32>
      %cst_559 = arith.constant 0.000000e+00 : f32
      %1164 = vector.broadcast %cst_559 : f32 to vector<32x128xf32>
      %1165 = arith.subf %1164, %1163 : vector<32x128xf32>
      %1166 = math.exp %1165 : vector<32x128xf32>
      %cst_560 = arith.constant 1.000000e+00 : f32
      %1167 = vector.broadcast %cst_560 : f32 to vector<32x128xf32>
      %1168 = arith.subf %1167, %1166 : vector<32x128xf32>
      %c0_561 = arith.constant 0 : index
      %c0_562 = arith.constant 0 : index
      %1169 = vector.load %arg2[%c0_561, %c0_562] : memref<128x128xf32, #tpu.memory_space<vmem>>, vector<128x128xf32>
      %cst_563 = arith.constant dense<0.000000e+00> : vector<32x128xf32>
      %1170 = tpu.matmul %1165, %1169, %cst_563 {dimension_numbers = #tpu.dot_dimension_numbers<[1], [0], [0], [1], [0, 0, 1, 1], [], []>} : vector<32x128xf32>, vector<128x128xf32>, vector<32x128xf32> -> vector<32x128xf32>
      %1171 = math.exp %1170 : vector<32x128xf32>
      %1172 = arith.mulf %1168, %1171 : vector<32x128xf32>
      %cst_564 = arith.constant dense<0.000000e+00> : vector<32xf32>
      %1173 = vector.multi_reduction <add>, %1172, %cst_564 [1] : vector<32x128xf32> to vector<32xf32>
      %1174 = vector.shape_cast %1173 : vector<32xf32> to vector<32x1xf32>
      %1175 = arith.mulf %1172, %37 : vector<32x128xf32>
      %cst_565 = arith.constant dense<0.000000e+00> : vector<32xf32>
      %1176 = vector.multi_reduction <add>, %1175, %cst_565 [1] : vector<32x128xf32> to vector<32xf32>
      %1177 = vector.shape_cast %1176 : vector<32xf32> to vector<32x1xf32>
      %cst_566 = arith.constant 1.000000e+00 : f32
      %1178 = vector.broadcast %cst_566 : f32 to vector<32x1xf32>
      %1179 = arith.subf %1178, %1174 : vector<32x1xf32>
      %1180 = arith.mulf %1172, %1115 : vector<32x128xf32>
      %cst_567 = arith.constant dense<0.000000e+00> : vector<32xf32>
      %1181 = vector.multi_reduction <add>, %1180, %cst_567 [1] : vector<32x128xf32> to vector<32xf32>
      %1182 = vector.shape_cast %1181 : vector<32xf32> to vector<32x1xf32>
      %1183 = arith.addf %1182, %1179 : vector<32x1xf32>
      %1184 = arith.mulf %1172, %1137 : vector<32x128xf32>
      %cst_568 = arith.constant dense<0.000000e+00> : vector<32xf32>
      %1185 = vector.multi_reduction <add>, %1184, %cst_568 [1] : vector<32x128xf32> to vector<32xf32>
      %1186 = vector.shape_cast %1185 : vector<32xf32> to vector<32x1xf32>
      %1187 = arith.addf %1186, %1179 : vector<32x1xf32>
      %1188 = arith.mulf %1172, %1159 : vector<32x128xf32>
      %cst_569 = arith.constant dense<0.000000e+00> : vector<32xf32>
      %1189 = vector.multi_reduction <add>, %1188, %cst_569 [1] : vector<32x128xf32> to vector<32xf32>
      %1190 = vector.shape_cast %1189 : vector<32xf32> to vector<32x1xf32>
      %1191 = arith.addf %1190, %1179 : vector<32x1xf32>
      %1192 = arith.cmpf olt, %29, %31 : vector<32x1xf32>
      %cst_570 = arith.constant 1.000000e+00 : f32
      %cst_571 = arith.constant 0.000000e+00 : f32
      %1193 = vector.broadcast %cst_570 : f32 to vector<32x1xf32>
      %1194 = vector.broadcast %cst_571 : f32 to vector<32x1xf32>
      %1195 = arith.select %1192, %1193, %1194 : vector<32x1xi1>, vector<32x1xf32>
      %c0_i32_572 = arith.constant 0 : i32
      %1196 = vector.broadcast %c0_i32_572 : i32 to vector<1x8xi32>
      %1197 = arith.cmpi eq, %10, %1196 : vector<1x8xi32>
      %cst_573 = arith.constant 0.000000e+00 : f32
      %1198 = vector.shape_cast %1197 : vector<1x8xi1> to vector<1x8xi1>
      %1199 = vector.broadcast %1198 : vector<1x8xi1> to vector<32x8xi1>
      %1200 = vector.shape_cast %1183 : vector<32x1xf32> to vector<32x1xf32>
      %1201 = vector.broadcast %1200 : vector<32x1xf32> to vector<32x8xf32>
      %1202 = vector.broadcast %cst_573 : f32 to vector<32x8xf32>
      %1203 = arith.select %1199, %1201, %1202 : vector<32x8xi1>, vector<32x8xf32>
      %c1_i32_574 = arith.constant 1 : i32
      %1204 = vector.broadcast %c1_i32_574 : i32 to vector<1x8xi32>
      %1205 = arith.cmpi eq, %10, %1204 : vector<1x8xi32>
      %cst_575 = arith.constant 0.000000e+00 : f32
      %1206 = vector.shape_cast %1205 : vector<1x8xi1> to vector<1x8xi1>
      %1207 = vector.broadcast %1206 : vector<1x8xi1> to vector<32x8xi1>
      %1208 = vector.shape_cast %1187 : vector<32x1xf32> to vector<32x1xf32>
      %1209 = vector.broadcast %1208 : vector<32x1xf32> to vector<32x8xf32>
      %1210 = vector.broadcast %cst_575 : f32 to vector<32x8xf32>
      %1211 = arith.select %1207, %1209, %1210 : vector<32x8xi1>, vector<32x8xf32>
      %1212 = arith.addf %1203, %1211 : vector<32x8xf32>
      %c2_i32 = arith.constant 2 : i32
      %1213 = vector.broadcast %c2_i32 : i32 to vector<1x8xi32>
      %1214 = arith.cmpi eq, %10, %1213 : vector<1x8xi32>
      %cst_576 = arith.constant 0.000000e+00 : f32
      %1215 = vector.shape_cast %1214 : vector<1x8xi1> to vector<1x8xi1>
      %1216 = vector.broadcast %1215 : vector<1x8xi1> to vector<32x8xi1>
      %1217 = vector.shape_cast %1191 : vector<32x1xf32> to vector<32x1xf32>
      %1218 = vector.broadcast %1217 : vector<32x1xf32> to vector<32x8xf32>
      %1219 = vector.broadcast %cst_576 : f32 to vector<32x8xf32>
      %1220 = arith.select %1216, %1218, %1219 : vector<32x8xi1>, vector<32x8xf32>
      %1221 = arith.addf %1212, %1220 : vector<32x8xf32>
      %c3_i32 = arith.constant 3 : i32
      %1222 = vector.broadcast %c3_i32 : i32 to vector<1x8xi32>
      %1223 = arith.cmpi eq, %10, %1222 : vector<1x8xi32>
      %cst_577 = arith.constant 0.000000e+00 : f32
      %1224 = vector.shape_cast %1223 : vector<1x8xi1> to vector<1x8xi1>
      %1225 = vector.broadcast %1224 : vector<1x8xi1> to vector<32x8xi1>
      %1226 = vector.shape_cast %1177 : vector<32x1xf32> to vector<32x1xf32>
      %1227 = vector.broadcast %1226 : vector<32x1xf32> to vector<32x8xf32>
      %1228 = vector.broadcast %cst_577 : f32 to vector<32x8xf32>
      %1229 = arith.select %1225, %1227, %1228 : vector<32x8xi1>, vector<32x8xf32>
      %1230 = arith.addf %1221, %1229 : vector<32x8xf32>
      %c4_i32 = arith.constant 4 : i32
      %1231 = vector.broadcast %c4_i32 : i32 to vector<1x8xi32>
      %1232 = arith.cmpi eq, %10, %1231 : vector<1x8xi32>
      %cst_578 = arith.constant 0.000000e+00 : f32
      %1233 = vector.shape_cast %1232 : vector<1x8xi1> to vector<1x8xi1>
      %1234 = vector.broadcast %1233 : vector<1x8xi1> to vector<32x8xi1>
      %1235 = vector.shape_cast %1174 : vector<32x1xf32> to vector<32x1xf32>
      %1236 = vector.broadcast %1235 : vector<32x1xf32> to vector<32x8xf32>
      %1237 = vector.broadcast %cst_578 : f32 to vector<32x8xf32>
      %1238 = arith.select %1234, %1236, %1237 : vector<32x8xi1>, vector<32x8xf32>
      %1239 = arith.addf %1230, %1238 : vector<32x8xf32>
      %c5_i32 = arith.constant 5 : i32
      %1240 = vector.broadcast %c5_i32 : i32 to vector<1x8xi32>
      %1241 = arith.cmpi eq, %10, %1240 : vector<1x8xi32>
      %cst_579 = arith.constant 0.000000e+00 : f32
      %1242 = vector.shape_cast %1241 : vector<1x8xi1> to vector<1x8xi1>
      %1243 = vector.broadcast %1242 : vector<1x8xi1> to vector<32x8xi1>
      %1244 = vector.shape_cast %1195 : vector<32x1xf32> to vector<32x1xf32>
      %1245 = vector.broadcast %1244 : vector<32x1xf32> to vector<32x8xf32>
      %1246 = vector.broadcast %cst_579 : f32 to vector<32x8xf32>
      %1247 = arith.select %1243, %1245, %1246 : vector<32x8xi1>, vector<32x8xf32>
      %1248 = arith.addf %1239, %1247 : vector<32x8xf32>
      %1249 = arith.index_cast %13 : i32 to index
      %c0_580 = arith.constant 0 : index
      %1250 = vector.load %arg10[%1249, %c0_580] : memref<256x8xf32, #tpu.memory_space<vmem>>, vector<32x8xf32>
      tpu.vector_store %arg10[%1249, %c0_580], %1248 {strides = array<i32>} : memref<256x8xf32, #tpu.memory_space<vmem>>, vector<32x8xf32>,
    }
    %c8_i32_2 = arith.constant 8 : i32
    return
  }
  func.func @transform_0(%arg0: i32) -> (i32, i32) {
    %c0_i32 = arith.constant 0 : i32
    %c0_i32_0 = arith.constant 0 : i32
    return %arg0, %c0_i32 : i32, i32
  }
  func.func @transform_1(%arg0: i32) -> (i32, i32) {
    %c0_i32 = arith.constant 0 : i32
    %c0_i32_0 = arith.constant 0 : i32
    %c0_i32_1 = arith.constant 0 : i32
    return %c0_i32, %c0_i32_0 : i32, i32
  }
  func.func @transform_2(%arg0: i32) -> (i32, i32) {
    %c0_i32 = arith.constant 0 : i32
    %c0_i32_0 = arith.constant 0 : i32
    %c0_i32_1 = arith.constant 0 : i32
    return %c0_i32, %c0_i32_0 : i32, i32
  }
  func.func @transform_3(%arg0: i32) -> (i32, i32) {
    %c0_i32 = arith.constant 0 : i32
    %c0_i32_0 = arith.constant 0 : i32
    %c0_i32_1 = arith.constant 0 : i32
    return %c0_i32, %c0_i32_0 : i32, i32
  }
  func.func @transform_4(%arg0: i32) -> (i32, i32) {
    %c0_i32 = arith.constant 0 : i32
    %c0_i32_0 = arith.constant 0 : i32
    %c0_i32_1 = arith.constant 0 : i32
    return %c0_i32, %c0_i32_0 : i32, i32
  }
  func.func @transform_5(%arg0: i32) -> (i32, i32) {
    %c0_i32 = arith.constant 0 : i32
    %c0_i32_0 = arith.constant 0 : i32
    %c0_i32_1 = arith.constant 0 : i32
    return %c0_i32, %c0_i32_0 : i32, i32
  }
  func.func @transform_6(%arg0: i32) -> (i32, i32) {
    %c0_i32 = arith.constant 0 : i32
    %c0_i32_0 = arith.constant 0 : i32
    %c0_i32_1 = arith.constant 0 : i32
    return %c0_i32, %c0_i32_0 : i32, i32
  }
  func.func @transform_7(%arg0: i32) -> (i32, i32) {
    %c0_i32 = arith.constant 0 : i32
    %c0_i32_0 = arith.constant 0 : i32
    %c0_i32_1 = arith.constant 0 : i32
    return %c0_i32, %c0_i32_0 : i32, i32
  }
  func.func @transform_8(%arg0: i32) -> (i32, i32) {
    %c0_i32 = arith.constant 0 : i32
    %c0_i32_0 = arith.constant 0 : i32
    %c0_i32_1 = arith.constant 0 : i32
    return %c0_i32, %c0_i32_0 : i32, i32
  }
  func.func @transform_9(%arg0: i32) -> (i32, i32) {
    %c0_i32 = arith.constant 0 : i32
    %c0_i32_0 = arith.constant 0 : i32
    return %arg0, %c0_i32 : i32, i32
  }
}

</mosaic_0001>

<llo_original>
// kernel: tpu_custom_call.1
$region0: #{tpu_custom_call.1}
  #allocation0 [shape = 'u32[]', space=smem, size = 0x4, offset = 0x4, fixed_abs, tag = 'smem constant byte address 0x4 - core index']
  #allocation1 [shape = 'u32[144,128]{1,0:T(1,128)}', space=vmem, size = 0x12000, scoped, tag = 'internal scratch']
  #allocation2 [shape = 'f32[1,1]{1,0:T(1,128)S(6)}', space=smem, size = 0x200, scoped, tag = 'scoped memory for tpu_custom_call.1']
  %s0 = inlined_call_operand.vmem [shape: f32[256,8], index: 0, kind: input, shape index: {}]
  %s1 = inlined_call_operand.vmem [shape: f32[128,128], index: 1, kind: input, shape index: {}]
  %s2 = inlined_call_operand.vmem [shape: f32[3,32], index: 2, kind: input, shape index: {}]
  %s3 = inlined_call_operand.vmem [shape: f32[1,32], index: 3, kind: input, shape index: {}]
  %s4 = inlined_call_operand.vmem [shape: f32[1,32], index: 4, kind: input, shape index: {}]
  %s5 = inlined_call_operand.<no memory space> [shape: f32[1,1], index: 5, kind: input, shape index: {}]
  %s6 = inlined_call_operand.vmem [shape: f32[3,32], index: 6, kind: input, shape index: {}]
  %s7 = inlined_call_operand.vmem [shape: f32[1,3], index: 7, kind: input, shape index: {}]
  %s8 = inlined_call_operand.vmem [shape: f32[3,3], index: 8, kind: input, shape index: {}]
  %s9 = inlined_call_operand.vmem [shape: f32[256,8], index: 9, kind: output, shape index: {}]
  %s10 = sld [smem:[#allocation0]]
  $region77: #{tpu_custom_call.1} parent=0
    _
  %s12 = ssub.s32 1, %s10
  %s13 = scalar_select 0, %s12, %s10
  %14 = sst [smem:[#allocation2]] %s5
  $region1: #{tpu_custom_call.1} parent=0
    #allocation3 [shape = 'u8[2048]{0}', space=smem, size = 0x800, scoped, tag = 'input window, operand 2, single buffered']
    #allocation4 [shape = 's32[1]{0}', space=sflag, size = 0x4, scoped, tag = 'scoped memory for tpu_custom_call.1']
    #allocation5 [shape = 'u8[512]{0}', space=smem, size = 0x200, scoped, tag = 'input window, operand 3, single buffered']
    #allocation6 [shape = 's32[1]{0}', space=sflag, size = 0x4, scoped, tag = 'scoped memory for tpu_custom_call.1']
    #allocation7 [shape = 'u8[512]{0}', space=smem, size = 0x200, scoped, tag = 'input window, operand 4, single buffered']
    #allocation8 [shape = 'u8[2048]{0}', space=smem, size = 0x800, scoped, tag = 'input window, operand 6, single buffered']
    #allocation9 [shape = 's32[1]{0}', space=sflag, size = 0x4, scoped, tag = 'scoped memory for tpu_custom_call.1']
    #allocation10 [shape = 'u8[512]{0}', space=smem, size = 0x200, scoped, tag = 'input window, operand 7, single buffered']
    #allocation11 [shape = 'u8[2048]{0}', space=smem, size = 0x800, scoped, tag = 'input window, operand 8, single buffered']
    #allocation12 [shape = 's32[1]{0}', space=sflag, size = 0x4, scoped, tag = 'scoped memory for tpu_custom_call.1']
    %15 = vsyncpa [#allocation4], 0
    %16 = vsyncpa [#allocation6], 0
    %17 = vsyncpa [#allocation9], 0
    %18 = vsyncpa [#allocation12], 0
    // Predicated region
    $region2: #{tpu_custom_call.1} parent=1 // pred_check
      _
    $region3: #{tpu_custom_call.1} parent=1 // pred_check_branch
      %20 = sbr.rel (0) target = $region5
    $region4: #{tpu_custom_call.1} parent=1 // pred_region
      _
    $region5: #{tpu_custom_call.1} parent=1 // pred_fallthru
      _
    // Predicated region
    $region6: #{tpu_custom_call.1} parent=1 // pred_check
      _
    $region7: #{tpu_custom_call.1} parent=1 // pred_check_branch
      %22 = sbr.rel (0) target = $region9
    $region8: #{tpu_custom_call.1} parent=1 // pred_region
      _
    $region9: #{tpu_custom_call.1} parent=1 // pred_fallthru
      _
    // Predicated region
    $region10: #{tpu_custom_call.1} parent=1 // pred_check
      _
    $region11: #{tpu_custom_call.1} parent=1 // pred_check_branch
      %24 = sbr.rel (0) target = $region13
    $region12: #{tpu_custom_call.1} parent=1 // pred_region
      %s26 = ssub.s32 64, 64
      %27 = vsyncadd [#allocation4], %s26
      %s29 = sshll.u32 %s2, 4
      %s30 = int_to_ptr.vmem [resolvable:$true] %s29
      %32 = dma.vmem_to_smem %s30, 64, [#allocation3], [#allocation4]
    $region13: #{tpu_custom_call.1} parent=1 // pred_fallthru
      _
    // Predicated region
    $region14: #{tpu_custom_call.1} parent=1 // pred_check
      _
    $region15: #{tpu_custom_call.1} parent=1 // pred_check_branch
      %34 = sbr.rel (0) target = $region17
    $region16: #{tpu_custom_call.1} parent=1 // pred_region
      %s36 = ssub.s32 16, 16
      %37 = vsyncadd [#allocation6], %s36
      %s39 = sshll.u32 %s3, 4
      %s40 = int_to_ptr.vmem [resolvable:$true] %s39
      %42 = dma.vmem_to_smem %s40, 16, [#allocation5], [#allocation6]
    $region17: #{tpu_custom_call.1} parent=1 // pred_fallthru
      _
    // Predicated region
    $region18: #{tpu_custom_call.1} parent=1 // pred_check
      _
    $region19: #{tpu_custom_call.1} parent=1 // pred_check_branch
      %44 = sbr.rel (0) target = $region21
    $region20: #{tpu_custom_call.1} parent=1 // pred_region
      %s46 = ssub.s32 16, 16
      %47 = vsyncadd [#allocation6], %s46
      %s49 = sshll.u32 %s4, 4
      %s50 = int_to_ptr.vmem [resolvable:$true] %s49
      %52 = dma.vmem_to_smem %s50, 16, [#allocation7], [#allocation6]
    $region21: #{tpu_custom_call.1} parent=1 // pred_fallthru
      _
    // Predicated region
    $region22: #{tpu_custom_call.1} parent=1 // pred_check
      _
    $region23: #{tpu_custom_call.1} parent=1 // pred_check_branch
      %54 = sbr.rel (0) target = $region25
    $region24: #{tpu_custom_call.1} parent=1 // pred_region
      _
    $region25: #{tpu_custom_call.1} parent=1 // pred_fallthru
      _
    // Predicated region
    $region26: #{tpu_custom_call.1} parent=1 // pred_check
      _
    $region27: #{tpu_custom_call.1} parent=1 // pred_check_branch
      %56 = sbr.rel (0) target = $region29
    $region28: #{tpu_custom_call.1} parent=1 // pred_region
      %s58 = ssub.s32 64, 64
      %59 = vsyncadd [#allocation9], %s58
      %s61 = sshll.u32 %s6, 4
      %s62 = int_to_ptr.vmem [resolvable:$true] %s61
      %64 = dma.vmem_to_smem %s62, 64, [#allocation8], [#allocation9]
    $region29: #{tpu_custom_call.1} parent=1 // pred_fallthru
      _
    // Predicated region
    $region30: #{tpu_custom_call.1} parent=1 // pred_check
      _
    $region31: #{tpu_custom_call.1} parent=1 // pred_check_branch
      %66 = sbr.rel (0) target = $region33
    $region32: #{tpu_custom_call.1} parent=1 // pred_region
      %s68 = ssub.s32 16, 16
      %69 = vsyncadd [#allocation9], %s68
      %s71 = sshll.u32 %s7, 4
      %s72 = int_to_ptr.vmem [resolvable:$true] %s71
      %74 = dma.vmem_to_smem %s72, 16, [#allocation10], [#allocation9]
    $region33: #{tpu_custom_call.1} parent=1 // pred_fallthru
      _
    // Predicated region
    $region34: #{tpu_custom_call.1} parent=1 // pred_check
      _
    $region35: #{tpu_custom_call.1} parent=1 // pred_check_branch
      %76 = sbr.rel (0) target = $region37
    $region36: #{tpu_custom_call.1} parent=1 // pred_region
      %s78 = ssub.s32 64, 64
      %79 = vsyncadd [#allocation12], %s78
      %s81 = sshll.u32 %s8, 4
      %s82 = int_to_ptr.vmem [resolvable:$true] %s81
      %84 = dma.vmem_to_smem %s82, 64, [#allocation11], [#allocation12]
    $region37: #{tpu_custom_call.1} parent=1 // pred_fallthru
      _
    // Predicated region
    $region38: #{tpu_custom_call.1} parent=1 // pred_check
      _
    $region39: #{tpu_custom_call.1} parent=1 // pred_check_branch
      %86 = sbr.rel (0) target = $region41
    $region40: #{tpu_custom_call.1} parent=1 // pred_region
      %87 = dma.done [#allocation4], 64
    $region41: #{tpu_custom_call.1} parent=1 // pred_fallthru
      _
    // Predicated region
    $region42: #{tpu_custom_call.1} parent=1 // pred_check
      _
    $region43: #{tpu_custom_call.1} parent=1 // pred_check_branch
      %89 = sbr.rel (0) target = $region45
    $region44: #{tpu_custom_call.1} parent=1 // pred_region
      %90 = dma.done [#allocation6], 16
    $region45: #{tpu_custom_call.1} parent=1 // pred_fallthru
      _
    // Predicated region
    $region46: #{tpu_custom_call.1} parent=1 // pred_check
      _
    $region47: #{tpu_custom_call.1} parent=1 // pred_check_branch
      %92 = sbr.rel (0) target = $region49
    $region48: #{tpu_custom_call.1} parent=1 // pred_region
      %93 = dma.done [#allocation6], 16
    $region49: #{tpu_custom_call.1} parent=1 // pred_fallthru
      _
    // Predicated region
    $region50: #{tpu_custom_call.1} parent=1 // pred_check
      _
    $region51: #{tpu_custom_call.1} parent=1 // pred_check_branch
      %95 = sbr.rel (0) target = $region53
    $region52: #{tpu_custom_call.1} parent=1 // pred_region
      %96 = dma.done [#allocation9], 64
    $region53: #{tpu_custom_call.1} parent=1 // pred_fallthru
      _
    // Predicated region
    $region54: #{tpu_custom_call.1} parent=1 // pred_check
      _
    $region55: #{tpu_custom_call.1} parent=1 // pred_check_branch
      %98 = sbr.rel (0) target = $region57
    $region56: #{tpu_custom_call.1} parent=1 // pred_region
      %99 = dma.done [#allocation9], 16
    $region57: #{tpu_custom_call.1} parent=1 // pred_fallthru
      _
    // Predicated region
    $region58: #{tpu_custom_call.1} parent=1 // pred_check
      _
    $region59: #{tpu_custom_call.1} parent=1 // pred_check_branch
      %101 = sbr.rel (0) target = $region61
    $region60: #{tpu_custom_call.1} parent=1 // pred_region
      %102 = dma.done [#allocation12], 64
    $region61: #{tpu_custom_call.1} parent=1 // pred_fallthru
      _
    %103 = sfence
    %v104 = vlaneseq
    %v105 = vand.u32 %v104, 127
    %v106 = vcvt.s32.f32 %v105
    %v107 = vmul.f32 %v106, 0.007874016
    %vm108 = vcmp.eq.s32.totalorder %v105, 127
    %v109 = vsel %vm108, 0.0078125, 0.007874016
    loop: start=0, step=1, limit=8
    $region62: #{tpu_custom_call.1} parent=1 // loop_pre_header
      _
    $region63: #{tpu_custom_call.1} parent=1 // loop_header
      %s111 = sphi 0, %s115
      %p112 = scmp.ge.s32.totalorder %s111, 8
    $region64: #{tpu_custom_call.1} parent=1 // loop_header_branch
      %114 = sbr.rel (%p112) target = $region68
    $region65: #{tpu_custom_call.1} parent=1 // loop_body
      %s116 = smul.u32 %s111, 32
      %s117 = scalar_lea.vmem %s0, %s116
      %v118 = vld [vmem:[%s117] sm:$0xff]
      %v119 = vld [vmem:[%s117 + $0x8] sm:$0xff]
      %v120 = vld [vmem:[%s117 + $0x10] sm:$0xff]
      %v121 = vld [vmem:[%s117 + $0x18] sm:$0xff]
      %v122 = vmul.f32 %v118, %v118
      %v123 = vmul.f32 %v119, %v119
      %v124 = vmul.f32 %v120, %v120
      %v125 = vmul.f32 %v121, %v121
      %130 = vrot.lane.b32.xlu0 %v122, 127
      %v131 = vpop.permute.xlu0 %130
      %132 = vrot.lane.b32.xlu0 %v123, 127
      %v133 = vpop.permute.xlu0 %132
      %134 = vrot.lane.b32.xlu0 %v124, 127
      %v135 = vpop.permute.xlu0 %134
      %136 = vrot.lane.b32.xlu0 %v125, 127
      %v137 = vpop.permute.xlu0 %136
      %v142 = vadd.f32 %v122, %v131
      %v143 = vadd.f32 %v123, %v133
      %v144 = vadd.f32 %v124, %v135
      %v145 = vadd.f32 %v125, %v137
      %146 = vrot.lane.b32.xlu0 %v122, 126
      %v147 = vpop.permute.xlu0 %146
      %148 = vrot.lane.b32.xlu0 %v123, 126
      %v149 = vpop.permute.xlu0 %148
      %150 = vrot.lane.b32.xlu0 %v124, 126
      %v151 = vpop.permute.xlu0 %150
      %152 = vrot.lane.b32.xlu0 %v125, 126
      %v153 = vpop.permute.xlu0 %152
      %v158 = vadd.f32 %v142, %v147
      %v159 = vadd.f32 %v143, %v149
      %v160 = vadd.f32 %v144, %v151
      %v161 = vadd.f32 %v145, %v153
      %v162 = vrsqrt.pop %v158
      %v163 = vmul.f32 %v158, %v162
      %vm164 = vcmp.eq.f32.partialorder %v158, inf
      %v165 = vsel %vm164, %v158, %v163
      %vm166 = vcmp.eq.f32.partialorder %v158, 0.0
      %v167 = vand.u32 %v158, 2147483648
      %v168 = vsel %vm166, %v167, %v165
      %v169 = vrsqrt.pop %v159
      %v170 = vmul.f32 %v159, %v169
      %vm171 = vcmp.eq.f32.partialorder %v159, inf
      %v172 = vsel %vm171, %v159, %v170
      %vm173 = vcmp.eq.f32.partialorder %v159, 0.0
      %v174 = vand.u32 %v159, 2147483648
      %v175 = vsel %vm173, %v174, %v172
      %v176 = vrsqrt.pop %v160
      %v177 = vmul.f32 %v160, %v176
      %vm178 = vcmp.eq.f32.partialorder %v160, inf
      %v179 = vsel %vm178, %v160, %v177
      %vm180 = vcmp.eq.f32.partialorder %v160, 0.0
      %v181 = vand.u32 %v160, 2147483648
      %v182 = vsel %vm180, %v181, %v179
      %v183 = vrsqrt.pop %v161
      %v184 = vmul.f32 %v161, %v183
      %vm185 = vcmp.eq.f32.partialorder %v161, inf
      %v186 = vsel %vm185, %v161, %v184
      %vm187 = vcmp.eq.f32.partialorder %v161, 0.0
      %v188 = vand.u32 %v161, 2147483648
      %v189 = vsel %vm187, %v188, %v186
      %v190 = vsub.f32 %v168, 1.0
      %v191 = vsub.f32 %v175, 1.0
      %v192 = vsub.f32 %v182, 1.0
      %v193 = vsub.f32 %v189, 1.0
      %v194 = vadd.f32 %v168, 1.0
      %v195 = vadd.f32 %v175, 1.0
      %v196 = vadd.f32 %v182, 1.0
      %v197 = vadd.f32 %v189, 1.0
      %v198 = vsub.f32 %v194, %v190
      %v199 = vsub.f32 %v195, %v191
      %v200 = vsub.f32 %v196, %v192
      %v201 = vsub.f32 %v197, %v193
      %203 = vset.pattern.permute.xlu0 0
      %204 = vperm.xlu0 %203, %v198
      %v205 = vpop.permute.xlu0 %204
      %208 = vset.pattern.permute.xlu0 0
      %209 = vperm.xlu0 %208, %v199
      %v210 = vpop.permute.xlu0 %209
      %213 = vset.pattern.permute.xlu0 0
      %214 = vperm.xlu0 %213, %v200
      %v215 = vpop.permute.xlu0 %214
      %218 = vset.pattern.permute.xlu0 0
      %219 = vperm.xlu0 %218, %v201
      %v220 = vpop.permute.xlu0 %219
      %v222 = vmul.f32 %v205, %v107
      %v223 = vmul.f32 %v210, %v107
      %v224 = vmul.f32 %v215, %v107
      %v225 = vmul.f32 %v220, %v107
      %227 = vset.pattern.permute.xlu0 0
      %228 = vperm.xlu0 %227, %v190
      %v229 = vpop.permute.xlu0 %228
      %232 = vset.pattern.permute.xlu0 0
      %233 = vperm.xlu0 %232, %v191
      %v234 = vpop.permute.xlu0 %233
      %237 = vset.pattern.permute.xlu0 0
      %238 = vperm.xlu0 %237, %v192
      %v239 = vpop.permute.xlu0 %238
      %242 = vset.pattern.permute.xlu0 0
      %243 = vperm.xlu0 %242, %v193
      %v244 = vpop.permute.xlu0 %243
      %v246 = vadd.f32 %v229, %v222
      %v247 = vadd.f32 %v234, %v223
      %v248 = vadd.f32 %v239, %v224
      %v249 = vadd.f32 %v244, %v225
      %251 = vset.pattern.permute.xlu0 3
      %252 = vperm.xlu0 %251, %v118
      %v253 = vpop.permute.xlu0 %252
      %256 = vset.pattern.permute.xlu0 3
      %257 = vperm.xlu0 %256, %v119
      %v258 = vpop.permute.xlu0 %257
      %261 = vset.pattern.permute.xlu0 3
      %262 = vperm.xlu0 %261, %v120
      %v263 = vpop.permute.xlu0 %262
      %266 = vset.pattern.permute.xlu0 3
      %267 = vperm.xlu0 %266, %v121
      %v268 = vpop.permute.xlu0 %267
      %v270 = vmul.f32 %v253, %v246
      %v271 = vmul.f32 %v258, %v247
      %v272 = vmul.f32 %v263, %v248
      %v273 = vmul.f32 %v268, %v249
      %274 = vset.pattern.permute.xlu0 0
      %275 = vperm.xlu0 %274, %v118
      %v276 = vpop.permute.xlu0 %275
      %278 = vset.pattern.permute.xlu0 0
      %279 = vperm.xlu0 %278, %v119
      %v280 = vpop.permute.xlu0 %279
      %282 = vset.pattern.permute.xlu0 0
      %283 = vperm.xlu0 %282, %v120
      %v284 = vpop.permute.xlu0 %283
      %286 = vset.pattern.permute.xlu0 0
      %287 = vperm.xlu0 %286, %v121
      %v288 = vpop.permute.xlu0 %287
      %v290 = vadd.f32 %v276, %v270
      %v291 = vadd.f32 %v280, %v271
      %v292 = vadd.f32 %v284, %v272
      %v293 = vadd.f32 %v288, %v273
      %v294 = vmax.f32 %v290, -1.0
      %v295 = vmax.f32 %v291, -1.0
      %v296 = vmax.f32 %v292, -1.0
      %v297 = vmax.f32 %v293, -1.0
      %v298 = vmin.f32 %v294, 1.0
      %v299 = vmin.f32 %v295, 1.0
      %v300 = vmin.f32 %v296, 1.0
      %v301 = vmin.f32 %v297, 1.0
      %302 = vset.pattern.permute.xlu0 4
      %303 = vperm.xlu0 %302, %v118
      %v304 = vpop.permute.xlu0 %303
      %306 = vset.pattern.permute.xlu0 4
      %307 = vperm.xlu0 %306, %v119
      %v308 = vpop.permute.xlu0 %307
      %310 = vset.pattern.permute.xlu0 4
      %311 = vperm.xlu0 %310, %v120
      %v312 = vpop.permute.xlu0 %311
      %314 = vset.pattern.permute.xlu0 4
      %315 = vperm.xlu0 %314, %v121
      %v316 = vpop.permute.xlu0 %315
      %v318 = vmul.f32 %v304, %v246
      %v319 = vmul.f32 %v308, %v247
      %v320 = vmul.f32 %v312, %v248
      %v321 = vmul.f32 %v316, %v249
      %322 = vset.pattern.permute.xlu0 1
      %323 = vperm.xlu0 %322, %v118
      %v324 = vpop.permute.xlu0 %323
      %326 = vset.pattern.permute.xlu0 1
      %327 = vperm.xlu0 %326, %v119
      %v328 = vpop.permute.xlu0 %327
      %330 = vset.pattern.permute.xlu0 1
      %331 = vperm.xlu0 %330, %v120
      %v332 = vpop.permute.xlu0 %331
      %334 = vset.pattern.permute.xlu0 1
      %335 = vperm.xlu0 %334, %v121
      %v336 = vpop.permute.xlu0 %335
      %v338 = vadd.f32 %v324, %v318
      %v339 = vadd.f32 %v328, %v319
      %v340 = vadd.f32 %v332, %v320
      %v341 = vadd.f32 %v336, %v321
      %v342 = vmax.f32 %v338, -1.0
      %v343 = vmax.f32 %v339, -1.0
      %v344 = vmax.f32 %v340, -1.0
      %v345 = vmax.f32 %v341, -1.0
      %v346 = vmin.f32 %v342, 1.0
      %v347 = vmin.f32 %v343, 1.0
      %v348 = vmin.f32 %v344, 1.0
      %v349 = vmin.f32 %v345, 1.0
      %350 = vset.pattern.permute.xlu0 5
      %351 = vperm.xlu0 %350, %v118
      %v352 = vpop.permute.xlu0 %351
      %354 = vset.pattern.permute.xlu0 5
      %355 = vperm.xlu0 %354, %v119
      %v356 = vpop.permute.xlu0 %355
      %358 = vset.pattern.permute.xlu0 5
      %359 = vperm.xlu0 %358, %v120
      %v360 = vpop.permute.xlu0 %359
      %362 = vset.pattern.permute.xlu0 5
      %363 = vperm.xlu0 %362, %v121
      %v364 = vpop.permute.xlu0 %363
      %v366 = vmul.f32 %v352, %v246
      %v367 = vmul.f32 %v356, %v247
      %v368 = vmul.f32 %v360, %v248
      %v369 = vmul.f32 %v364, %v249
      %370 = vset.pattern.permute.xlu0 2
      %371 = vperm.xlu0 %370, %v118
      %v372 = vpop.permute.xlu0 %371
      %374 = vset.pattern.permute.xlu0 2
      %375 = vperm.xlu0 %374, %v119
      %v376 = vpop.permute.xlu0 %375
      %378 = vset.pattern.permute.xlu0 2
      %379 = vperm.xlu0 %378, %v120
      %v380 = vpop.permute.xlu0 %379
      %382 = vset.pattern.permute.xlu0 2
      %383 = vperm.xlu0 %382, %v121
      %v384 = vpop.permute.xlu0 %383
      %v386 = vadd.f32 %v372, %v366
      %v387 = vadd.f32 %v376, %v367
      %v388 = vadd.f32 %v380, %v368
      %v389 = vadd.f32 %v384, %v369
      %v390 = vmax.f32 %v386, -1.0
      %v391 = vmax.f32 %v387, -1.0
      %v392 = vmax.f32 %v388, -1.0
      %v393 = vmax.f32 %v389, -1.0
      %v394 = vmin.f32 %v390, 1.0
      %v395 = vmin.f32 %v391, 1.0
      %v396 = vmin.f32 %v392, 1.0
      %v397 = vmin.f32 %v393, 1.0
      %s398 = sld [smem:[#allocation3]]
      %v399 = vstv %s398
      %v400 = vmul.f32 %v399, %v298
      %v401 = vmul.f32 %v399, %v299
      %v402 = vmul.f32 %v399, %v300
      %v403 = vmul.f32 %v399, %v301
      %s404 = sld [smem:[#allocation3 + $0x80]]
      %v405 = vstv %s404
      %v406 = vmul.f32 %v405, %v346
      %v407 = vmul.f32 %v405, %v347
      %v408 = vmul.f32 %v405, %v348
      %v409 = vmul.f32 %v405, %v349
      %v410 = vadd.f32 %v400, %v406
      %v411 = vadd.f32 %v401, %v407
      %v412 = vadd.f32 %v402, %v408
      %v413 = vadd.f32 %v403, %v409
      %s414 = sld [smem:[#allocation3 + $0x100]]
      %v415 = vstv %s414
      %v416 = vmul.f32 %v415, %v394
      %v417 = vmul.f32 %v415, %v395
      %v418 = vmul.f32 %v415, %v396
      %v419 = vmul.f32 %v415, %v397
      %v420 = vadd.f32 %v410, %v416
      %v421 = vadd.f32 %v411, %v417
      %v422 = vadd.f32 %v412, %v418
      %v423 = vadd.f32 %v413, %v419
      %s424 = sld [smem:[#allocation5]]
      %v425 = vstv %s424
      %v426 = vadd.f32 %v420, %v425
      %v427 = vadd.f32 %v421, %v425
      %v428 = vadd.f32 %v422, %v425
      %v429 = vadd.f32 %v423, %v425
      %v430 = vmax.f32 %v426, 0.0
      %v431 = vmax.f32 %v427, 0.0
      %v432 = vmax.f32 %v428, 0.0
      %v433 = vmax.f32 %v429, 0.0
      %s434 = sld [smem:[#allocation7]]
      %v435 = vstv %s434
      %v436 = vmul.f32 %v435, %v430
      %v437 = vmul.f32 %v435, %v431
      %v438 = vmul.f32 %v435, %v432
      %v439 = vmul.f32 %v435, %v433
      %s440 = sld [smem:[#allocation8]]
      %v441 = vstv %s440
      %v442 = vmul.f32 %v441, %v430
      %v443 = vmul.f32 %v441, %v431
      %v444 = vmul.f32 %v441, %v432
      %v445 = vmul.f32 %v441, %v433
      %s446 = sld [smem:[#allocation8 + $0x80]]
      %v447 = vstv %s446
      %v448 = vmul.f32 %v447, %v430
      %v449 = vmul.f32 %v447, %v431
      %v450 = vmul.f32 %v447, %v432
      %v451 = vmul.f32 %v447, %v433
      %s452 = sld [smem:[#allocation8 + $0x100]]
      %v453 = vstv %s452
      %v454 = vmul.f32 %v453, %v430
      %v455 = vmul.f32 %v453, %v431
      %v456 = vmul.f32 %v453, %v432
      %v457 = vmul.f32 %v453, %v433
      %s458 = sld [smem:[#allocation3 + $0x1]]
      %v459 = vstv %s458
      %v460 = vmul.f32 %v459, %v298
      %v461 = vmul.f32 %v459, %v299
      %v462 = vmul.f32 %v459, %v300
      %v463 = vmul.f32 %v459, %v301
      %s464 = sld [smem:[#allocation3 + $0x81]]
      %v465 = vstv %s464
      %v466 = vmul.f32 %v465, %v346
      %v467 = vmul.f32 %v465, %v347
      %v468 = vmul.f32 %v465, %v348
      %v469 = vmul.f32 %v465, %v349
      %v470 = vadd.f32 %v460, %v466
      %v471 = vadd.f32 %v461, %v467
      %v472 = vadd.f32 %v462, %v468
      %v473 = vadd.f32 %v463, %v469
      %s474 = sld [smem:[#allocation3 + $0x101]]
      %v475 = vstv %s474
      %v476 = vmul.f32 %v475, %v394
      %v477 = vmul.f32 %v475, %v395
      %v478 = vmul.f32 %v475, %v396
      %v479 = vmul.f32 %v475, %v397
      %v480 = vadd.f32 %v470, %v476
      %v481 = vadd.f32 %v471, %v477
      %v482 = vadd.f32 %v472, %v478
      %v483 = vadd.f32 %v473, %v479
      %s484 = sld [smem:[#allocation5 + $0x1]]
      %v485 = vstv %s484
      %v486 = vadd.f32 %v480, %v485
      %v487 = vadd.f32 %v481, %v485
      %v488 = vadd.f32 %v482, %v485
      %v489 = vadd.f32 %v483, %v485
      %v490 = vmax.f32 %v486, 0.0
      %v491 = vmax.f32 %v487, 0.0
      %v492 = vmax.f32 %v488, 0.0
      %v493 = vmax.f32 %v489, 0.0
      %s494 = sld [smem:[#allocation7 + $0x1]]
      %v495 = vstv %s494
      %v496 = vmul.f32 %v495, %v490
      %v497 = vmul.f32 %v495, %v491
      %v498 = vmul.f32 %v495, %v492
      %v499 = vmul.f32 %v495, %v493
      %v500 = vadd.f32 %v436, %v496
      %v501 = vadd.f32 %v437, %v497
      %v502 = vadd.f32 %v438, %v498
      %v503 = vadd.f32 %v439, %v499
      %s504 = sld [smem:[#allocation8 + $0x1]]
      %v505 = vstv %s504
      %v506 = vmul.f32 %v505, %v490
      %v507 = vmul.f32 %v505, %v491
      %v508 = vmul.f32 %v505, %v492
      %v509 = vmul.f32 %v505, %v493
      %v510 = vadd.f32 %v442, %v506
      %v511 = vadd.f32 %v443, %v507
      %v512 = vadd.f32 %v444, %v508
      %v513 = vadd.f32 %v445, %v509
      %s514 = sld [smem:[#allocation8 + $0x81]]
      %v515 = vstv %s514
      %v516 = vmul.f32 %v515, %v490
      %v517 = vmul.f32 %v515, %v491
      %v518 = vmul.f32 %v515, %v492
      %v519 = vmul.f32 %v515, %v493
      %v520 = vadd.f32 %v448, %v516
      %v521 = vadd.f32 %v449, %v517
      %v522 = vadd.f32 %v450, %v518
      %v523 = vadd.f32 %v451, %v519
      %s524 = sld [smem:[#allocation8 + $0x101]]
      %v525 = vstv %s524
      %v526 = vmul.f32 %v525, %v490
      %v527 = vmul.f32 %v525, %v491
      %v528 = vmul.f32 %v525, %v492
      %v529 = vmul.f32 %v525, %v493
      %v530 = vadd.f32 %v454, %v526
      %v531 = vadd.f32 %v455, %v527
      %v532 = vadd.f32 %v456, %v528
      %v533 = vadd.f32 %v457, %v529
      %s534 = sld [smem:[#allocation3 + $0x2]]
      %v535 = vstv %s534
      %v536 = vmul.f32 %v535, %v298
      %v537 = vmul.f32 %v535, %v299
      %v538 = vmul.f32 %v535, %v300
      %v539 = vmul.f32 %v535, %v301
      %s540 = sld [smem:[#allocation3 + $0x82]]
      %v541 = vstv %s540
      %v542 = vmul.f32 %v541, %v346
      %v543 = vmul.f32 %v541, %v347
      %v544 = vmul.f32 %v541, %v348
      %v545 = vmul.f32 %v541, %v349
      %v546 = vadd.f32 %v536, %v542
      %v547 = vadd.f32 %v537, %v543
      %v548 = vadd.f32 %v538, %v544
      %v549 = vadd.f32 %v539, %v545
      %s550 = sld [smem:[#allocation3 + $0x102]]
      %v551 = vstv %s550
      %v552 = vmul.f32 %v551, %v394
      %v553 = vmul.f32 %v551, %v395
      %v554 = vmul.f32 %v551, %v396
      %v555 = vmul.f32 %v551, %v397
      %v556 = vadd.f32 %v546, %v552
      %v557 = vadd.f32 %v547, %v553
      %v558 = vadd.f32 %v548, %v554
      %v559 = vadd.f32 %v549, %v555
      %s560 = sld [smem:[#allocation5 + $0x2]]
      %v561 = vstv %s560
      %v562 = vadd.f32 %v556, %v561
      %v563 = vadd.f32 %v557, %v561
      %v564 = vadd.f32 %v558, %v561
      %v565 = vadd.f32 %v559, %v561
      %v566 = vmax.f32 %v562, 0.0
      %v567 = vmax.f32 %v563, 0.0
      %v568 = vmax.f32 %v564, 0.0
      %v569 = vmax.f32 %v565, 0.0
      %s570 = sld [smem:[#allocation7 + $0x2]]
      %v571 = vstv %s570
      %v572 = vmul.f32 %v571, %v566
      %v573 = vmul.f32 %v571, %v567
      %v574 = vmul.f32 %v571, %v568
      %v575 = vmul.f32 %v571, %v569
      %v576 = vadd.f32 %v500, %v572
      %v577 = vadd.f32 %v501, %v573
      %v578 = vadd.f32 %v502, %v574
      %v579 = vadd.f32 %v503, %v575
      %s580 = sld [smem:[#allocation8 + $0x2]]
      %v581 = vstv %s580
      %v582 = vmul.f32 %v581, %v566
      %v583 = vmul.f32 %v581, %v567
      %v584 = vmul.f32 %v581, %v568
      %v585 = vmul.f32 %v581, %v569
      %v586 = vadd.f32 %v510, %v582
      %v587 = vadd.f32 %v511, %v583
      %v588 = vadd.f32 %v512, %v584
      %v589 = vadd.f32 %v513, %v585
      %s590 = sld [smem:[#allocation8 + $0x82]]
      %v591 = vstv %s590
      %v592 = vmul.f32 %v591, %v566
      %v593 = vmul.f32 %v591, %v567
      %v594 = vmul.f32 %v591, %v568
      %v595 = vmul.f32 %v591, %v569
      %v596 = vadd.f32 %v520, %v592
      %v597 = vadd.f32 %v521, %v593
      %v598 = vadd.f32 %v522, %v594
      %v599 = vadd.f32 %v523, %v595
      %s600 = sld [smem:[#allocation8 + $0x102]]
      %v601 = vstv %s600
      %v602 = vmul.f32 %v601, %v566
      %v603 = vmul.f32 %v601, %v567
      %v604 = vmul.f32 %v601, %v568
      %v605 = vmul.f32 %v601, %v569
      %v606 = vadd.f32 %v530, %v602
      %v607 = vadd.f32 %v531, %v603
      %v608 = vadd.f32 %v532, %v604
      %v609 = vadd.f32 %v533, %v605
      %s610 = sld [smem:[#allocation3 + $0x3]]
      %v611 = vstv %s610
      %v612 = vmul.f32 %v611, %v298
      %v613 = vmul.f32 %v611, %v299
      %v614 = vmul.f32 %v611, %v300
      %v615 = vmul.f32 %v611, %v301
      %s616 = sld [smem:[#allocation3 + $0x83]]
      %v617 = vstv %s616
      %v618 = vmul.f32 %v617, %v346
      %v619 = vmul.f32 %v617, %v347
      %v620 = vmul.f32 %v617, %v348
      %v621 = vmul.f32 %v617, %v349
      %v622 = vadd.f32 %v612, %v618
      %v623 = vadd.f32 %v613, %v619
      %v624 = vadd.f32 %v614, %v620
      %v625 = vadd.f32 %v615, %v621
      %s626 = sld [smem:[#allocation3 + $0x103]]
      %v627 = vstv %s626
      %v628 = vmul.f32 %v627, %v394
      %v629 = vmul.f32 %v627, %v395
      %v630 = vmul.f32 %v627, %v396
      %v631 = vmul.f32 %v627, %v397
      %v632 = vadd.f32 %v622, %v628
      %v633 = vadd.f32 %v623, %v629
      %v634 = vadd.f32 %v624, %v630
      %v635 = vadd.f32 %v625, %v631
      %s636 = sld [smem:[#allocation5 + $0x3]]
      %v637 = vstv %s636
      %v638 = vadd.f32 %v632, %v637
      %v639 = vadd.f32 %v633, %v637
      %v640 = vadd.f32 %v634, %v637
      %v641 = vadd.f32 %v635, %v637
      %v642 = vmax.f32 %v638, 0.0
      %v643 = vmax.f32 %v639, 0.0
      %v644 = vmax.f32 %v640, 0.0
      %v645 = vmax.f32 %v641, 0.0
      %s646 = sld [smem:[#allocation7 + $0x3]]
      %v647 = vstv %s646
      %v648 = vmul.f32 %v647, %v642
      %v649 = vmul.f32 %v647, %v643
      %v650 = vmul.f32 %v647, %v644
      %v651 = vmul.f32 %v647, %v645
      %v652 = vadd.f32 %v576, %v648
      %v653 = vadd.f32 %v577, %v649
      %v654 = vadd.f32 %v578, %v650
      %v655 = vadd.f32 %v579, %v651
      %s656 = sld [smem:[#allocation8 + $0x3]]
      %v657 = vstv %s656
      %v658 = vmul.f32 %v657, %v642
      %v659 = vmul.f32 %v657, %v643
      %v660 = vmul.f32 %v657, %v644
      %v661 = vmul.f32 %v657, %v645
      %v662 = vadd.f32 %v586, %v658
      %v663 = vadd.f32 %v587, %v659
      %v664 = vadd.f32 %v588, %v660
      %v665 = vadd.f32 %v589, %v661
      %s666 = sld [smem:[#allocation8 + $0x83]]
      %v667 = vstv %s666
      %v668 = vmul.f32 %v667, %v642
      %v669 = vmul.f32 %v667, %v643
      %v670 = vmul.f32 %v667, %v644
      %v671 = vmul.f32 %v667, %v645
      %v672 = vadd.f32 %v596, %v668
      %v673 = vadd.f32 %v597, %v669
      %v674 = vadd.f32 %v598, %v670
      %v675 = vadd.f32 %v599, %v671
      %s676 = sld [smem:[#allocation8 + $0x103]]
      %v677 = vstv %s676
      %v678 = vmul.f32 %v677, %v642
      %v679 = vmul.f32 %v677, %v643
      %v680 = vmul.f32 %v677, %v644
      %v681 = vmul.f32 %v677, %v645
      %v682 = vadd.f32 %v606, %v678
      %v683 = vadd.f32 %v607, %v679
      %v684 = vadd.f32 %v608, %v680
      %v685 = vadd.f32 %v609, %v681
      %s686 = sld [smem:[#allocation3 + $0x4]]
      %v687 = vstv %s686
      %v688 = vmul.f32 %v687, %v298
      %v689 = vmul.f32 %v687, %v299
      %v690 = vmul.f32 %v687, %v300
      %v691 = vmul.f32 %v687, %v301
      %s692 = sld [smem:[#allocation3 + $0x84]]
      %v693 = vstv %s692
      %v694 = vmul.f32 %v693, %v346
      %v695 = vmul.f32 %v693, %v347
      %v696 = vmul.f32 %v693, %v348
      %v697 = vmul.f32 %v693, %v349
      %v698 = vadd.f32 %v688, %v694
      %v699 = vadd.f32 %v689, %v695
      %v700 = vadd.f32 %v690, %v696
      %v701 = vadd.f32 %v691, %v697
      %s702 = sld [smem:[#allocation3 + $0x104]]
      %v703 = vstv %s702
      %v704 = vmul.f32 %v703, %v394
      %v705 = vmul.f32 %v703, %v395
      %v706 = vmul.f32 %v703, %v396
      %v707 = vmul.f32 %v703, %v397
      %v708 = vadd.f32 %v698, %v704
      %v709 = vadd.f32 %v699, %v705
      %v710 = vadd.f32 %v700, %v706
      %v711 = vadd.f32 %v701, %v707
      %s712 = sld [smem:[#allocation5 + $0x4]]
      %v713 = vstv %s712
      %v714 = vadd.f32 %v708, %v713
      %v715 = vadd.f32 %v709, %v713
      %v716 = vadd.f32 %v710, %v713
      %v717 = vadd.f32 %v711, %v713
      %v718 = vmax.f32 %v714, 0.0
      %v719 = vmax.f32 %v715, 0.0
      %v720 = vmax.f32 %v716, 0.0
      %v721 = vmax.f32 %v717, 0.0
      %s722 = sld [smem:[#allocation7 + $0x4]]
      %v723 = vstv %s722
      %v724 = vmul.f32 %v723, %v718
      %v725 = vmul.f32 %v723, %v719
      %v726 = vmul.f32 %v723, %v720
      %v727 = vmul.f32 %v723, %v721
      %v728 = vadd.f32 %v652, %v724
      %v729 = vadd.f32 %v653, %v725
      %v730 = vadd.f32 %v654, %v726
      %v731 = vadd.f32 %v655, %v727
      %s732 = sld [smem:[#allocation8 + $0x4]]
      %v733 = vstv %s732
      %v734 = vmul.f32 %v733, %v718
      %v735 = vmul.f32 %v733, %v719
      %v736 = vmul.f32 %v733, %v720
      %v737 = vmul.f32 %v733, %v721
      %v738 = vadd.f32 %v662, %v734
      %v739 = vadd.f32 %v663, %v735
      %v740 = vadd.f32 %v664, %v736
      %v741 = vadd.f32 %v665, %v737
      %s742 = sld [smem:[#allocation8 + $0x84]]
      %v743 = vstv %s742
      %v744 = vmul.f32 %v743, %v718
      %v745 = vmul.f32 %v743, %v719
      %v746 = vmul.f32 %v743, %v720
      %v747 = vmul.f32 %v743, %v721
      %v748 = vadd.f32 %v672, %v744
      %v749 = vadd.f32 %v673, %v745
      %v750 = vadd.f32 %v674, %v746
      %v751 = vadd.f32 %v675, %v747
      %s752 = sld [smem:[#allocation8 + $0x104]]
      %v753 = vstv %s752
      %v754 = vmul.f32 %v753, %v718
      %v755 = vmul.f32 %v753, %v719
      %v756 = vmul.f32 %v753, %v720
      %v757 = vmul.f32 %v753, %v721
      %v758 = vadd.f32 %v682, %v754
      %v759 = vadd.f32 %v683, %v755
      %v760 = vadd.f32 %v684, %v756
      %v761 = vadd.f32 %v685, %v757
      %s762 = sld [smem:[#allocation3 + $0x5]]
      %v763 = vstv %s762
      %v764 = vmul.f32 %v763, %v298
      %v765 = vmul.f32 %v763, %v299
      %v766 = vmul.f32 %v763, %v300
      %v767 = vmul.f32 %v763, %v301
      %s768 = sld [smem:[#allocation3 + $0x85]]
      %v769 = vstv %s768
      %v770 = vmul.f32 %v769, %v346
      %v771 = vmul.f32 %v769, %v347
      %v772 = vmul.f32 %v769, %v348
      %v773 = vmul.f32 %v769, %v349
      %v774 = vadd.f32 %v764, %v770
      %v775 = vadd.f32 %v765, %v771
      %v776 = vadd.f32 %v766, %v772
      %v777 = vadd.f32 %v767, %v773
      %s778 = sld [smem:[#allocation3 + $0x105]]
      %v779 = vstv %s778
      %v780 = vmul.f32 %v779, %v394
      %v781 = vmul.f32 %v779, %v395
      %v782 = vmul.f32 %v779, %v396
      %v783 = vmul.f32 %v779, %v397
      %v784 = vadd.f32 %v774, %v780
      %v785 = vadd.f32 %v775, %v781
      %v786 = vadd.f32 %v776, %v782
      %v787 = vadd.f32 %v777, %v783
      %s788 = sld [smem:[#allocation5 + $0x5]]
      %v789 = vstv %s788
      %v790 = vadd.f32 %v784, %v789
      %v791 = vadd.f32 %v785, %v789
      %v792 = vadd.f32 %v786, %v789
      %v793 = vadd.f32 %v787, %v789
      %v794 = vmax.f32 %v790, 0.0
      %v795 = vmax.f32 %v791, 0.0
      %v796 = vmax.f32 %v792, 0.0
      %v797 = vmax.f32 %v793, 0.0
      %s798 = sld [smem:[#allocation7 + $0x5]]
      %v799 = vstv %s798
      %v800 = vmul.f32 %v799, %v794
      %v801 = vmul.f32 %v799, %v795
      %v802 = vmul.f32 %v799, %v796
      %v803 = vmul.f32 %v799, %v797
      %v804 = vadd.f32 %v728, %v800
      %v805 = vadd.f32 %v729, %v801
      %v806 = vadd.f32 %v730, %v802
      %v807 = vadd.f32 %v731, %v803
      %s808 = sld [smem:[#allocation8 + $0x5]]
      %v809 = vstv %s808
      %v810 = vmul.f32 %v809, %v794
      %v811 = vmul.f32 %v809, %v795
      %v812 = vmul.f32 %v809, %v796
      %v813 = vmul.f32 %v809, %v797
      %v814 = vadd.f32 %v738, %v810
      %v815 = vadd.f32 %v739, %v811
      %v816 = vadd.f32 %v740, %v812
      %v817 = vadd.f32 %v741, %v813
      %s818 = sld [smem:[#allocation8 + $0x85]]
      %v819 = vstv %s818
      %v820 = vmul.f32 %v819, %v794
      %v821 = vmul.f32 %v819, %v795
      %v822 = vmul.f32 %v819, %v796
      %v823 = vmul.f32 %v819, %v797
      %v824 = vadd.f32 %v748, %v820
      %v825 = vadd.f32 %v749, %v821
      %v826 = vadd.f32 %v750, %v822
      %v827 = vadd.f32 %v751, %v823
      %s828 = sld [smem:[#allocation8 + $0x105]]
      %v829 = vstv %s828
      %v830 = vmul.f32 %v829, %v794
      %v831 = vmul.f32 %v829, %v795
      %v832 = vmul.f32 %v829, %v796
      %v833 = vmul.f32 %v829, %v797
      %v834 = vadd.f32 %v758, %v830
      %v835 = vadd.f32 %v759, %v831
      %v836 = vadd.f32 %v760, %v832
      %v837 = vadd.f32 %v761, %v833
      %s838 = sld [smem:[#allocation3 + $0x6]]
      %v839 = vstv %s838
      %v840 = vmul.f32 %v839, %v298
      %v841 = vmul.f32 %v839, %v299
      %v842 = vmul.f32 %v839, %v300
      %v843 = vmul.f32 %v839, %v301
      %s844 = sld [smem:[#allocation3 + $0x86]]
      %v845 = vstv %s844
      %v846 = vmul.f32 %v845, %v346
      %v847 = vmul.f32 %v845, %v347
      %v848 = vmul.f32 %v845, %v348
      %v849 = vmul.f32 %v845, %v349
      %v850 = vadd.f32 %v840, %v846
      %v851 = vadd.f32 %v841, %v847
      %v852 = vadd.f32 %v842, %v848
      %v853 = vadd.f32 %v843, %v849
      %s854 = sld [smem:[#allocation3 + $0x106]]
      %v855 = vstv %s854
      %v856 = vmul.f32 %v855, %v394
      %v857 = vmul.f32 %v855, %v395
      %v858 = vmul.f32 %v855, %v396
      %v859 = vmul.f32 %v855, %v397
      %v860 = vadd.f32 %v850, %v856
      %v861 = vadd.f32 %v851, %v857
      %v862 = vadd.f32 %v852, %v858
      %v863 = vadd.f32 %v853, %v859
      %s864 = sld [smem:[#allocation5 + $0x6]]
      %v865 = vstv %s864
      %v866 = vadd.f32 %v860, %v865
      %v867 = vadd.f32 %v861, %v865
      %v868 = vadd.f32 %v862, %v865
      %v869 = vadd.f32 %v863, %v865
      %v870 = vmax.f32 %v866, 0.0
      %v871 = vmax.f32 %v867, 0.0
      %v872 = vmax.f32 %v868, 0.0
      %v873 = vmax.f32 %v869, 0.0
      %s874 = sld [smem:[#allocation7 + $0x6]]
      %v875 = vstv %s874
      %v876 = vmul.f32 %v875, %v870
      %v877 = vmul.f32 %v875, %v871
      %v878 = vmul.f32 %v875, %v872
      %v879 = vmul.f32 %v875, %v873
      %v880 = vadd.f32 %v804, %v876
      %v881 = vadd.f32 %v805, %v877
      %v882 = vadd.f32 %v806, %v878
      %v883 = vadd.f32 %v807, %v879
      %s884 = sld [smem:[#allocation8 + $0x6]]
      %v885 = vstv %s884
      %v886 = vmul.f32 %v885, %v870
      %v887 = vmul.f32 %v885, %v871
      %v888 = vmul.f32 %v885, %v872
      %v889 = vmul.f32 %v885, %v873
      %v890 = vadd.f32 %v814, %v886
      %v891 = vadd.f32 %v815, %v887
      %v892 = vadd.f32 %v816, %v888
      %v893 = vadd.f32 %v817, %v889
      %s894 = sld [smem:[#allocation8 + $0x86]]
      %v895 = vstv %s894
      %v896 = vmul.f32 %v895, %v870
      %v897 = vmul.f32 %v895, %v871
      %v898 = vmul.f32 %v895, %v872
      %v899 = vmul.f32 %v895, %v873
      %v900 = vadd.f32 %v824, %v896
      %v901 = vadd.f32 %v825, %v897
      %v902 = vadd.f32 %v826, %v898
      %v903 = vadd.f32 %v827, %v899
      %s904 = sld [smem:[#allocation8 + $0x106]]
      %v905 = vstv %s904
      %v906 = vmul.f32 %v905, %v870
      %v907 = vmul.f32 %v905, %v871
      %v908 = vmul.f32 %v905, %v872
      %v909 = vmul.f32 %v905, %v873
      %v910 = vadd.f32 %v834, %v906
      %v911 = vadd.f32 %v835, %v907
      %v912 = vadd.f32 %v836, %v908
      %v913 = vadd.f32 %v837, %v909
      %s914 = sld [smem:[#allocation3 + $0x7]]
      %v915 = vstv %s914
      %v916 = vmul.f32 %v915, %v298
      %v917 = vmul.f32 %v915, %v299
      %v918 = vmul.f32 %v915, %v300
      %v919 = vmul.f32 %v915, %v301
      %s920 = sld [smem:[#allocation3 + $0x87]]
      %v921 = vstv %s920
      %v922 = vmul.f32 %v921, %v346
      %v923 = vmul.f32 %v921, %v347
      %v924 = vmul.f32 %v921, %v348
      %v925 = vmul.f32 %v921, %v349
      %v926 = vadd.f32 %v916, %v922
      %v927 = vadd.f32 %v917, %v923
      %v928 = vadd.f32 %v918, %v924
      %v929 = vadd.f32 %v919, %v925
      %s930 = sld [smem:[#allocation3 + $0x107]]
      %v931 = vstv %s930
      %v932 = vmul.f32 %v931, %v394
      %v933 = vmul.f32 %v931, %v395
      %v934 = vmul.f32 %v931, %v396
      %v935 = vmul.f32 %v931, %v397
      %v936 = vadd.f32 %v926, %v932
      %v937 = vadd.f32 %v927, %v933
      %v938 = vadd.f32 %v928, %v934
      %v939 = vadd.f32 %v929, %v935
      %s940 = sld [smem:[#allocation5 + $0x7]]
      %v941 = vstv %s940
      %v942 = vadd.f32 %v936, %v941
      %v943 = vadd.f32 %v937, %v941
      %v944 = vadd.f32 %v938, %v941
      %v945 = vadd.f32 %v939, %v941
      %v946 = vmax.f32 %v942, 0.0
      %v947 = vmax.f32 %v943, 0.0
      %v948 = vmax.f32 %v944, 0.0
      %v949 = vmax.f32 %v945, 0.0
      %s950 = sld [smem:[#allocation7 + $0x7]]
      %v951 = vstv %s950
      %v952 = vmul.f32 %v951, %v946
      %v953 = vmul.f32 %v951, %v947
      %v954 = vmul.f32 %v951, %v948
      %v955 = vmul.f32 %v951, %v949
      %v956 = vadd.f32 %v880, %v952
      %v957 = vadd.f32 %v881, %v953
      %v958 = vadd.f32 %v882, %v954
      %v959 = vadd.f32 %v883, %v955
      %s960 = sld [smem:[#allocation8 + $0x7]]
      %v961 = vstv %s960
      %v962 = vmul.f32 %v961, %v946
      %v963 = vmul.f32 %v961, %v947
      %v964 = vmul.f32 %v961, %v948
      %v965 = vmul.f32 %v961, %v949
      %v966 = vadd.f32 %v890, %v962
      %v967 = vadd.f32 %v891, %v963
      %v968 = vadd.f32 %v892, %v964
      %v969 = vadd.f32 %v893, %v965
      %s970 = sld [smem:[#allocation8 + $0x87]]
      %v971 = vstv %s970
      %v972 = vmul.f32 %v971, %v946
      %v973 = vmul.f32 %v971, %v947
      %v974 = vmul.f32 %v971, %v948
      %v975 = vmul.f32 %v971, %v949
      %v976 = vadd.f32 %v900, %v972
      %v977 = vadd.f32 %v901, %v973
      %v978 = vadd.f32 %v902, %v974
      %v979 = vadd.f32 %v903, %v975
      %s980 = sld [smem:[#allocation8 + $0x107]]
      %v981 = vstv %s980
      %v982 = vmul.f32 %v981, %v946
      %v983 = vmul.f32 %v981, %v947
      %v984 = vmul.f32 %v981, %v948
      %v985 = vmul.f32 %v981, %v949
      %v986 = vadd.f32 %v910, %v982
      %v987 = vadd.f32 %v911, %v983
      %v988 = vadd.f32 %v912, %v984
      %v989 = vadd.f32 %v913, %v985
      %s990 = sld [smem:[#allocation3 + $0x8]]
      %v991 = vstv %s990
      %v992 = vmul.f32 %v991, %v298
      %v993 = vmul.f32 %v991, %v299
      %v994 = vmul.f32 %v991, %v300
      %v995 = vmul.f32 %v991, %v301
      %s996 = sld [smem:[#allocation3 + $0x88]]
      %v997 = vstv %s996
      %v998 = vmul.f32 %v997, %v346
      %v999 = vmul.f32 %v997, %v347
      %v1000 = vmul.f32 %v997, %v348
      %v1001 = vmul.f32 %v997, %v349
      %v1002 = vadd.f32 %v992, %v998
      %v1003 = vadd.f32 %v993, %v999
      %v1004 = vadd.f32 %v994, %v1000
      %v1005 = vadd.f32 %v995, %v1001
      %s1006 = sld [smem:[#allocation3 + $0x108]]
      %v1007 = vstv %s1006
      %v1008 = vmul.f32 %v1007, %v394
      %v1009 = vmul.f32 %v1007, %v395
      %v1010 = vmul.f32 %v1007, %v396
      %v1011 = vmul.f32 %v1007, %v397
      %v1012 = vadd.f32 %v1002, %v1008
      %v1013 = vadd.f32 %v1003, %v1009
      %v1014 = vadd.f32 %v1004, %v1010
      %v1015 = vadd.f32 %v1005, %v1011
      %s1016 = sld [smem:[#allocation5 + $0x8]]
      %v1017 = vstv %s1016
      %v1018 = vadd.f32 %v1012, %v1017
      %v1019 = vadd.f32 %v1013, %v1017
      %v1020 = vadd.f32 %v1014, %v1017
      %v1021 = vadd.f32 %v1015, %v1017
      %v1022 = vmax.f32 %v1018, 0.0
      %v1023 = vmax.f32 %v1019, 0.0
      %v1024 = vmax.f32 %v1020, 0.0
      %v1025 = vmax.f32 %v1021, 0.0
      %s1026 = sld [smem:[#allocation7 + $0x8]]
      %v1027 = vstv %s1026
      %v1028 = vmul.f32 %v1027, %v1022
      %v1029 = vmul.f32 %v1027, %v1023
      %v1030 = vmul.f32 %v1027, %v1024
      %v1031 = vmul.f32 %v1027, %v1025
      %v1032 = vadd.f32 %v956, %v1028
      %v1033 = vadd.f32 %v957, %v1029
      %v1034 = vadd.f32 %v958, %v1030
      %v1035 = vadd.f32 %v959, %v1031
      %s1036 = sld [smem:[#allocation8 + $0x8]]
      %v1037 = vstv %s1036
      %v1038 = vmul.f32 %v1037, %v1022
      %v1039 = vmul.f32 %v1037, %v1023
      %v1040 = vmul.f32 %v1037, %v1024
      %v1041 = vmul.f32 %v1037, %v1025
      %v1042 = vadd.f32 %v966, %v1038
      %v1043 = vadd.f32 %v967, %v1039
      %v1044 = vadd.f32 %v968, %v1040
      %v1045 = vadd.f32 %v969, %v1041
      %s1046 = sld [smem:[#allocation8 + $0x88]]
      %v1047 = vstv %s1046
      %v1048 = vmul.f32 %v1047, %v1022
      %v1049 = vmul.f32 %v1047, %v1023
      %v1050 = vmul.f32 %v1047, %v1024
      %v1051 = vmul.f32 %v1047, %v1025
      %v1052 = vadd.f32 %v976, %v1048
      %v1053 = vadd.f32 %v977, %v1049
      %v1054 = vadd.f32 %v978, %v1050
      %v1055 = vadd.f32 %v979, %v1051
      %s1056 = sld [smem:[#allocation8 + $0x108]]
      %v1057 = vstv %s1056
      %v1058 = vmul.f32 %v1057, %v1022
      %v1059 = vmul.f32 %v1057, %v1023
      %v1060 = vmul.f32 %v1057, %v1024
      %v1061 = vmul.f32 %v1057, %v1025
      %v1062 = vadd.f32 %v986, %v1058
      %v1063 = vadd.f32 %v987, %v1059
      %v1064 = vadd.f32 %v988, %v1060
      %v1065 = vadd.f32 %v989, %v1061
      %s1066 = sld [smem:[#allocation3 + $0x9]]
      %v1067 = vstv %s1066
      %v1068 = vmul.f32 %v1067, %v298
      %v1069 = vmul.f32 %v1067, %v299
      %v1070 = vmul.f32 %v1067, %v300
      %v1071 = vmul.f32 %v1067, %v301
      %s1072 = sld [smem:[#allocation3 + $0x89]]
      %v1073 = vstv %s1072
      %v1074 = vmul.f32 %v1073, %v346
      %v1075 = vmul.f32 %v1073, %v347
      %v1076 = vmul.f32 %v1073, %v348
      %v1077 = vmul.f32 %v1073, %v349
      %v1078 = vadd.f32 %v1068, %v1074
      %v1079 = vadd.f32 %v1069, %v1075
      %v1080 = vadd.f32 %v1070, %v1076
      %v1081 = vadd.f32 %v1071, %v1077
      %s1082 = sld [smem:[#allocation3 + $0x109]]
      %v1083 = vstv %s1082
      %v1084 = vmul.f32 %v1083, %v394
      %v1085 = vmul.f32 %v1083, %v395
      %v1086 = vmul.f32 %v1083, %v396
      %v1087 = vmul.f32 %v1083, %v397
      %v1088 = vadd.f32 %v1078, %v1084
      %v1089 = vadd.f32 %v1079, %v1085
      %v1090 = vadd.f32 %v1080, %v1086
      %v1091 = vadd.f32 %v1081, %v1087
      %s1092 = sld [smem:[#allocation5 + $0x9]]
      %v1093 = vstv %s1092
      %v1094 = vadd.f32 %v1088, %v1093
      %v1095 = vadd.f32 %v1089, %v1093
      %v1096 = vadd.f32 %v1090, %v1093
      %v1097 = vadd.f32 %v1091, %v1093
      %v1098 = vmax.f32 %v1094, 0.0
      %v1099 = vmax.f32 %v1095, 0.0
      %v1100 = vmax.f32 %v1096, 0.0
      %v1101 = vmax.f32 %v1097, 0.0
      %s1102 = sld [smem:[#allocation7 + $0x9]]
      %v1103 = vstv %s1102
      %v1104 = vmul.f32 %v1103, %v1098
      %v1105 = vmul.f32 %v1103, %v1099
      %v1106 = vmul.f32 %v1103, %v1100
      %v1107 = vmul.f32 %v1103, %v1101
      %v1108 = vadd.f32 %v1032, %v1104
      %v1109 = vadd.f32 %v1033, %v1105
      %v1110 = vadd.f32 %v1034, %v1106
      %v1111 = vadd.f32 %v1035, %v1107
      %s1112 = sld [smem:[#allocation8 + $0x9]]
      %v1113 = vstv %s1112
      %v1114 = vmul.f32 %v1113, %v1098
      %v1115 = vmul.f32 %v1113, %v1099
      %v1116 = vmul.f32 %v1113, %v1100
      %v1117 = vmul.f32 %v1113, %v1101
      %v1118 = vadd.f32 %v1042, %v1114
      %v1119 = vadd.f32 %v1043, %v1115
      %v1120 = vadd.f32 %v1044, %v1116
      %v1121 = vadd.f32 %v1045, %v1117
      %s1122 = sld [smem:[#allocation8 + $0x89]]
      %v1123 = vstv %s1122
      %v1124 = vmul.f32 %v1123, %v1098
      %v1125 = vmul.f32 %v1123, %v1099
      %v1126 = vmul.f32 %v1123, %v1100
      %v1127 = vmul.f32 %v1123, %v1101
      %v1128 = vadd.f32 %v1052, %v1124
      %v1129 = vadd.f32 %v1053, %v1125
      %v1130 = vadd.f32 %v1054, %v1126
      %v1131 = vadd.f32 %v1055, %v1127
      %s1132 = sld [smem:[#allocation8 + $0x109]]
      %v1133 = vstv %s1132
      %v1134 = vmul.f32 %v1133, %v1098
      %v1135 = vmul.f32 %v1133, %v1099
      %v1136 = vmul.f32 %v1133, %v1100
      %v1137 = vmul.f32 %v1133, %v1101
      %v1138 = vadd.f32 %v1062, %v1134
      %v1139 = vadd.f32 %v1063, %v1135
      %v1140 = vadd.f32 %v1064, %v1136
      %v1141 = vadd.f32 %v1065, %v1137
      %s1142 = sld [smem:[#allocation3 + $0xa]]
      %v1143 = vstv %s1142
      %v1144 = vmul.f32 %v1143, %v298
      %v1145 = vmul.f32 %v1143, %v299
      %v1146 = vmul.f32 %v1143, %v300
      %v1147 = vmul.f32 %v1143, %v301
      %s1148 = sld [smem:[#allocation3 + $0x8a]]
      %v1149 = vstv %s1148
      %v1150 = vmul.f32 %v1149, %v346
      %v1151 = vmul.f32 %v1149, %v347
      %v1152 = vmul.f32 %v1149, %v348
      %v1153 = vmul.f32 %v1149, %v349
      %v1154 = vadd.f32 %v1144, %v1150
      %v1155 = vadd.f32 %v1145, %v1151
      %v1156 = vadd.f32 %v1146, %v1152
      %v1157 = vadd.f32 %v1147, %v1153
      %s1158 = sld [smem:[#allocation3 + $0x10a]]
      %v1159 = vstv %s1158
      %v1160 = vmul.f32 %v1159, %v394
      %v1161 = vmul.f32 %v1159, %v395
      %v1162 = vmul.f32 %v1159, %v396
      %v1163 = vmul.f32 %v1159, %v397
      %v1164 = vadd.f32 %v1154, %v1160
      %v1165 = vadd.f32 %v1155, %v1161
      %v1166 = vadd.f32 %v1156, %v1162
      %v1167 = vadd.f32 %v1157, %v1163
      %s1168 = sld [smem:[#allocation5 + $0xa]]
      %v1169 = vstv %s1168
      %v1170 = vadd.f32 %v1164, %v1169
      %v1171 = vadd.f32 %v1165, %v1169
      %v1172 = vadd.f32 %v1166, %v1169
      %v1173 = vadd.f32 %v1167, %v1169
      %v1174 = vmax.f32 %v1170, 0.0
      %v1175 = vmax.f32 %v1171, 0.0
      %v1176 = vmax.f32 %v1172, 0.0
      %v1177 = vmax.f32 %v1173, 0.0
      %s1178 = sld [smem:[#allocation7 + $0xa]]
      %v1179 = vstv %s1178
      %v1180 = vmul.f32 %v1179, %v1174
      %v1181 = vmul.f32 %v1179, %v1175
      %v1182 = vmul.f32 %v1179, %v1176
      %v1183 = vmul.f32 %v1179, %v1177
      %v1184 = vadd.f32 %v1108, %v1180
      %v1185 = vadd.f32 %v1109, %v1181
      %v1186 = vadd.f32 %v1110, %v1182
      %v1187 = vadd.f32 %v1111, %v1183
      %s1188 = sld [smem:[#allocation8 + $0xa]]
      %v1189 = vstv %s1188
      %v1190 = vmul.f32 %v1189, %v1174
      %v1191 = vmul.f32 %v1189, %v1175
      %v1192 = vmul.f32 %v1189, %v1176
      %v1193 = vmul.f32 %v1189, %v1177
      %v1194 = vadd.f32 %v1118, %v1190
      %v1195 = vadd.f32 %v1119, %v1191
      %v1196 = vadd.f32 %v1120, %v1192
      %v1197 = vadd.f32 %v1121, %v1193
      %s1198 = sld [smem:[#allocation8 + $0x8a]]
      %v1199 = vstv %s1198
      %v1200 = vmul.f32 %v1199, %v1174
      %v1201 = vmul.f32 %v1199, %v1175
      %v1202 = vmul.f32 %v1199, %v1176
      %v1203 = vmul.f32 %v1199, %v1177
      %v1204 = vadd.f32 %v1128, %v1200
      %v1205 = vadd.f32 %v1129, %v1201
      %v1206 = vadd.f32 %v1130, %v1202
      %v1207 = vadd.f32 %v1131, %v1203
      %s1208 = sld [smem:[#allocation8 + $0x10a]]
      %v1209 = vstv %s1208
      %v1210 = vmul.f32 %v1209, %v1174
      %v1211 = vmul.f32 %v1209, %v1175
      %v1212 = vmul.f32 %v1209, %v1176
      %v1213 = vmul.f32 %v1209, %v1177
      %v1214 = vadd.f32 %v1138, %v1210
      %v1215 = vadd.f32 %v1139, %v1211
      %v1216 = vadd.f32 %v1140, %v1212
      %v1217 = vadd.f32 %v1141, %v1213
      %s1218 = sld [smem:[#allocation3 + $0xb]]
      %v1219 = vstv %s1218
      %v1220 = vmul.f32 %v1219, %v298
      %v1221 = vmul.f32 %v1219, %v299
      %v1222 = vmul.f32 %v1219, %v300
      %v1223 = vmul.f32 %v1219, %v301
      %s1224 = sld [smem:[#allocation3 + $0x8b]]
      %v1225 = vstv %s1224
      %v1226 = vmul.f32 %v1225, %v346
      %v1227 = vmul.f32 %v1225, %v347
      %v1228 = vmul.f32 %v1225, %v348
      %v1229 = vmul.f32 %v1225, %v349
      %v1230 = vadd.f32 %v1220, %v1226
      %v1231 = vadd.f32 %v1221, %v1227
      %v1232 = vadd.f32 %v1222, %v1228
      %v1233 = vadd.f32 %v1223, %v1229
      %s1234 = sld [smem:[#allocation3 + $0x10b]]
      %v1235 = vstv %s1234
      %v1236 = vmul.f32 %v1235, %v394
      %v1237 = vmul.f32 %v1235, %v395
      %v1238 = vmul.f32 %v1235, %v396
      %v1239 = vmul.f32 %v1235, %v397
      %v1240 = vadd.f32 %v1230, %v1236
      %v1241 = vadd.f32 %v1231, %v1237
      %v1242 = vadd.f32 %v1232, %v1238
      %v1243 = vadd.f32 %v1233, %v1239
      %s1244 = sld [smem:[#allocation5 + $0xb]]
      %v1245 = vstv %s1244
      %v1246 = vadd.f32 %v1240, %v1245
      %v1247 = vadd.f32 %v1241, %v1245
      %v1248 = vadd.f32 %v1242, %v1245
      %v1249 = vadd.f32 %v1243, %v1245
      %v1250 = vmax.f32 %v1246, 0.0
      %v1251 = vmax.f32 %v1247, 0.0
      %v1252 = vmax.f32 %v1248, 0.0
      %v1253 = vmax.f32 %v1249, 0.0
      %s1254 = sld [smem:[#allocation7 + $0xb]]
      %v1255 = vstv %s1254
      %v1256 = vmul.f32 %v1255, %v1250
      %v1257 = vmul.f32 %v1255, %v1251
      %v1258 = vmul.f32 %v1255, %v1252
      %v1259 = vmul.f32 %v1255, %v1253
      %v1260 = vadd.f32 %v1184, %v1256
      %v1261 = vadd.f32 %v1185, %v1257
      %v1262 = vadd.f32 %v1186, %v1258
      %v1263 = vadd.f32 %v1187, %v1259
      %s1264 = sld [smem:[#allocation8 + $0xb]]
      %v1265 = vstv %s1264
      %v1266 = vmul.f32 %v1265, %v1250
      %v1267 = vmul.f32 %v1265, %v1251
      %v1268 = vmul.f32 %v1265, %v1252
      %v1269 = vmul.f32 %v1265, %v1253
      %v1270 = vadd.f32 %v1194, %v1266
      %v1271 = vadd.f32 %v1195, %v1267
      %v1272 = vadd.f32 %v1196, %v1268
      %v1273 = vadd.f32 %v1197, %v1269
      %s1274 = sld [smem:[#allocation8 + $0x8b]]
      %v1275 = vstv %s1274
      %v1276 = vmul.f32 %v1275, %v1250
      %v1277 = vmul.f32 %v1275, %v1251
      %v1278 = vmul.f32 %v1275, %v1252
      %v1279 = vmul.f32 %v1275, %v1253
      %v1280 = vadd.f32 %v1204, %v1276
      %v1281 = vadd.f32 %v1205, %v1277
      %v1282 = vadd.f32 %v1206, %v1278
      %v1283 = vadd.f32 %v1207, %v1279
      %s1284 = sld [smem:[#allocation8 + $0x10b]]
      %v1285 = vstv %s1284
      %v1286 = vmul.f32 %v1285, %v1250
      %v1287 = vmul.f32 %v1285, %v1251
      %v1288 = vmul.f32 %v1285, %v1252
      %v1289 = vmul.f32 %v1285, %v1253
      %v1290 = vadd.f32 %v1214, %v1286
      %v1291 = vadd.f32 %v1215, %v1287
      %v1292 = vadd.f32 %v1216, %v1288
      %v1293 = vadd.f32 %v1217, %v1289
      %s1294 = sld [smem:[#allocation3 + $0xc]]
      %v1295 = vstv %s1294
      %v1296 = vmul.f32 %v1295, %v298
      %v1297 = vmul.f32 %v1295, %v299
      %v1298 = vmul.f32 %v1295, %v300
      %v1299 = vmul.f32 %v1295, %v301
      %s1300 = sld [smem:[#allocation3 + $0x8c]]
      %v1301 = vstv %s1300
      %v1302 = vmul.f32 %v1301, %v346
      %v1303 = vmul.f32 %v1301, %v347
      %v1304 = vmul.f32 %v1301, %v348
      %v1305 = vmul.f32 %v1301, %v349
      %v1306 = vadd.f32 %v1296, %v1302
      %v1307 = vadd.f32 %v1297, %v1303
      %v1308 = vadd.f32 %v1298, %v1304
      %v1309 = vadd.f32 %v1299, %v1305
      %s1310 = sld [smem:[#allocation3 + $0x10c]]
      %v1311 = vstv %s1310
      %v1312 = vmul.f32 %v1311, %v394
      %v1313 = vmul.f32 %v1311, %v395
      %v1314 = vmul.f32 %v1311, %v396
      %v1315 = vmul.f32 %v1311, %v397
      %v1316 = vadd.f32 %v1306, %v1312
      %v1317 = vadd.f32 %v1307, %v1313
      %v1318 = vadd.f32 %v1308, %v1314
      %v1319 = vadd.f32 %v1309, %v1315
      %s1320 = sld [smem:[#allocation5 + $0xc]]
      %v1321 = vstv %s1320
      %v1322 = vadd.f32 %v1316, %v1321
      %v1323 = vadd.f32 %v1317, %v1321
      %v1324 = vadd.f32 %v1318, %v1321
      %v1325 = vadd.f32 %v1319, %v1321
      %v1326 = vmax.f32 %v1322, 0.0
      %v1327 = vmax.f32 %v1323, 0.0
      %v1328 = vmax.f32 %v1324, 0.0
      %v1329 = vmax.f32 %v1325, 0.0
      %s1330 = sld [smem:[#allocation7 + $0xc]]
      %v1331 = vstv %s1330
      %v1332 = vmul.f32 %v1331, %v1326
      %v1333 = vmul.f32 %v1331, %v1327
      %v1334 = vmul.f32 %v1331, %v1328
      %v1335 = vmul.f32 %v1331, %v1329
      %v1336 = vadd.f32 %v1260, %v1332
      %v1337 = vadd.f32 %v1261, %v1333
      %v1338 = vadd.f32 %v1262, %v1334
      %v1339 = vadd.f32 %v1263, %v1335
      %s1340 = sld [smem:[#allocation8 + $0xc]]
      %v1341 = vstv %s1340
      %v1342 = vmul.f32 %v1341, %v1326
      %v1343 = vmul.f32 %v1341, %v1327
      %v1344 = vmul.f32 %v1341, %v1328
      %v1345 = vmul.f32 %v1341, %v1329
      %v1346 = vadd.f32 %v1270, %v1342
      %v1347 = vadd.f32 %v1271, %v1343
      %v1348 = vadd.f32 %v1272, %v1344
      %v1349 = vadd.f32 %v1273, %v1345
      %s1350 = sld [smem:[#allocation8 + $0x8c]]
      %v1351 = vstv %s1350
      %v1352 = vmul.f32 %v1351, %v1326
      %v1353 = vmul.f32 %v1351, %v1327
      %v1354 = vmul.f32 %v1351, %v1328
      %v1355 = vmul.f32 %v1351, %v1329
      %v1356 = vadd.f32 %v1280, %v1352
      %v1357 = vadd.f32 %v1281, %v1353
      %v1358 = vadd.f32 %v1282, %v1354
      %v1359 = vadd.f32 %v1283, %v1355
      %s1360 = sld [smem:[#allocation8 + $0x10c]]
      %v1361 = vstv %s1360
      %v1362 = vmul.f32 %v1361, %v1326
      %v1363 = vmul.f32 %v1361, %v1327
      %v1364 = vmul.f32 %v1361, %v1328
      %v1365 = vmul.f32 %v1361, %v1329
      %v1366 = vadd.f32 %v1290, %v1362
      %v1367 = vadd.f32 %v1291, %v1363
      %v1368 = vadd.f32 %v1292, %v1364
      %v1369 = vadd.f32 %v1293, %v1365
      %s1370 = sld [smem:[#allocation3 + $0xd]]
      %v1371 = vstv %s1370
      %v1372 = vmul.f32 %v1371, %v298
      %v1373 = vmul.f32 %v1371, %v299
      %v1374 = vmul.f32 %v1371, %v300
      %v1375 = vmul.f32 %v1371, %v301
      %s1376 = sld [smem:[#allocation3 + $0x8d]]
      %v1377 = vstv %s1376
      %v1378 = vmul.f32 %v1377, %v346
      %v1379 = vmul.f32 %v1377, %v347
      %v1380 = vmul.f32 %v1377, %v348
      %v1381 = vmul.f32 %v1377, %v349
      %v1382 = vadd.f32 %v1372, %v1378
      %v1383 = vadd.f32 %v1373, %v1379
      %v1384 = vadd.f32 %v1374, %v1380
      %v1385 = vadd.f32 %v1375, %v1381
      %s1386 = sld [smem:[#allocation3 + $0x10d]]
      %v1387 = vstv %s1386
      %v1388 = vmul.f32 %v1387, %v394
      %v1389 = vmul.f32 %v1387, %v395
      %v1390 = vmul.f32 %v1387, %v396
      %v1391 = vmul.f32 %v1387, %v397
      %v1392 = vadd.f32 %v1382, %v1388
      %v1393 = vadd.f32 %v1383, %v1389
      %v1394 = vadd.f32 %v1384, %v1390
      %v1395 = vadd.f32 %v1385, %v1391
      %s1396 = sld [smem:[#allocation5 + $0xd]]
      %v1397 = vstv %s1396
      %v1398 = vadd.f32 %v1392, %v1397
      %v1399 = vadd.f32 %v1393, %v1397
      %v1400 = vadd.f32 %v1394, %v1397
      %v1401 = vadd.f32 %v1395, %v1397
      %v1402 = vmax.f32 %v1398, 0.0
      %v1403 = vmax.f32 %v1399, 0.0
      %v1404 = vmax.f32 %v1400, 0.0
      %v1405 = vmax.f32 %v1401, 0.0
      %s1406 = sld [smem:[#allocation7 + $0xd]]
      %v1407 = vstv %s1406
      %v1408 = vmul.f32 %v1407, %v1402
      %v1409 = vmul.f32 %v1407, %v1403
      %v1410 = vmul.f32 %v1407, %v1404
      %v1411 = vmul.f32 %v1407, %v1405
      %v1412 = vadd.f32 %v1336, %v1408
      %v1413 = vadd.f32 %v1337, %v1409
      %v1414 = vadd.f32 %v1338, %v1410
      %v1415 = vadd.f32 %v1339, %v1411
      %s1416 = sld [smem:[#allocation8 + $0xd]]
      %v1417 = vstv %s1416
      %v1418 = vmul.f32 %v1417, %v1402
      %v1419 = vmul.f32 %v1417, %v1403
      %v1420 = vmul.f32 %v1417, %v1404
      %v1421 = vmul.f32 %v1417, %v1405
      %v1422 = vadd.f32 %v1346, %v1418
      %v1423 = vadd.f32 %v1347, %v1419
      %v1424 = vadd.f32 %v1348, %v1420
      %v1425 = vadd.f32 %v1349, %v1421
      %s1426 = sld [smem:[#allocation8 + $0x8d]]
      %v1427 = vstv %s1426
      %v1428 = vmul.f32 %v1427, %v1402
      %v1429 = vmul.f32 %v1427, %v1403
      %v1430 = vmul.f32 %v1427, %v1404
      %v1431 = vmul.f32 %v1427, %v1405
      %v1432 = vadd.f32 %v1356, %v1428
      %v1433 = vadd.f32 %v1357, %v1429
      %v1434 = vadd.f32 %v1358, %v1430
      %v1435 = vadd.f32 %v1359, %v1431
      %s1436 = sld [smem:[#allocation8 + $0x10d]]
      %v1437 = vstv %s1436
      %v1438 = vmul.f32 %v1437, %v1402
      %v1439 = vmul.f32 %v1437, %v1403
      %v1440 = vmul.f32 %v1437, %v1404
      %v1441 = vmul.f32 %v1437, %v1405
      %v1442 = vadd.f32 %v1366, %v1438
      %v1443 = vadd.f32 %v1367, %v1439
      %v1444 = vadd.f32 %v1368, %v1440
      %v1445 = vadd.f32 %v1369, %v1441
      %s1446 = sld [smem:[#allocation3 + $0xe]]
      %v1447 = vstv %s1446
      %v1448 = vmul.f32 %v1447, %v298
      %v1449 = vmul.f32 %v1447, %v299
      %v1450 = vmul.f32 %v1447, %v300
      %v1451 = vmul.f32 %v1447, %v301
      %s1452 = sld [smem:[#allocation3 + $0x8e]]
      %v1453 = vstv %s1452
      %v1454 = vmul.f32 %v1453, %v346
      %v1455 = vmul.f32 %v1453, %v347
      %v1456 = vmul.f32 %v1453, %v348
      %v1457 = vmul.f32 %v1453, %v349
      %v1458 = vadd.f32 %v1448, %v1454
      %v1459 = vadd.f32 %v1449, %v1455
      %v1460 = vadd.f32 %v1450, %v1456
      %v1461 = vadd.f32 %v1451, %v1457
      %s1462 = sld [smem:[#allocation3 + $0x10e]]
      %v1463 = vstv %s1462
      %v1464 = vmul.f32 %v1463, %v394
      %v1465 = vmul.f32 %v1463, %v395
      %v1466 = vmul.f32 %v1463, %v396
      %v1467 = vmul.f32 %v1463, %v397
      %v1468 = vadd.f32 %v1458, %v1464
      %v1469 = vadd.f32 %v1459, %v1465
      %v1470 = vadd.f32 %v1460, %v1466
      %v1471 = vadd.f32 %v1461, %v1467
      %s1472 = sld [smem:[#allocation5 + $0xe]]
      %v1473 = vstv %s1472
      %v1474 = vadd.f32 %v1468, %v1473
      %v1475 = vadd.f32 %v1469, %v1473
      %v1476 = vadd.f32 %v1470, %v1473
      %v1477 = vadd.f32 %v1471, %v1473
      %v1478 = vmax.f32 %v1474, 0.0
      %v1479 = vmax.f32 %v1475, 0.0
      %v1480 = vmax.f32 %v1476, 0.0
      %v1481 = vmax.f32 %v1477, 0.0
      %s1482 = sld [smem:[#allocation7 + $0xe]]
      %v1483 = vstv %s1482
      %v1484 = vmul.f32 %v1483, %v1478
      %v1485 = vmul.f32 %v1483, %v1479
      %v1486 = vmul.f32 %v1483, %v1480
      %v1487 = vmul.f32 %v1483, %v1481
      %v1488 = vadd.f32 %v1412, %v1484
      %v1489 = vadd.f32 %v1413, %v1485
      %v1490 = vadd.f32 %v1414, %v1486
      %v1491 = vadd.f32 %v1415, %v1487
      %s1492 = sld [smem:[#allocation8 + $0xe]]
      %v1493 = vstv %s1492
      %v1494 = vmul.f32 %v1493, %v1478
      %v1495 = vmul.f32 %v1493, %v1479
      %v1496 = vmul.f32 %v1493, %v1480
      %v1497 = vmul.f32 %v1493, %v1481
      %v1498 = vadd.f32 %v1422, %v1494
      %v1499 = vadd.f32 %v1423, %v1495
      %v1500 = vadd.f32 %v1424, %v1496
      %v1501 = vadd.f32 %v1425, %v1497
      %s1502 = sld [smem:[#allocation8 + $0x8e]]
      %v1503 = vstv %s1502
      %v1504 = vmul.f32 %v1503, %v1478
      %v1505 = vmul.f32 %v1503, %v1479
      %v1506 = vmul.f32 %v1503, %v1480
      %v1507 = vmul.f32 %v1503, %v1481
      %v1508 = vadd.f32 %v1432, %v1504
      %v1509 = vadd.f32 %v1433, %v1505
      %v1510 = vadd.f32 %v1434, %v1506
      %v1511 = vadd.f32 %v1435, %v1507
      %s1512 = sld [smem:[#allocation8 + $0x10e]]
      %v1513 = vstv %s1512
      %v1514 = vmul.f32 %v1513, %v1478
      %v1515 = vmul.f32 %v1513, %v1479
      %v1516 = vmul.f32 %v1513, %v1480
      %v1517 = vmul.f32 %v1513, %v1481
      %v1518 = vadd.f32 %v1442, %v1514
      %v1519 = vadd.f32 %v1443, %v1515
      %v1520 = vadd.f32 %v1444, %v1516
      %v1521 = vadd.f32 %v1445, %v1517
      %s1522 = sld [smem:[#allocation3 + $0xf]]
      %v1523 = vstv %s1522
      %v1524 = vmul.f32 %v1523, %v298
      %v1525 = vmul.f32 %v1523, %v299
      %v1526 = vmul.f32 %v1523, %v300
      %v1527 = vmul.f32 %v1523, %v301
      %s1528 = sld [smem:[#allocation3 + $0x8f]]
      %v1529 = vstv %s1528
      %v1530 = vmul.f32 %v1529, %v346
      %v1531 = vmul.f32 %v1529, %v347
      %v1532 = vmul.f32 %v1529, %v348
      %v1533 = vmul.f32 %v1529, %v349
      %v1534 = vadd.f32 %v1524, %v1530
      %v1535 = vadd.f32 %v1525, %v1531
      %v1536 = vadd.f32 %v1526, %v1532
      %v1537 = vadd.f32 %v1527, %v1533
      %s1538 = sld [smem:[#allocation3 + $0x10f]]
      %v1539 = vstv %s1538
      %v1540 = vmul.f32 %v1539, %v394
      %v1541 = vmul.f32 %v1539, %v395
      %v1542 = vmul.f32 %v1539, %v396
      %v1543 = vmul.f32 %v1539, %v397
      %v1544 = vadd.f32 %v1534, %v1540
      %v1545 = vadd.f32 %v1535, %v1541
      %v1546 = vadd.f32 %v1536, %v1542
      %v1547 = vadd.f32 %v1537, %v1543
      %s1548 = sld [smem:[#allocation5 + $0xf]]
      %v1549 = vstv %s1548
      %v1550 = vadd.f32 %v1544, %v1549
      %v1551 = vadd.f32 %v1545, %v1549
      %v1552 = vadd.f32 %v1546, %v1549
      %v1553 = vadd.f32 %v1547, %v1549
      %v1554 = vmax.f32 %v1550, 0.0
      %v1555 = vmax.f32 %v1551, 0.0
      %v1556 = vmax.f32 %v1552, 0.0
      %v1557 = vmax.f32 %v1553, 0.0
      %s1558 = sld [smem:[#allocation7 + $0xf]]
      %v1559 = vstv %s1558
      %v1560 = vmul.f32 %v1559, %v1554
      %v1561 = vmul.f32 %v1559, %v1555
      %v1562 = vmul.f32 %v1559, %v1556
      %v1563 = vmul.f32 %v1559, %v1557
      %v1564 = vadd.f32 %v1488, %v1560
      %v1565 = vadd.f32 %v1489, %v1561
      %v1566 = vadd.f32 %v1490, %v1562
      %v1567 = vadd.f32 %v1491, %v1563
      %s1568 = sld [smem:[#allocation8 + $0xf]]
      %v1569 = vstv %s1568
      %v1570 = vmul.f32 %v1569, %v1554
      %v1571 = vmul.f32 %v1569, %v1555
      %v1572 = vmul.f32 %v1569, %v1556
      %v1573 = vmul.f32 %v1569, %v1557
      %v1574 = vadd.f32 %v1498, %v1570
      %v1575 = vadd.f32 %v1499, %v1571
      %v1576 = vadd.f32 %v1500, %v1572
      %v1577 = vadd.f32 %v1501, %v1573
      %s1578 = sld [smem:[#allocation8 + $0x8f]]
      %v1579 = vstv %s1578
      %v1580 = vmul.f32 %v1579, %v1554
      %v1581 = vmul.f32 %v1579, %v1555
      %v1582 = vmul.f32 %v1579, %v1556
      %v1583 = vmul.f32 %v1579, %v1557
      %v1584 = vadd.f32 %v1508, %v1580
      %v1585 = vadd.f32 %v1509, %v1581
      %v1586 = vadd.f32 %v1510, %v1582
      %v1587 = vadd.f32 %v1511, %v1583
      %s1588 = sld [smem:[#allocation8 + $0x10f]]
      %v1589 = vstv %s1588
      %v1590 = vmul.f32 %v1589, %v1554
      %v1591 = vmul.f32 %v1589, %v1555
      %v1592 = vmul.f32 %v1589, %v1556
      %v1593 = vmul.f32 %v1589, %v1557
      %v1594 = vadd.f32 %v1518, %v1590
      %v1595 = vadd.f32 %v1519, %v1591
      %v1596 = vadd.f32 %v1520, %v1592
      %v1597 = vadd.f32 %v1521, %v1593
      %s1598 = sld [smem:[#allocation3 + $0x10]]
      %v1599 = vstv %s1598
      %v1600 = vmul.f32 %v1599, %v298
      %v1601 = vmul.f32 %v1599, %v299
      %v1602 = vmul.f32 %v1599, %v300
      %v1603 = vmul.f32 %v1599, %v301
      %s1604 = sld [smem:[#allocation3 + $0x90]]
      %v1605 = vstv %s1604
      %v1606 = vmul.f32 %v1605, %v346
      %v1607 = vmul.f32 %v1605, %v347
      %v1608 = vmul.f32 %v1605, %v348
      %v1609 = vmul.f32 %v1605, %v349
      %v1610 = vadd.f32 %v1600, %v1606
      %v1611 = vadd.f32 %v1601, %v1607
      %v1612 = vadd.f32 %v1602, %v1608
      %v1613 = vadd.f32 %v1603, %v1609
      %s1614 = sld [smem:[#allocation3 + $0x110]]
      %v1615 = vstv %s1614
      %v1616 = vmul.f32 %v1615, %v394
      %v1617 = vmul.f32 %v1615, %v395
      %v1618 = vmul.f32 %v1615, %v396
      %v1619 = vmul.f32 %v1615, %v397
      %v1620 = vadd.f32 %v1610, %v1616
      %v1621 = vadd.f32 %v1611, %v1617
      %v1622 = vadd.f32 %v1612, %v1618
      %v1623 = vadd.f32 %v1613, %v1619
      %s1624 = sld [smem:[#allocation5 + $0x10]]
      %v1625 = vstv %s1624
      %v1626 = vadd.f32 %v1620, %v1625
      %v1627 = vadd.f32 %v1621, %v1625
      %v1628 = vadd.f32 %v1622, %v1625
      %v1629 = vadd.f32 %v1623, %v1625
      %v1630 = vmax.f32 %v1626, 0.0
      %v1631 = vmax.f32 %v1627, 0.0
      %v1632 = vmax.f32 %v1628, 0.0
      %v1633 = vmax.f32 %v1629, 0.0
      %s1634 = sld [smem:[#allocation7 + $0x10]]
      %v1635 = vstv %s1634
      %v1636 = vmul.f32 %v1635, %v1630
      %v1637 = vmul.f32 %v1635, %v1631
      %v1638 = vmul.f32 %v1635, %v1632
      %v1639 = vmul.f32 %v1635, %v1633
      %v1640 = vadd.f32 %v1564, %v1636
      %v1641 = vadd.f32 %v1565, %v1637
      %v1642 = vadd.f32 %v1566, %v1638
      %v1643 = vadd.f32 %v1567, %v1639
      %s1644 = sld [smem:[#allocation8 + $0x10]]
      %v1645 = vstv %s1644
      %v1646 = vmul.f32 %v1645, %v1630
      %v1647 = vmul.f32 %v1645, %v1631
      %v1648 = vmul.f32 %v1645, %v1632
      %v1649 = vmul.f32 %v1645, %v1633
      %v1650 = vadd.f32 %v1574, %v1646
      %v1651 = vadd.f32 %v1575, %v1647
      %v1652 = vadd.f32 %v1576, %v1648
      %v1653 = vadd.f32 %v1577, %v1649
      %s1654 = sld [smem:[#allocation8 + $0x90]]
      %v1655 = vstv %s1654
      %v1656 = vmul.f32 %v1655, %v1630
      %v1657 = vmul.f32 %v1655, %v1631
      %v1658 = vmul.f32 %v1655, %v1632
      %v1659 = vmul.f32 %v1655, %v1633
      %v1660 = vadd.f32 %v1584, %v1656
      %v1661 = vadd.f32 %v1585, %v1657
      %v1662 = vadd.f32 %v1586, %v1658
      %v1663 = vadd.f32 %v1587, %v1659
      %s1664 = sld [smem:[#allocation8 + $0x110]]
      %v1665 = vstv %s1664
      %v1666 = vmul.f32 %v1665, %v1630
      %v1667 = vmul.f32 %v1665, %v1631
      %v1668 = vmul.f32 %v1665, %v1632
      %v1669 = vmul.f32 %v1665, %v1633
      %v1670 = vadd.f32 %v1594, %v1666
      %v1671 = vadd.f32 %v1595, %v1667
      %v1672 = vadd.f32 %v1596, %v1668
      %v1673 = vadd.f32 %v1597, %v1669
      %s1674 = sld [smem:[#allocation3 + $0x11]]
      %v1675 = vstv %s1674
      %v1676 = vmul.f32 %v1675, %v298
      %v1677 = vmul.f32 %v1675, %v299
      %v1678 = vmul.f32 %v1675, %v300
      %v1679 = vmul.f32 %v1675, %v301
      %s1680 = sld [smem:[#allocation3 + $0x91]]
      %v1681 = vstv %s1680
      %v1682 = vmul.f32 %v1681, %v346
      %v1683 = vmul.f32 %v1681, %v347
      %v1684 = vmul.f32 %v1681, %v348
      %v1685 = vmul.f32 %v1681, %v349
      %v1686 = vadd.f32 %v1676, %v1682
      %v1687 = vadd.f32 %v1677, %v1683
      %v1688 = vadd.f32 %v1678, %v1684
      %v1689 = vadd.f32 %v1679, %v1685
      %s1690 = sld [smem:[#allocation3 + $0x111]]
      %v1691 = vstv %s1690
      %v1692 = vmul.f32 %v1691, %v394
      %v1693 = vmul.f32 %v1691, %v395
      %v1694 = vmul.f32 %v1691, %v396
      %v1695 = vmul.f32 %v1691, %v397
      %v1696 = vadd.f32 %v1686, %v1692
      %v1697 = vadd.f32 %v1687, %v1693
      %v1698 = vadd.f32 %v1688, %v1694
      %v1699 = vadd.f32 %v1689, %v1695
      %s1700 = sld [smem:[#allocation5 + $0x11]]
      %v1701 = vstv %s1700
      %v1702 = vadd.f32 %v1696, %v1701
      %v1703 = vadd.f32 %v1697, %v1701
      %v1704 = vadd.f32 %v1698, %v1701
      %v1705 = vadd.f32 %v1699, %v1701
      %v1706 = vmax.f32 %v1702, 0.0
      %v1707 = vmax.f32 %v1703, 0.0
      %v1708 = vmax.f32 %v1704, 0.0
      %v1709 = vmax.f32 %v1705, 0.0
      %s1710 = sld [smem:[#allocation7 + $0x11]]
      %v1711 = vstv %s1710
      %v1712 = vmul.f32 %v1711, %v1706
      %v1713 = vmul.f32 %v1711, %v1707
      %v1714 = vmul.f32 %v1711, %v1708
      %v1715 = vmul.f32 %v1711, %v1709
      %v1716 = vadd.f32 %v1640, %v1712
      %v1717 = vadd.f32 %v1641, %v1713
      %v1718 = vadd.f32 %v1642, %v1714
      %v1719 = vadd.f32 %v1643, %v1715
      %s1720 = sld [smem:[#allocation8 + $0x11]]
      %v1721 = vstv %s1720
      %v1722 = vmul.f32 %v1721, %v1706
      %v1723 = vmul.f32 %v1721, %v1707
      %v1724 = vmul.f32 %v1721, %v1708
      %v1725 = vmul.f32 %v1721, %v1709
      %v1726 = vadd.f32 %v1650, %v1722
      %v1727 = vadd.f32 %v1651, %v1723
      %v1728 = vadd.f32 %v1652, %v1724
      %v1729 = vadd.f32 %v1653, %v1725
      %s1730 = sld [smem:[#allocation8 + $0x91]]
      %v1731 = vstv %s1730
      %v1732 = vmul.f32 %v1731, %v1706
      %v1733 = vmul.f32 %v1731, %v1707
      %v1734 = vmul.f32 %v1731, %v1708
      %v1735 = vmul.f32 %v1731, %v1709
      %v1736 = vadd.f32 %v1660, %v1732
      %v1737 = vadd.f32 %v1661, %v1733
      %v1738 = vadd.f32 %v1662, %v1734
      %v1739 = vadd.f32 %v1663, %v1735
      %s1740 = sld [smem:[#allocation8 + $0x111]]
      %v1741 = vstv %s1740
      %v1742 = vmul.f32 %v1741, %v1706
      %v1743 = vmul.f32 %v1741, %v1707
      %v1744 = vmul.f32 %v1741, %v1708
      %v1745 = vmul.f32 %v1741, %v1709
      %v1746 = vadd.f32 %v1670, %v1742
      %v1747 = vadd.f32 %v1671, %v1743
      %v1748 = vadd.f32 %v1672, %v1744
      %v1749 = vadd.f32 %v1673, %v1745
      %s1750 = sld [smem:[#allocation3 + $0x12]]
      %v1751 = vstv %s1750
      %v1752 = vmul.f32 %v1751, %v298
      %v1753 = vmul.f32 %v1751, %v299
      %v1754 = vmul.f32 %v1751, %v300
      %v1755 = vmul.f32 %v1751, %v301
      %s1756 = sld [smem:[#allocation3 + $0x92]]
      %v1757 = vstv %s1756
      %v1758 = vmul.f32 %v1757, %v346
      %v1759 = vmul.f32 %v1757, %v347
      %v1760 = vmul.f32 %v1757, %v348
      %v1761 = vmul.f32 %v1757, %v349
      %v1762 = vadd.f32 %v1752, %v1758
      %v1763 = vadd.f32 %v1753, %v1759
      %v1764 = vadd.f32 %v1754, %v1760
      %v1765 = vadd.f32 %v1755, %v1761
      %s1766 = sld [smem:[#allocation3 + $0x112]]
      %v1767 = vstv %s1766
      %v1768 = vmul.f32 %v1767, %v394
      %v1769 = vmul.f32 %v1767, %v395
      %v1770 = vmul.f32 %v1767, %v396
      %v1771 = vmul.f32 %v1767, %v397
      %v1772 = vadd.f32 %v1762, %v1768
      %v1773 = vadd.f32 %v1763, %v1769
      %v1774 = vadd.f32 %v1764, %v1770
      %v1775 = vadd.f32 %v1765, %v1771
      %s1776 = sld [smem:[#allocation5 + $0x12]]
      %v1777 = vstv %s1776
      %v1778 = vadd.f32 %v1772, %v1777
      %v1779 = vadd.f32 %v1773, %v1777
      %v1780 = vadd.f32 %v1774, %v1777
      %v1781 = vadd.f32 %v1775, %v1777
      %v1782 = vmax.f32 %v1778, 0.0
      %v1783 = vmax.f32 %v1779, 0.0
      %v1784 = vmax.f32 %v1780, 0.0
      %v1785 = vmax.f32 %v1781, 0.0
      %s1786 = sld [smem:[#allocation7 + $0x12]]
      %v1787 = vstv %s1786
      %v1788 = vmul.f32 %v1787, %v1782
      %v1789 = vmul.f32 %v1787, %v1783
      %v1790 = vmul.f32 %v1787, %v1784
      %v1791 = vmul.f32 %v1787, %v1785
      %v1792 = vadd.f32 %v1716, %v1788
      %v1793 = vadd.f32 %v1717, %v1789
      %v1794 = vadd.f32 %v1718, %v1790
      %v1795 = vadd.f32 %v1719, %v1791
      %s1796 = sld [smem:[#allocation8 + $0x12]]
      %v1797 = vstv %s1796
      %v1798 = vmul.f32 %v1797, %v1782
      %v1799 = vmul.f32 %v1797, %v1783
      %v1800 = vmul.f32 %v1797, %v1784
      %v1801 = vmul.f32 %v1797, %v1785
      %v1802 = vadd.f32 %v1726, %v1798
      %v1803 = vadd.f32 %v1727, %v1799
      %v1804 = vadd.f32 %v1728, %v1800
      %v1805 = vadd.f32 %v1729, %v1801
      %s1806 = sld [smem:[#allocation8 + $0x92]]
      %v1807 = vstv %s1806
      %v1808 = vmul.f32 %v1807, %v1782
      %v1809 = vmul.f32 %v1807, %v1783
      %v1810 = vmul.f32 %v1807, %v1784
      %v1811 = vmul.f32 %v1807, %v1785
      %v1812 = vadd.f32 %v1736, %v1808
      %v1813 = vadd.f32 %v1737, %v1809
      %v1814 = vadd.f32 %v1738, %v1810
      %v1815 = vadd.f32 %v1739, %v1811
      %s1816 = sld [smem:[#allocation8 + $0x112]]
      %v1817 = vstv %s1816
      %v1818 = vmul.f32 %v1817, %v1782
      %v1819 = vmul.f32 %v1817, %v1783
      %v1820 = vmul.f32 %v1817, %v1784
      %v1821 = vmul.f32 %v1817, %v1785
      %v1822 = vadd.f32 %v1746, %v1818
      %v1823 = vadd.f32 %v1747, %v1819
      %v1824 = vadd.f32 %v1748, %v1820
      %v1825 = vadd.f32 %v1749, %v1821
      %s1826 = sld [smem:[#allocation3 + $0x13]]
      %v1827 = vstv %s1826
      %v1828 = vmul.f32 %v1827, %v298
      %v1829 = vmul.f32 %v1827, %v299
      %v1830 = vmul.f32 %v1827, %v300
      %v1831 = vmul.f32 %v1827, %v301
      %s1832 = sld [smem:[#allocation3 + $0x93]]
      %v1833 = vstv %s1832
      %v1834 = vmul.f32 %v1833, %v346
      %v1835 = vmul.f32 %v1833, %v347
      %v1836 = vmul.f32 %v1833, %v348
      %v1837 = vmul.f32 %v1833, %v349
      %v1838 = vadd.f32 %v1828, %v1834
      %v1839 = vadd.f32 %v1829, %v1835
      %v1840 = vadd.f32 %v1830, %v1836
      %v1841 = vadd.f32 %v1831, %v1837
      %s1842 = sld [smem:[#allocation3 + $0x113]]
      %v1843 = vstv %s1842
      %v1844 = vmul.f32 %v1843, %v394
      %v1845 = vmul.f32 %v1843, %v395
      %v1846 = vmul.f32 %v1843, %v396
      %v1847 = vmul.f32 %v1843, %v397
      %v1848 = vadd.f32 %v1838, %v1844
      %v1849 = vadd.f32 %v1839, %v1845
      %v1850 = vadd.f32 %v1840, %v1846
      %v1851 = vadd.f32 %v1841, %v1847
      %s1852 = sld [smem:[#allocation5 + $0x13]]
      %v1853 = vstv %s1852
      %v1854 = vadd.f32 %v1848, %v1853
      %v1855 = vadd.f32 %v1849, %v1853
      %v1856 = vadd.f32 %v1850, %v1853
      %v1857 = vadd.f32 %v1851, %v1853
      %v1858 = vmax.f32 %v1854, 0.0
      %v1859 = vmax.f32 %v1855, 0.0
      %v1860 = vmax.f32 %v1856, 0.0
      %v1861 = vmax.f32 %v1857, 0.0
      %s1862 = sld [smem:[#allocation7 + $0x13]]
      %v1863 = vstv %s1862
      %v1864 = vmul.f32 %v1863, %v1858
      %v1865 = vmul.f32 %v1863, %v1859
      %v1866 = vmul.f32 %v1863, %v1860
      %v1867 = vmul.f32 %v1863, %v1861
      %v1868 = vadd.f32 %v1792, %v1864
      %v1869 = vadd.f32 %v1793, %v1865
      %v1870 = vadd.f32 %v1794, %v1866
      %v1871 = vadd.f32 %v1795, %v1867
      %s1872 = sld [smem:[#allocation8 + $0x13]]
      %v1873 = vstv %s1872
      %v1874 = vmul.f32 %v1873, %v1858
      %v1875 = vmul.f32 %v1873, %v1859
      %v1876 = vmul.f32 %v1873, %v1860
      %v1877 = vmul.f32 %v1873, %v1861
      %v1878 = vadd.f32 %v1802, %v1874
      %v1879 = vadd.f32 %v1803, %v1875
      %v1880 = vadd.f32 %v1804, %v1876
      %v1881 = vadd.f32 %v1805, %v1877
      %s1882 = sld [smem:[#allocation8 + $0x93]]
      %v1883 = vstv %s1882
      %v1884 = vmul.f32 %v1883, %v1858
      %v1885 = vmul.f32 %v1883, %v1859
      %v1886 = vmul.f32 %v1883, %v1860
      %v1887 = vmul.f32 %v1883, %v1861
      %v1888 = vadd.f32 %v1812, %v1884
      %v1889 = vadd.f32 %v1813, %v1885
      %v1890 = vadd.f32 %v1814, %v1886
      %v1891 = vadd.f32 %v1815, %v1887
      %s1892 = sld [smem:[#allocation8 + $0x113]]
      %v1893 = vstv %s1892
      %v1894 = vmul.f32 %v1893, %v1858
      %v1895 = vmul.f32 %v1893, %v1859
      %v1896 = vmul.f32 %v1893, %v1860
      %v1897 = vmul.f32 %v1893, %v1861
      %v1898 = vadd.f32 %v1822, %v1894
      %v1899 = vadd.f32 %v1823, %v1895
      %v1900 = vadd.f32 %v1824, %v1896
      %v1901 = vadd.f32 %v1825, %v1897
      %s1902 = sld [smem:[#allocation3 + $0x14]]
      %v1903 = vstv %s1902
      %v1904 = vmul.f32 %v1903, %v298
      %v1905 = vmul.f32 %v1903, %v299
      %v1906 = vmul.f32 %v1903, %v300
      %v1907 = vmul.f32 %v1903, %v301
      %s1908 = sld [smem:[#allocation3 + $0x94]]
      %v1909 = vstv %s1908
      %v1910 = vmul.f32 %v1909, %v346
      %v1911 = vmul.f32 %v1909, %v347
      %v1912 = vmul.f32 %v1909, %v348
      %v1913 = vmul.f32 %v1909, %v349
      %v1914 = vadd.f32 %v1904, %v1910
      %v1915 = vadd.f32 %v1905, %v1911
      %v1916 = vadd.f32 %v1906, %v1912
      %v1917 = vadd.f32 %v1907, %v1913
      %s1918 = sld [smem:[#allocation3 + $0x114]]
      %v1919 = vstv %s1918
      %v1920 = vmul.f32 %v1919, %v394
      %v1921 = vmul.f32 %v1919, %v395
      %v1922 = vmul.f32 %v1919, %v396
      %v1923 = vmul.f32 %v1919, %v397
      %v1924 = vadd.f32 %v1914, %v1920
      %v1925 = vadd.f32 %v1915, %v1921
      %v1926 = vadd.f32 %v1916, %v1922
      %v1927 = vadd.f32 %v1917, %v1923
      %s1928 = sld [smem:[#allocation5 + $0x14]]
      %v1929 = vstv %s1928
      %v1930 = vadd.f32 %v1924, %v1929
      %v1931 = vadd.f32 %v1925, %v1929
      %v1932 = vadd.f32 %v1926, %v1929
      %v1933 = vadd.f32 %v1927, %v1929
      %v1934 = vmax.f32 %v1930, 0.0
      %v1935 = vmax.f32 %v1931, 0.0
      %v1936 = vmax.f32 %v1932, 0.0
      %v1937 = vmax.f32 %v1933, 0.0
      %s1938 = sld [smem:[#allocation7 + $0x14]]
      %v1939 = vstv %s1938
      %v1940 = vmul.f32 %v1939, %v1934
      %v1941 = vmul.f32 %v1939, %v1935
      %v1942 = vmul.f32 %v1939, %v1936
      %v1943 = vmul.f32 %v1939, %v1937
      %v1944 = vadd.f32 %v1868, %v1940
      %v1945 = vadd.f32 %v1869, %v1941
      %v1946 = vadd.f32 %v1870, %v1942
      %v1947 = vadd.f32 %v1871, %v1943
      %s1948 = sld [smem:[#allocation8 + $0x14]]
      %v1949 = vstv %s1948
      %v1950 = vmul.f32 %v1949, %v1934
      %v1951 = vmul.f32 %v1949, %v1935
      %v1952 = vmul.f32 %v1949, %v1936
      %v1953 = vmul.f32 %v1949, %v1937
      %v1954 = vadd.f32 %v1878, %v1950
      %v1955 = vadd.f32 %v1879, %v1951
      %v1956 = vadd.f32 %v1880, %v1952
      %v1957 = vadd.f32 %v1881, %v1953
      %s1958 = sld [smem:[#allocation8 + $0x94]]
      %v1959 = vstv %s1958
      %v1960 = vmul.f32 %v1959, %v1934
      %v1961 = vmul.f32 %v1959, %v1935
      %v1962 = vmul.f32 %v1959, %v1936
      %v1963 = vmul.f32 %v1959, %v1937
      %v1964 = vadd.f32 %v1888, %v1960
      %v1965 = vadd.f32 %v1889, %v1961
      %v1966 = vadd.f32 %v1890, %v1962
      %v1967 = vadd.f32 %v1891, %v1963
      %s1968 = sld [smem:[#allocation8 + $0x114]]
      %v1969 = vstv %s1968
      %v1970 = vmul.f32 %v1969, %v1934
      %v1971 = vmul.f32 %v1969, %v1935
      %v1972 = vmul.f32 %v1969, %v1936
      %v1973 = vmul.f32 %v1969, %v1937
      %v1974 = vadd.f32 %v1898, %v1970
      %v1975 = vadd.f32 %v1899, %v1971
      %v1976 = vadd.f32 %v1900, %v1972
      %v1977 = vadd.f32 %v1901, %v1973
      %s1978 = sld [smem:[#allocation3 + $0x15]]
      %v1979 = vstv %s1978
      %v1980 = vmul.f32 %v1979, %v298
      %v1981 = vmul.f32 %v1979, %v299
      %v1982 = vmul.f32 %v1979, %v300
      %v1983 = vmul.f32 %v1979, %v301
      %s1984 = sld [smem:[#allocation3 + $0x95]]
      %v1985 = vstv %s1984
      %v1986 = vmul.f32 %v1985, %v346
      %v1987 = vmul.f32 %v1985, %v347
      %v1988 = vmul.f32 %v1985, %v348
      %v1989 = vmul.f32 %v1985, %v349
      %v1990 = vadd.f32 %v1980, %v1986
      %v1991 = vadd.f32 %v1981, %v1987
      %v1992 = vadd.f32 %v1982, %v1988
      %v1993 = vadd.f32 %v1983, %v1989
      %s1994 = sld [smem:[#allocation3 + $0x115]]
      %v1995 = vstv %s1994
      %v1996 = vmul.f32 %v1995, %v394
      %v1997 = vmul.f32 %v1995, %v395
      %v1998 = vmul.f32 %v1995, %v396
      %v1999 = vmul.f32 %v1995, %v397
      %v2000 = vadd.f32 %v1990, %v1996
      %v2001 = vadd.f32 %v1991, %v1997
      %v2002 = vadd.f32 %v1992, %v1998
      %v2003 = vadd.f32 %v1993, %v1999
      %s2004 = sld [smem:[#allocation5 + $0x15]]
      %v2005 = vstv %s2004
      %v2006 = vadd.f32 %v2000, %v2005
      %v2007 = vadd.f32 %v2001, %v2005
      %v2008 = vadd.f32 %v2002, %v2005
      %v2009 = vadd.f32 %v2003, %v2005
      %v2010 = vmax.f32 %v2006, 0.0
      %v2011 = vmax.f32 %v2007, 0.0
      %v2012 = vmax.f32 %v2008, 0.0
      %v2013 = vmax.f32 %v2009, 0.0
      %s2014 = sld [smem:[#allocation7 + $0x15]]
      %v2015 = vstv %s2014
      %v2016 = vmul.f32 %v2015, %v2010
      %v2017 = vmul.f32 %v2015, %v2011
      %v2018 = vmul.f32 %v2015, %v2012
      %v2019 = vmul.f32 %v2015, %v2013
      %v2020 = vadd.f32 %v1944, %v2016
      %v2021 = vadd.f32 %v1945, %v2017
      %v2022 = vadd.f32 %v1946, %v2018
      %v2023 = vadd.f32 %v1947, %v2019
      %s2024 = sld [smem:[#allocation8 + $0x15]]
      %v2025 = vstv %s2024
      %v2026 = vmul.f32 %v2025, %v2010
      %v2027 = vmul.f32 %v2025, %v2011
      %v2028 = vmul.f32 %v2025, %v2012
      %v2029 = vmul.f32 %v2025, %v2013
      %v2030 = vadd.f32 %v1954, %v2026
      %v2031 = vadd.f32 %v1955, %v2027
      %v2032 = vadd.f32 %v1956, %v2028
      %v2033 = vadd.f32 %v1957, %v2029
      %s2034 = sld [smem:[#allocation8 + $0x95]]
      %v2035 = vstv %s2034
      %v2036 = vmul.f32 %v2035, %v2010
      %v2037 = vmul.f32 %v2035, %v2011
      %v2038 = vmul.f32 %v2035, %v2012
      %v2039 = vmul.f32 %v2035, %v2013
      %v2040 = vadd.f32 %v1964, %v2036
      %v2041 = vadd.f32 %v1965, %v2037
      %v2042 = vadd.f32 %v1966, %v2038
      %v2043 = vadd.f32 %v1967, %v2039
      %s2044 = sld [smem:[#allocation8 + $0x115]]
      %v2045 = vstv %s2044
      %v2046 = vmul.f32 %v2045, %v2010
      %v2047 = vmul.f32 %v2045, %v2011
      %v2048 = vmul.f32 %v2045, %v2012
      %v2049 = vmul.f32 %v2045, %v2013
      %v2050 = vadd.f32 %v1974, %v2046
      %v2051 = vadd.f32 %v1975, %v2047
      %v2052 = vadd.f32 %v1976, %v2048
      %v2053 = vadd.f32 %v1977, %v2049
      %s2054 = sld [smem:[#allocation3 + $0x16]]
      %v2055 = vstv %s2054
      %v2056 = vmul.f32 %v2055, %v298
      %v2057 = vmul.f32 %v2055, %v299
      %v2058 = vmul.f32 %v2055, %v300
      %v2059 = vmul.f32 %v2055, %v301
      %s2060 = sld [smem:[#allocation3 + $0x96]]
      %v2061 = vstv %s2060
      %v2062 = vmul.f32 %v2061, %v346
      %v2063 = vmul.f32 %v2061, %v347
      %v2064 = vmul.f32 %v2061, %v348
      %v2065 = vmul.f32 %v2061, %v349
      %v2066 = vadd.f32 %v2056, %v2062
      %v2067 = vadd.f32 %v2057, %v2063
      %v2068 = vadd.f32 %v2058, %v2064
      %v2069 = vadd.f32 %v2059, %v2065
      %s2070 = sld [smem:[#allocation3 + $0x116]]
      %v2071 = vstv %s2070
      %v2072 = vmul.f32 %v2071, %v394
      %v2073 = vmul.f32 %v2071, %v395
      %v2074 = vmul.f32 %v2071, %v396
      %v2075 = vmul.f32 %v2071, %v397
      %v2076 = vadd.f32 %v2066, %v2072
      %v2077 = vadd.f32 %v2067, %v2073
      %v2078 = vadd.f32 %v2068, %v2074
      %v2079 = vadd.f32 %v2069, %v2075
      %s2080 = sld [smem:[#allocation5 + $0x16]]
      %v2081 = vstv %s2080
      %v2082 = vadd.f32 %v2076, %v2081
      %v2083 = vadd.f32 %v2077, %v2081
      %v2084 = vadd.f32 %v2078, %v2081
      %v2085 = vadd.f32 %v2079, %v2081
      %v2086 = vmax.f32 %v2082, 0.0
      %v2087 = vmax.f32 %v2083, 0.0
      %v2088 = vmax.f32 %v2084, 0.0
      %v2089 = vmax.f32 %v2085, 0.0
      %s2090 = sld [smem:[#allocation7 + $0x16]]
      %v2091 = vstv %s2090
      %v2092 = vmul.f32 %v2091, %v2086
      %v2093 = vmul.f32 %v2091, %v2087
      %v2094 = vmul.f32 %v2091, %v2088
      %v2095 = vmul.f32 %v2091, %v2089
      %v2096 = vadd.f32 %v2020, %v2092
      %v2097 = vadd.f32 %v2021, %v2093
      %v2098 = vadd.f32 %v2022, %v2094
      %v2099 = vadd.f32 %v2023, %v2095
      %s2100 = sld [smem:[#allocation8 + $0x16]]
      %v2101 = vstv %s2100
      %v2102 = vmul.f32 %v2101, %v2086
      %v2103 = vmul.f32 %v2101, %v2087
      %v2104 = vmul.f32 %v2101, %v2088
      %v2105 = vmul.f32 %v2101, %v2089
      %v2106 = vadd.f32 %v2030, %v2102
      %v2107 = vadd.f32 %v2031, %v2103
      %v2108 = vadd.f32 %v2032, %v2104
      %v2109 = vadd.f32 %v2033, %v2105
      %s2110 = sld [smem:[#allocation8 + $0x96]]
      %v2111 = vstv %s2110
      %v2112 = vmul.f32 %v2111, %v2086
      %v2113 = vmul.f32 %v2111, %v2087
      %v2114 = vmul.f32 %v2111, %v2088
      %v2115 = vmul.f32 %v2111, %v2089
      %v2116 = vadd.f32 %v2040, %v2112
      %v2117 = vadd.f32 %v2041, %v2113
      %v2118 = vadd.f32 %v2042, %v2114
      %v2119 = vadd.f32 %v2043, %v2115
      %s2120 = sld [smem:[#allocation8 + $0x116]]
      %v2121 = vstv %s2120
      %v2122 = vmul.f32 %v2121, %v2086
      %v2123 = vmul.f32 %v2121, %v2087
      %v2124 = vmul.f32 %v2121, %v2088
      %v2125 = vmul.f32 %v2121, %v2089
      %v2126 = vadd.f32 %v2050, %v2122
      %v2127 = vadd.f32 %v2051, %v2123
      %v2128 = vadd.f32 %v2052, %v2124
      %v2129 = vadd.f32 %v2053, %v2125
      %s2130 = sld [smem:[#allocation3 + $0x17]]
      %v2131 = vstv %s2130
      %v2132 = vmul.f32 %v2131, %v298
      %v2133 = vmul.f32 %v2131, %v299
      %v2134 = vmul.f32 %v2131, %v300
      %v2135 = vmul.f32 %v2131, %v301
      %s2136 = sld [smem:[#allocation3 + $0x97]]
      %v2137 = vstv %s2136
      %v2138 = vmul.f32 %v2137, %v346
      %v2139 = vmul.f32 %v2137, %v347
      %v2140 = vmul.f32 %v2137, %v348
      %v2141 = vmul.f32 %v2137, %v349
      %v2142 = vadd.f32 %v2132, %v2138
      %v2143 = vadd.f32 %v2133, %v2139
      %v2144 = vadd.f32 %v2134, %v2140
      %v2145 = vadd.f32 %v2135, %v2141
      %s2146 = sld [smem:[#allocation3 + $0x117]]
      %v2147 = vstv %s2146
      %v2148 = vmul.f32 %v2147, %v394
      %v2149 = vmul.f32 %v2147, %v395
      %v2150 = vmul.f32 %v2147, %v396
      %v2151 = vmul.f32 %v2147, %v397
      %v2152 = vadd.f32 %v2142, %v2148
      %v2153 = vadd.f32 %v2143, %v2149
      %v2154 = vadd.f32 %v2144, %v2150
      %v2155 = vadd.f32 %v2145, %v2151
      %s2156 = sld [smem:[#allocation5 + $0x17]]
      %v2157 = vstv %s2156
      %v2158 = vadd.f32 %v2152, %v2157
      %v2159 = vadd.f32 %v2153, %v2157
      %v2160 = vadd.f32 %v2154, %v2157
      %v2161 = vadd.f32 %v2155, %v2157
      %v2162 = vmax.f32 %v2158, 0.0
      %v2163 = vmax.f32 %v2159, 0.0
      %v2164 = vmax.f32 %v2160, 0.0
      %v2165 = vmax.f32 %v2161, 0.0
      %s2166 = sld [smem:[#allocation7 + $0x17]]
      %v2167 = vstv %s2166
      %v2168 = vmul.f32 %v2167, %v2162
      %v2169 = vmul.f32 %v2167, %v2163
      %v2170 = vmul.f32 %v2167, %v2164
      %v2171 = vmul.f32 %v2167, %v2165
      %v2172 = vadd.f32 %v2096, %v2168
      %v2173 = vadd.f32 %v2097, %v2169
      %v2174 = vadd.f32 %v2098, %v2170
      %v2175 = vadd.f32 %v2099, %v2171
      %s2176 = sld [smem:[#allocation8 + $0x17]]
      %v2177 = vstv %s2176
      %v2178 = vmul.f32 %v2177, %v2162
      %v2179 = vmul.f32 %v2177, %v2163
      %v2180 = vmul.f32 %v2177, %v2164
      %v2181 = vmul.f32 %v2177, %v2165
      %v2182 = vadd.f32 %v2106, %v2178
      %v2183 = vadd.f32 %v2107, %v2179
      %v2184 = vadd.f32 %v2108, %v2180
      %v2185 = vadd.f32 %v2109, %v2181
      %s2186 = sld [smem:[#allocation8 + $0x97]]
      %v2187 = vstv %s2186
      %v2188 = vmul.f32 %v2187, %v2162
      %v2189 = vmul.f32 %v2187, %v2163
      %v2190 = vmul.f32 %v2187, %v2164
      %v2191 = vmul.f32 %v2187, %v2165
      %v2192 = vadd.f32 %v2116, %v2188
      %v2193 = vadd.f32 %v2117, %v2189
      %v2194 = vadd.f32 %v2118, %v2190
      %v2195 = vadd.f32 %v2119, %v2191
      %s2196 = sld [smem:[#allocation8 + $0x117]]
      %v2197 = vstv %s2196
      %v2198 = vmul.f32 %v2197, %v2162
      %v2199 = vmul.f32 %v2197, %v2163
      %v2200 = vmul.f32 %v2197, %v2164
      %v2201 = vmul.f32 %v2197, %v2165
      %v2202 = vadd.f32 %v2126, %v2198
      %v2203 = vadd.f32 %v2127, %v2199
      %v2204 = vadd.f32 %v2128, %v2200
      %v2205 = vadd.f32 %v2129, %v2201
      %s2206 = sld [smem:[#allocation3 + $0x18]]
      %v2207 = vstv %s2206
      %v2208 = vmul.f32 %v2207, %v298
      %v2209 = vmul.f32 %v2207, %v299
      %v2210 = vmul.f32 %v2207, %v300
      %v2211 = vmul.f32 %v2207, %v301
      %s2212 = sld [smem:[#allocation3 + $0x98]]
      %v2213 = vstv %s2212
      %v2214 = vmul.f32 %v2213, %v346
      %v2215 = vmul.f32 %v2213, %v347
      %v2216 = vmul.f32 %v2213, %v348
      %v2217 = vmul.f32 %v2213, %v349
      %v2218 = vadd.f32 %v2208, %v2214
      %v2219 = vadd.f32 %v2209, %v2215
      %v2220 = vadd.f32 %v2210, %v2216
      %v2221 = vadd.f32 %v2211, %v2217
      %s2222 = sld [smem:[#allocation3 + $0x118]]
      %v2223 = vstv %s2222
      %v2224 = vmul.f32 %v2223, %v394
      %v2225 = vmul.f32 %v2223, %v395
      %v2226 = vmul.f32 %v2223, %v396
      %v2227 = vmul.f32 %v2223, %v397
      %v2228 = vadd.f32 %v2218, %v2224
      %v2229 = vadd.f32 %v2219, %v2225
      %v2230 = vadd.f32 %v2220, %v2226
      %v2231 = vadd.f32 %v2221, %v2227
      %s2232 = sld [smem:[#allocation5 + $0x18]]
      %v2233 = vstv %s2232
      %v2234 = vadd.f32 %v2228, %v2233
      %v2235 = vadd.f32 %v2229, %v2233
      %v2236 = vadd.f32 %v2230, %v2233
      %v2237 = vadd.f32 %v2231, %v2233
      %v2238 = vmax.f32 %v2234, 0.0
      %v2239 = vmax.f32 %v2235, 0.0
      %v2240 = vmax.f32 %v2236, 0.0
      %v2241 = vmax.f32 %v2237, 0.0
      %s2242 = sld [smem:[#allocation7 + $0x18]]
      %v2243 = vstv %s2242
      %v2244 = vmul.f32 %v2243, %v2238
      %v2245 = vmul.f32 %v2243, %v2239
      %v2246 = vmul.f32 %v2243, %v2240
      %v2247 = vmul.f32 %v2243, %v2241
      %v2248 = vadd.f32 %v2172, %v2244
      %v2249 = vadd.f32 %v2173, %v2245
      %v2250 = vadd.f32 %v2174, %v2246
      %v2251 = vadd.f32 %v2175, %v2247
      %s2252 = sld [smem:[#allocation8 + $0x18]]
      %v2253 = vstv %s2252
      %v2254 = vmul.f32 %v2253, %v2238
      %v2255 = vmul.f32 %v2253, %v2239
      %v2256 = vmul.f32 %v2253, %v2240
      %v2257 = vmul.f32 %v2253, %v2241
      %v2258 = vadd.f32 %v2182, %v2254
      %v2259 = vadd.f32 %v2183, %v2255
      %v2260 = vadd.f32 %v2184, %v2256
      %v2261 = vadd.f32 %v2185, %v2257
      %s2262 = sld [smem:[#allocation8 + $0x98]]
      %v2263 = vstv %s2262
      %v2264 = vmul.f32 %v2263, %v2238
      %v2265 = vmul.f32 %v2263, %v2239
      %v2266 = vmul.f32 %v2263, %v2240
      %v2267 = vmul.f32 %v2263, %v2241
      %v2268 = vadd.f32 %v2192, %v2264
      %v2269 = vadd.f32 %v2193, %v2265
      %v2270 = vadd.f32 %v2194, %v2266
      %v2271 = vadd.f32 %v2195, %v2267
      %s2272 = sld [smem:[#allocation8 + $0x118]]
      %v2273 = vstv %s2272
      %v2274 = vmul.f32 %v2273, %v2238
      %v2275 = vmul.f32 %v2273, %v2239
      %v2276 = vmul.f32 %v2273, %v2240
      %v2277 = vmul.f32 %v2273, %v2241
      %v2278 = vadd.f32 %v2202, %v2274
      %v2279 = vadd.f32 %v2203, %v2275
      %v2280 = vadd.f32 %v2204, %v2276
      %v2281 = vadd.f32 %v2205, %v2277
      %s2282 = sld [smem:[#allocation3 + $0x19]]
      %v2283 = vstv %s2282
      %v2284 = vmul.f32 %v2283, %v298
      %v2285 = vmul.f32 %v2283, %v299
      %v2286 = vmul.f32 %v2283, %v300
      %v2287 = vmul.f32 %v2283, %v301
      %s2288 = sld [smem:[#allocation3 + $0x99]]
      %v2289 = vstv %s2288
      %v2290 = vmul.f32 %v2289, %v346
      %v2291 = vmul.f32 %v2289, %v347
      %v2292 = vmul.f32 %v2289, %v348
      %v2293 = vmul.f32 %v2289, %v349
      %v2294 = vadd.f32 %v2284, %v2290
      %v2295 = vadd.f32 %v2285, %v2291
      %v2296 = vadd.f32 %v2286, %v2292
      %v2297 = vadd.f32 %v2287, %v2293
      %s2298 = sld [smem:[#allocation3 + $0x119]]
      %v2299 = vstv %s2298
      %v2300 = vmul.f32 %v2299, %v394
      %v2301 = vmul.f32 %v2299, %v395
      %v2302 = vmul.f32 %v2299, %v396
      %v2303 = vmul.f32 %v2299, %v397
      %v2304 = vadd.f32 %v2294, %v2300
      %v2305 = vadd.f32 %v2295, %v2301
      %v2306 = vadd.f32 %v2296, %v2302
      %v2307 = vadd.f32 %v2297, %v2303
      %s2308 = sld [smem:[#allocation5 + $0x19]]
      %v2309 = vstv %s2308
      %v2310 = vadd.f32 %v2304, %v2309
      %v2311 = vadd.f32 %v2305, %v2309
      %v2312 = vadd.f32 %v2306, %v2309
      %v2313 = vadd.f32 %v2307, %v2309
      %v2314 = vmax.f32 %v2310, 0.0
      %v2315 = vmax.f32 %v2311, 0.0
      %v2316 = vmax.f32 %v2312, 0.0
      %v2317 = vmax.f32 %v2313, 0.0
      %s2318 = sld [smem:[#allocation7 + $0x19]]
      %v2319 = vstv %s2318
      %v2320 = vmul.f32 %v2319, %v2314
      %v2321 = vmul.f32 %v2319, %v2315
      %v2322 = vmul.f32 %v2319, %v2316
      %v2323 = vmul.f32 %v2319, %v2317
      %v2324 = vadd.f32 %v2248, %v2320
      %v2325 = vadd.f32 %v2249, %v2321
      %v2326 = vadd.f32 %v2250, %v2322
      %v2327 = vadd.f32 %v2251, %v2323
      %s2328 = sld [smem:[#allocation8 + $0x19]]
      %v2329 = vstv %s2328
      %v2330 = vmul.f32 %v2329, %v2314
      %v2331 = vmul.f32 %v2329, %v2315
      %v2332 = vmul.f32 %v2329, %v2316
      %v2333 = vmul.f32 %v2329, %v2317
      %v2334 = vadd.f32 %v2258, %v2330
      %v2335 = vadd.f32 %v2259, %v2331
      %v2336 = vadd.f32 %v2260, %v2332
      %v2337 = vadd.f32 %v2261, %v2333
      %s2338 = sld [smem:[#allocation8 + $0x99]]
      %v2339 = vstv %s2338
      %v2340 = vmul.f32 %v2339, %v2314
      %v2341 = vmul.f32 %v2339, %v2315
      %v2342 = vmul.f32 %v2339, %v2316
      %v2343 = vmul.f32 %v2339, %v2317
      %v2344 = vadd.f32 %v2268, %v2340
      %v2345 = vadd.f32 %v2269, %v2341
      %v2346 = vadd.f32 %v2270, %v2342
      %v2347 = vadd.f32 %v2271, %v2343
      %s2348 = sld [smem:[#allocation8 + $0x119]]
      %v2349 = vstv %s2348
      %v2350 = vmul.f32 %v2349, %v2314
      %v2351 = vmul.f32 %v2349, %v2315
      %v2352 = vmul.f32 %v2349, %v2316
      %v2353 = vmul.f32 %v2349, %v2317
      %v2354 = vadd.f32 %v2278, %v2350
      %v2355 = vadd.f32 %v2279, %v2351
      %v2356 = vadd.f32 %v2280, %v2352
      %v2357 = vadd.f32 %v2281, %v2353
      %s2358 = sld [smem:[#allocation3 + $0x1a]]
      %v2359 = vstv %s2358
      %v2360 = vmul.f32 %v2359, %v298
      %v2361 = vmul.f32 %v2359, %v299
      %v2362 = vmul.f32 %v2359, %v300
      %v2363 = vmul.f32 %v2359, %v301
      %s2364 = sld [smem:[#allocation3 + $0x9a]]
      %v2365 = vstv %s2364
      %v2366 = vmul.f32 %v2365, %v346
      %v2367 = vmul.f32 %v2365, %v347
      %v2368 = vmul.f32 %v2365, %v348
      %v2369 = vmul.f32 %v2365, %v349
      %v2370 = vadd.f32 %v2360, %v2366
      %v2371 = vadd.f32 %v2361, %v2367
      %v2372 = vadd.f32 %v2362, %v2368
      %v2373 = vadd.f32 %v2363, %v2369
      %s2374 = sld [smem:[#allocation3 + $0x11a]]
      %v2375 = vstv %s2374
      %v2376 = vmul.f32 %v2375, %v394
      %v2377 = vmul.f32 %v2375, %v395
      %v2378 = vmul.f32 %v2375, %v396
      %v2379 = vmul.f32 %v2375, %v397
      %v2380 = vadd.f32 %v2370, %v2376
      %v2381 = vadd.f32 %v2371, %v2377
      %v2382 = vadd.f32 %v2372, %v2378
      %v2383 = vadd.f32 %v2373, %v2379
      %s2384 = sld [smem:[#allocation5 + $0x1a]]
      %v2385 = vstv %s2384
      %v2386 = vadd.f32 %v2380, %v2385
      %v2387 = vadd.f32 %v2381, %v2385
      %v2388 = vadd.f32 %v2382, %v2385
      %v2389 = vadd.f32 %v2383, %v2385
      %v2390 = vmax.f32 %v2386, 0.0
      %v2391 = vmax.f32 %v2387, 0.0
      %v2392 = vmax.f32 %v2388, 0.0
      %v2393 = vmax.f32 %v2389, 0.0
      %s2394 = sld [smem:[#allocation7 + $0x1a]]
      %v2395 = vstv %s2394
      %v2396 = vmul.f32 %v2395, %v2390
      %v2397 = vmul.f32 %v2395, %v2391
      %v2398 = vmul.f32 %v2395, %v2392
      %v2399 = vmul.f32 %v2395, %v2393
      %v2400 = vadd.f32 %v2324, %v2396
      %v2401 = vadd.f32 %v2325, %v2397
      %v2402 = vadd.f32 %v2326, %v2398
      %v2403 = vadd.f32 %v2327, %v2399
      %s2404 = sld [smem:[#allocation8 + $0x1a]]
      %v2405 = vstv %s2404
      %v2406 = vmul.f32 %v2405, %v2390
      %v2407 = vmul.f32 %v2405, %v2391
      %v2408 = vmul.f32 %v2405, %v2392
      %v2409 = vmul.f32 %v2405, %v2393
      %v2410 = vadd.f32 %v2334, %v2406
      %v2411 = vadd.f32 %v2335, %v2407
      %v2412 = vadd.f32 %v2336, %v2408
      %v2413 = vadd.f32 %v2337, %v2409
      %s2414 = sld [smem:[#allocation8 + $0x9a]]
      %v2415 = vstv %s2414
      %v2416 = vmul.f32 %v2415, %v2390
      %v2417 = vmul.f32 %v2415, %v2391
      %v2418 = vmul.f32 %v2415, %v2392
      %v2419 = vmul.f32 %v2415, %v2393
      %v2420 = vadd.f32 %v2344, %v2416
      %v2421 = vadd.f32 %v2345, %v2417
      %v2422 = vadd.f32 %v2346, %v2418
      %v2423 = vadd.f32 %v2347, %v2419
      %s2424 = sld [smem:[#allocation8 + $0x11a]]
      %v2425 = vstv %s2424
      %v2426 = vmul.f32 %v2425, %v2390
      %v2427 = vmul.f32 %v2425, %v2391
      %v2428 = vmul.f32 %v2425, %v2392
      %v2429 = vmul.f32 %v2425, %v2393
      %v2430 = vadd.f32 %v2354, %v2426
      %v2431 = vadd.f32 %v2355, %v2427
      %v2432 = vadd.f32 %v2356, %v2428
      %v2433 = vadd.f32 %v2357, %v2429
      %s2434 = sld [smem:[#allocation3 + $0x1b]]
      %v2435 = vstv %s2434
      %v2436 = vmul.f32 %v2435, %v298
      %v2437 = vmul.f32 %v2435, %v299
      %v2438 = vmul.f32 %v2435, %v300
      %v2439 = vmul.f32 %v2435, %v301
      %s2440 = sld [smem:[#allocation3 + $0x9b]]
      %v2441 = vstv %s2440
      %v2442 = vmul.f32 %v2441, %v346
      %v2443 = vmul.f32 %v2441, %v347
      %v2444 = vmul.f32 %v2441, %v348
      %v2445 = vmul.f32 %v2441, %v349
      %v2446 = vadd.f32 %v2436, %v2442
      %v2447 = vadd.f32 %v2437, %v2443
      %v2448 = vadd.f32 %v2438, %v2444
      %v2449 = vadd.f32 %v2439, %v2445
      %s2450 = sld [smem:[#allocation3 + $0x11b]]
      %v2451 = vstv %s2450
      %v2452 = vmul.f32 %v2451, %v394
      %v2453 = vmul.f32 %v2451, %v395
      %v2454 = vmul.f32 %v2451, %v396
      %v2455 = vmul.f32 %v2451, %v397
      %v2456 = vadd.f32 %v2446, %v2452
      %v2457 = vadd.f32 %v2447, %v2453
      %v2458 = vadd.f32 %v2448, %v2454
      %v2459 = vadd.f32 %v2449, %v2455
      %s2460 = sld [smem:[#allocation5 + $0x1b]]
      %v2461 = vstv %s2460
      %v2462 = vadd.f32 %v2456, %v2461
      %v2463 = vadd.f32 %v2457, %v2461
      %v2464 = vadd.f32 %v2458, %v2461
      %v2465 = vadd.f32 %v2459, %v2461
      %v2466 = vmax.f32 %v2462, 0.0
      %v2467 = vmax.f32 %v2463, 0.0
      %v2468 = vmax.f32 %v2464, 0.0
      %v2469 = vmax.f32 %v2465, 0.0
      %s2470 = sld [smem:[#allocation7 + $0x1b]]
      %v2471 = vstv %s2470
      %v2472 = vmul.f32 %v2471, %v2466
      %v2473 = vmul.f32 %v2471, %v2467
      %v2474 = vmul.f32 %v2471, %v2468
      %v2475 = vmul.f32 %v2471, %v2469
      %v2476 = vadd.f32 %v2400, %v2472
      %v2477 = vadd.f32 %v2401, %v2473
      %v2478 = vadd.f32 %v2402, %v2474
      %v2479 = vadd.f32 %v2403, %v2475
      %s2480 = sld [smem:[#allocation8 + $0x1b]]
      %v2481 = vstv %s2480
      %v2482 = vmul.f32 %v2481, %v2466
      %v2483 = vmul.f32 %v2481, %v2467
      %v2484 = vmul.f32 %v2481, %v2468
      %v2485 = vmul.f32 %v2481, %v2469
      %v2486 = vadd.f32 %v2410, %v2482
      %v2487 = vadd.f32 %v2411, %v2483
      %v2488 = vadd.f32 %v2412, %v2484
      %v2489 = vadd.f32 %v2413, %v2485
      %s2490 = sld [smem:[#allocation8 + $0x9b]]
      %v2491 = vstv %s2490
      %v2492 = vmul.f32 %v2491, %v2466
      %v2493 = vmul.f32 %v2491, %v2467
      %v2494 = vmul.f32 %v2491, %v2468
      %v2495 = vmul.f32 %v2491, %v2469
      %v2496 = vadd.f32 %v2420, %v2492
      %v2497 = vadd.f32 %v2421, %v2493
      %v2498 = vadd.f32 %v2422, %v2494
      %v2499 = vadd.f32 %v2423, %v2495
      %s2500 = sld [smem:[#allocation8 + $0x11b]]
      %v2501 = vstv %s2500
      %v2502 = vmul.f32 %v2501, %v2466
      %v2503 = vmul.f32 %v2501, %v2467
      %v2504 = vmul.f32 %v2501, %v2468
      %v2505 = vmul.f32 %v2501, %v2469
      %v2506 = vadd.f32 %v2430, %v2502
      %v2507 = vadd.f32 %v2431, %v2503
      %v2508 = vadd.f32 %v2432, %v2504
      %v2509 = vadd.f32 %v2433, %v2505
      %s2510 = sld [smem:[#allocation3 + $0x1c]]
      %v2511 = vstv %s2510
      %v2512 = vmul.f32 %v2511, %v298
      %v2513 = vmul.f32 %v2511, %v299
      %v2514 = vmul.f32 %v2511, %v300
      %v2515 = vmul.f32 %v2511, %v301
      %s2516 = sld [smem:[#allocation3 + $0x9c]]
      %v2517 = vstv %s2516
      %v2518 = vmul.f32 %v2517, %v346
      %v2519 = vmul.f32 %v2517, %v347
      %v2520 = vmul.f32 %v2517, %v348
      %v2521 = vmul.f32 %v2517, %v349
      %v2522 = vadd.f32 %v2512, %v2518
      %v2523 = vadd.f32 %v2513, %v2519
      %v2524 = vadd.f32 %v2514, %v2520
      %v2525 = vadd.f32 %v2515, %v2521
      %s2526 = sld [smem:[#allocation3 + $0x11c]]
      %v2527 = vstv %s2526
      %v2528 = vmul.f32 %v2527, %v394
      %v2529 = vmul.f32 %v2527, %v395
      %v2530 = vmul.f32 %v2527, %v396
      %v2531 = vmul.f32 %v2527, %v397
      %v2532 = vadd.f32 %v2522, %v2528
      %v2533 = vadd.f32 %v2523, %v2529
      %v2534 = vadd.f32 %v2524, %v2530
      %v2535 = vadd.f32 %v2525, %v2531
      %s2536 = sld [smem:[#allocation5 + $0x1c]]
      %v2537 = vstv %s2536
      %v2538 = vadd.f32 %v2532, %v2537
      %v2539 = vadd.f32 %v2533, %v2537
      %v2540 = vadd.f32 %v2534, %v2537
      %v2541 = vadd.f32 %v2535, %v2537
      %v2542 = vmax.f32 %v2538, 0.0
      %v2543 = vmax.f32 %v2539, 0.0
      %v2544 = vmax.f32 %v2540, 0.0
      %v2545 = vmax.f32 %v2541, 0.0
      %s2546 = sld [smem:[#allocation7 + $0x1c]]
      %v2547 = vstv %s2546
      %v2548 = vmul.f32 %v2547, %v2542
      %v2549 = vmul.f32 %v2547, %v2543
      %v2550 = vmul.f32 %v2547, %v2544
      %v2551 = vmul.f32 %v2547, %v2545
      %v2552 = vadd.f32 %v2476, %v2548
      %v2553 = vadd.f32 %v2477, %v2549
      %v2554 = vadd.f32 %v2478, %v2550
      %v2555 = vadd.f32 %v2479, %v2551
      %s2556 = sld [smem:[#allocation8 + $0x1c]]
      %v2557 = vstv %s2556
      %v2558 = vmul.f32 %v2557, %v2542
      %v2559 = vmul.f32 %v2557, %v2543
      %v2560 = vmul.f32 %v2557, %v2544
      %v2561 = vmul.f32 %v2557, %v2545
      %v2562 = vadd.f32 %v2486, %v2558
      %v2563 = vadd.f32 %v2487, %v2559
      %v2564 = vadd.f32 %v2488, %v2560
      %v2565 = vadd.f32 %v2489, %v2561
      %s2566 = sld [smem:[#allocation8 + $0x9c]]
      %v2567 = vstv %s2566
      %v2568 = vmul.f32 %v2567, %v2542
      %v2569 = vmul.f32 %v2567, %v2543
      %v2570 = vmul.f32 %v2567, %v2544
      %v2571 = vmul.f32 %v2567, %v2545
      %v2572 = vadd.f32 %v2496, %v2568
      %v2573 = vadd.f32 %v2497, %v2569
      %v2574 = vadd.f32 %v2498, %v2570
      %v2575 = vadd.f32 %v2499, %v2571
      %s2576 = sld [smem:[#allocation8 + $0x11c]]
      %v2577 = vstv %s2576
      %v2578 = vmul.f32 %v2577, %v2542
      %v2579 = vmul.f32 %v2577, %v2543
      %v2580 = vmul.f32 %v2577, %v2544
      %v2581 = vmul.f32 %v2577, %v2545
      %v2582 = vadd.f32 %v2506, %v2578
      %v2583 = vadd.f32 %v2507, %v2579
      %v2584 = vadd.f32 %v2508, %v2580
      %v2585 = vadd.f32 %v2509, %v2581
      %s2586 = sld [smem:[#allocation3 + $0x1d]]
      %v2587 = vstv %s2586
      %v2588 = vmul.f32 %v2587, %v298
      %v2589 = vmul.f32 %v2587, %v299
      %v2590 = vmul.f32 %v2587, %v300
      %v2591 = vmul.f32 %v2587, %v301
      %s2592 = sld [smem:[#allocation3 + $0x9d]]
      %v2593 = vstv %s2592
      %v2594 = vmul.f32 %v2593, %v346
      %v2595 = vmul.f32 %v2593, %v347
      %v2596 = vmul.f32 %v2593, %v348
      %v2597 = vmul.f32 %v2593, %v349
      %v2598 = vadd.f32 %v2588, %v2594
      %v2599 = vadd.f32 %v2589, %v2595
      %v2600 = vadd.f32 %v2590, %v2596
      %v2601 = vadd.f32 %v2591, %v2597
      %s2602 = sld [smem:[#allocation3 + $0x11d]]
      %v2603 = vstv %s2602
      %v2604 = vmul.f32 %v2603, %v394
      %v2605 = vmul.f32 %v2603, %v395
      %v2606 = vmul.f32 %v2603, %v396
      %v2607 = vmul.f32 %v2603, %v397
      %v2608 = vadd.f32 %v2598, %v2604
      %v2609 = vadd.f32 %v2599, %v2605
      %v2610 = vadd.f32 %v2600, %v2606
      %v2611 = vadd.f32 %v2601, %v2607
      %s2612 = sld [smem:[#allocation5 + $0x1d]]
      %v2613 = vstv %s2612
      %v2614 = vadd.f32 %v2608, %v2613
      %v2615 = vadd.f32 %v2609, %v2613
      %v2616 = vadd.f32 %v2610, %v2613
      %v2617 = vadd.f32 %v2611, %v2613
      %v2618 = vmax.f32 %v2614, 0.0
      %v2619 = vmax.f32 %v2615, 0.0
      %v2620 = vmax.f32 %v2616, 0.0
      %v2621 = vmax.f32 %v2617, 0.0
      %s2622 = sld [smem:[#allocation7 + $0x1d]]
      %v2623 = vstv %s2622
      %v2624 = vmul.f32 %v2623, %v2618
      %v2625 = vmul.f32 %v2623, %v2619
      %v2626 = vmul.f32 %v2623, %v2620
      %v2627 = vmul.f32 %v2623, %v2621
      %v2628 = vadd.f32 %v2552, %v2624
      %v2629 = vadd.f32 %v2553, %v2625
      %v2630 = vadd.f32 %v2554, %v2626
      %v2631 = vadd.f32 %v2555, %v2627
      %s2632 = sld [smem:[#allocation8 + $0x1d]]
      %v2633 = vstv %s2632
      %v2634 = vmul.f32 %v2633, %v2618
      %v2635 = vmul.f32 %v2633, %v2619
      %v2636 = vmul.f32 %v2633, %v2620
      %v2637 = vmul.f32 %v2633, %v2621
      %v2638 = vadd.f32 %v2562, %v2634
      %v2639 = vadd.f32 %v2563, %v2635
      %v2640 = vadd.f32 %v2564, %v2636
      %v2641 = vadd.f32 %v2565, %v2637
      %s2642 = sld [smem:[#allocation8 + $0x9d]]
      %v2643 = vstv %s2642
      %v2644 = vmul.f32 %v2643, %v2618
      %v2645 = vmul.f32 %v2643, %v2619
      %v2646 = vmul.f32 %v2643, %v2620
      %v2647 = vmul.f32 %v2643, %v2621
      %v2648 = vadd.f32 %v2572, %v2644
      %v2649 = vadd.f32 %v2573, %v2645
      %v2650 = vadd.f32 %v2574, %v2646
      %v2651 = vadd.f32 %v2575, %v2647
      %s2652 = sld [smem:[#allocation8 + $0x11d]]
      %v2653 = vstv %s2652
      %v2654 = vmul.f32 %v2653, %v2618
      %v2655 = vmul.f32 %v2653, %v2619
      %v2656 = vmul.f32 %v2653, %v2620
      %v2657 = vmul.f32 %v2653, %v2621
      %v2658 = vadd.f32 %v2582, %v2654
      %v2659 = vadd.f32 %v2583, %v2655
      %v2660 = vadd.f32 %v2584, %v2656
      %v2661 = vadd.f32 %v2585, %v2657
      %s2662 = sld [smem:[#allocation3 + $0x1e]]
      %v2663 = vstv %s2662
      %v2664 = vmul.f32 %v2663, %v298
      %v2665 = vmul.f32 %v2663, %v299
      %v2666 = vmul.f32 %v2663, %v300
      %v2667 = vmul.f32 %v2663, %v301
      %s2668 = sld [smem:[#allocation3 + $0x9e]]
      %v2669 = vstv %s2668
      %v2670 = vmul.f32 %v2669, %v346
      %v2671 = vmul.f32 %v2669, %v347
      %v2672 = vmul.f32 %v2669, %v348
      %v2673 = vmul.f32 %v2669, %v349
      %v2674 = vadd.f32 %v2664, %v2670
      %v2675 = vadd.f32 %v2665, %v2671
      %v2676 = vadd.f32 %v2666, %v2672
      %v2677 = vadd.f32 %v2667, %v2673
      %s2678 = sld [smem:[#allocation3 + $0x11e]]
      %v2679 = vstv %s2678
      %v2680 = vmul.f32 %v2679, %v394
      %v2681 = vmul.f32 %v2679, %v395
      %v2682 = vmul.f32 %v2679, %v396
      %v2683 = vmul.f32 %v2679, %v397
      %v2684 = vadd.f32 %v2674, %v2680
      %v2685 = vadd.f32 %v2675, %v2681
      %v2686 = vadd.f32 %v2676, %v2682
      %v2687 = vadd.f32 %v2677, %v2683
      %s2688 = sld [smem:[#allocation5 + $0x1e]]
      %v2689 = vstv %s2688
      %v2690 = vadd.f32 %v2684, %v2689
      %v2691 = vadd.f32 %v2685, %v2689
      %v2692 = vadd.f32 %v2686, %v2689
      %v2693 = vadd.f32 %v2687, %v2689
      %v2694 = vmax.f32 %v2690, 0.0
      %v2695 = vmax.f32 %v2691, 0.0
      %v2696 = vmax.f32 %v2692, 0.0
      %v2697 = vmax.f32 %v2693, 0.0
      %s2698 = sld [smem:[#allocation7 + $0x1e]]
      %v2699 = vstv %s2698
      %v2700 = vmul.f32 %v2699, %v2694
      %v2701 = vmul.f32 %v2699, %v2695
      %v2702 = vmul.f32 %v2699, %v2696
      %v2703 = vmul.f32 %v2699, %v2697
      %v2704 = vadd.f32 %v2628, %v2700
      %v2705 = vadd.f32 %v2629, %v2701
      %v2706 = vadd.f32 %v2630, %v2702
      %v2707 = vadd.f32 %v2631, %v2703
      %s2708 = sld [smem:[#allocation8 + $0x1e]]
      %v2709 = vstv %s2708
      %v2710 = vmul.f32 %v2709, %v2694
      %v2711 = vmul.f32 %v2709, %v2695
      %v2712 = vmul.f32 %v2709, %v2696
      %v2713 = vmul.f32 %v2709, %v2697
      %v2714 = vadd.f32 %v2638, %v2710
      %v2715 = vadd.f32 %v2639, %v2711
      %v2716 = vadd.f32 %v2640, %v2712
      %v2717 = vadd.f32 %v2641, %v2713
      %s2718 = sld [smem:[#allocation8 + $0x9e]]
      %v2719 = vstv %s2718
      %v2720 = vmul.f32 %v2719, %v2694
      %v2721 = vmul.f32 %v2719, %v2695
      %v2722 = vmul.f32 %v2719, %v2696
      %v2723 = vmul.f32 %v2719, %v2697
      %v2724 = vadd.f32 %v2648, %v2720
      %v2725 = vadd.f32 %v2649, %v2721
      %v2726 = vadd.f32 %v2650, %v2722
      %v2727 = vadd.f32 %v2651, %v2723
      %s2728 = sld [smem:[#allocation8 + $0x11e]]
      %v2729 = vstv %s2728
      %v2730 = vmul.f32 %v2729, %v2694
      %v2731 = vmul.f32 %v2729, %v2695
      %v2732 = vmul.f32 %v2729, %v2696
      %v2733 = vmul.f32 %v2729, %v2697
      %v2734 = vadd.f32 %v2658, %v2730
      %v2735 = vadd.f32 %v2659, %v2731
      %v2736 = vadd.f32 %v2660, %v2732
      %v2737 = vadd.f32 %v2661, %v2733
      %s2738 = sld [smem:[#allocation3 + $0x1f]]
      %v2739 = vstv %s2738
      %v2740 = vmul.f32 %v2739, %v298
      %v2741 = vmul.f32 %v2739, %v299
      %v2742 = vmul.f32 %v2739, %v300
      %v2743 = vmul.f32 %v2739, %v301
      %s2744 = sld [smem:[#allocation3 + $0x9f]]
      %v2745 = vstv %s2744
      %v2746 = vmul.f32 %v2745, %v346
      %v2747 = vmul.f32 %v2745, %v347
      %v2748 = vmul.f32 %v2745, %v348
      %v2749 = vmul.f32 %v2745, %v349
      %v2750 = vadd.f32 %v2740, %v2746
      %v2751 = vadd.f32 %v2741, %v2747
      %v2752 = vadd.f32 %v2742, %v2748
      %v2753 = vadd.f32 %v2743, %v2749
      %s2754 = sld [smem:[#allocation3 + $0x11f]]
      %v2755 = vstv %s2754
      %v2756 = vmul.f32 %v2755, %v394
      %v2757 = vmul.f32 %v2755, %v395
      %v2758 = vmul.f32 %v2755, %v396
      %v2759 = vmul.f32 %v2755, %v397
      %v2760 = vadd.f32 %v2750, %v2756
      %v2761 = vadd.f32 %v2751, %v2757
      %v2762 = vadd.f32 %v2752, %v2758
      %v2763 = vadd.f32 %v2753, %v2759
      %s2764 = sld [smem:[#allocation5 + $0x1f]]
      %v2765 = vstv %s2764
      %v2766 = vadd.f32 %v2760, %v2765
      %v2767 = vadd.f32 %v2761, %v2765
      %v2768 = vadd.f32 %v2762, %v2765
      %v2769 = vadd.f32 %v2763, %v2765
      %v2770 = vmax.f32 %v2766, 0.0
      %v2771 = vmax.f32 %v2767, 0.0
      %v2772 = vmax.f32 %v2768, 0.0
      %v2773 = vmax.f32 %v2769, 0.0
      %s2774 = sld [smem:[#allocation7 + $0x1f]]
      %v2775 = vstv %s2774
      %v2776 = vmul.f32 %v2775, %v2770
      %v2777 = vmul.f32 %v2775, %v2771
      %v2778 = vmul.f32 %v2775, %v2772
      %v2779 = vmul.f32 %v2775, %v2773
      %v2780 = vadd.f32 %v2704, %v2776
      %v2781 = vadd.f32 %v2705, %v2777
      %v2782 = vadd.f32 %v2706, %v2778
      %v2783 = vadd.f32 %v2707, %v2779
      %s2784 = sld [smem:[#allocation8 + $0x1f]]
      %v2785 = vstv %s2784
      %v2786 = vmul.f32 %v2785, %v2770
      %v2787 = vmul.f32 %v2785, %v2771
      %v2788 = vmul.f32 %v2785, %v2772
      %v2789 = vmul.f32 %v2785, %v2773
      %v2790 = vadd.f32 %v2714, %v2786
      %v2791 = vadd.f32 %v2715, %v2787
      %v2792 = vadd.f32 %v2716, %v2788
      %v2793 = vadd.f32 %v2717, %v2789
      %s2794 = sld [smem:[#allocation8 + $0x9f]]
      %v2795 = vstv %s2794
      %v2796 = vmul.f32 %v2795, %v2770
      %v2797 = vmul.f32 %v2795, %v2771
      %v2798 = vmul.f32 %v2795, %v2772
      %v2799 = vmul.f32 %v2795, %v2773
      %v2800 = vadd.f32 %v2724, %v2796
      %v2801 = vadd.f32 %v2725, %v2797
      %v2802 = vadd.f32 %v2726, %v2798
      %v2803 = vadd.f32 %v2727, %v2799
      %s2804 = sld [smem:[#allocation8 + $0x11f]]
      %v2805 = vstv %s2804
      %v2806 = vmul.f32 %v2805, %v2770
      %v2807 = vmul.f32 %v2805, %v2771
      %v2808 = vmul.f32 %v2805, %v2772
      %v2809 = vmul.f32 %v2805, %v2773
      %v2810 = vadd.f32 %v2734, %v2806
      %v2811 = vadd.f32 %v2735, %v2807
      %v2812 = vadd.f32 %v2736, %v2808
      %v2813 = vadd.f32 %v2737, %v2809
      %s2814 = sld [smem:[#allocation2]]
      %v2815 = vstv %s2814
      %v2816 = vadd.f32 %v2780, %v2815
      %v2817 = vadd.f32 %v2781, %v2815
      %v2818 = vadd.f32 %v2782, %v2815
      %v2819 = vadd.f32 %v2783, %v2815
      %v2820 = vmin.f32 %v2816, 30.0
      %v2821 = vmin.f32 %v2817, 30.0
      %v2822 = vmin.f32 %v2818, 30.0
      %v2823 = vmin.f32 %v2819, 30.0
      %vm2824 = vcmp.gt.f32.partialorder %v2816, 30.0
      %vm2825 = vcmp.gt.f32.partialorder %v2817, 30.0
      %vm2826 = vcmp.gt.f32.partialorder %v2818, 30.0
      %vm2827 = vcmp.gt.f32.partialorder %v2819, 30.0
      %v2828 = vmul.f32 %v2820, 1.442695
      %v2829 = vpow.pop %v2828
      %v2830 = vmul.f32 %v2821, 1.442695
      %v2831 = vpow.pop %v2830
      %v2832 = vmul.f32 %v2822, 1.442695
      %v2833 = vpow.pop %v2832
      %v2834 = vmul.f32 %v2823, 1.442695
      %v2835 = vpow.pop %v2834
      %v2836 = vadd.f32 %v2829, 1.0
      %v2837 = vadd.f32 %v2831, 1.0
      %v2838 = vadd.f32 %v2833, 1.0
      %v2839 = vadd.f32 %v2835, 1.0
      %v2840 = vlog2.pop %v2836
      %v2841 = vmul.f32 %v2840, 0.6931472
      %v2842 = vlog2.pop %v2837
      %v2843 = vmul.f32 %v2842, 0.6931472
      %v2844 = vlog2.pop %v2838
      %v2845 = vmul.f32 %v2844, 0.6931472
      %v2846 = vlog2.pop %v2839
      %v2847 = vmul.f32 %v2846, 0.6931472
      %v2848 = vsel %vm2824, %v2816, %v2841
      %v2849 = vsel %vm2825, %v2817, %v2843
      %v2850 = vsel %vm2826, %v2818, %v2845
      %v2851 = vsel %vm2827, %v2819, %v2847
      %s2852 = sld [smem:[#allocation11]]
      %v2853 = vstv %s2852
      %v2854 = vmul.f32 %v118, %v2853
      %v2855 = vmul.f32 %v119, %v2853
      %v2856 = vmul.f32 %v120, %v2853
      %v2857 = vmul.f32 %v121, %v2853
      %s2858 = sld [smem:[#allocation11 + $0x80]]
      %v2859 = vstv %s2858
      %v2860 = vmul.f32 %v118, %v2859
      %v2861 = vmul.f32 %v119, %v2859
      %v2862 = vmul.f32 %v120, %v2859
      %v2863 = vmul.f32 %v121, %v2859
      %2868 = vrot.lane.b32.xlu0 %v2860, 127
      %v2869 = vpop.permute.xlu0 %2868
      %2870 = vrot.lane.b32.xlu0 %v2861, 127
      %v2871 = vpop.permute.xlu0 %2870
      %2872 = vrot.lane.b32.xlu0 %v2862, 127
      %v2873 = vpop.permute.xlu0 %2872
      %2874 = vrot.lane.b32.xlu0 %v2863, 127
      %v2875 = vpop.permute.xlu0 %2874
      %v2880 = vadd.f32 %v2854, %v2869
      %v2881 = vadd.f32 %v2855, %v2871
      %v2882 = vadd.f32 %v2856, %v2873
      %v2883 = vadd.f32 %v2857, %v2875
      %s2884 = sld [smem:[#allocation11 + $0x100]]
      %v2885 = vstv %s2884
      %v2886 = vmul.f32 %v118, %v2885
      %v2887 = vmul.f32 %v119, %v2885
      %v2888 = vmul.f32 %v120, %v2885
      %v2889 = vmul.f32 %v121, %v2885
      %2894 = vrot.lane.b32.xlu0 %v2886, 126
      %v2895 = vpop.permute.xlu0 %2894
      %2896 = vrot.lane.b32.xlu0 %v2887, 126
      %v2897 = vpop.permute.xlu0 %2896
      %2898 = vrot.lane.b32.xlu0 %v2888, 126
      %v2899 = vpop.permute.xlu0 %2898
      %2900 = vrot.lane.b32.xlu0 %v2889, 126
      %v2901 = vpop.permute.xlu0 %2900
      %v2906 = vadd.f32 %v2880, %v2895
      %v2907 = vadd.f32 %v2881, %v2897
      %v2908 = vadd.f32 %v2882, %v2899
      %v2909 = vadd.f32 %v2883, %v2901
      %2911 = vset.pattern.permute.xlu0 3
      %2912 = vperm.xlu0 %2911, %v2906
      %v2913 = vpop.permute.xlu0 %2912
      %2916 = vset.pattern.permute.xlu0 3
      %2917 = vperm.xlu0 %2916, %v2907
      %v2918 = vpop.permute.xlu0 %2917
      %2921 = vset.pattern.permute.xlu0 3
      %2922 = vperm.xlu0 %2921, %v2908
      %v2923 = vpop.permute.xlu0 %2922
      %2926 = vset.pattern.permute.xlu0 3
      %2927 = vperm.xlu0 %2926, %v2909
      %v2928 = vpop.permute.xlu0 %2927
      %v2930 = vadd.f32 %v2790, %v2913
      %v2931 = vadd.f32 %v2791, %v2918
      %v2932 = vadd.f32 %v2792, %v2923
      %v2933 = vadd.f32 %v2793, %v2928
      %s2934 = sld [smem:[#allocation10]]
      %v2935 = vstv %s2934
      %v2936 = vadd.f32 %v2930, %v2935
      %v2937 = vadd.f32 %v2931, %v2935
      %v2938 = vadd.f32 %v2932, %v2935
      %v2939 = vadd.f32 %v2933, %v2935
      %v2940 = vsub.f32 0.0, %v2936
      %v2941 = vsub.f32 0.0, %v2937
      %v2942 = vsub.f32 0.0, %v2938
      %v2943 = vsub.f32 0.0, %v2939
      %v2944 = vmul.f32 %v2940, 1.442695
      %v2945 = vpow.pop %v2944
      %v2946 = vmul.f32 %v2941, 1.442695
      %v2947 = vpow.pop %v2946
      %v2948 = vmul.f32 %v2942, 1.442695
      %v2949 = vpow.pop %v2948
      %v2950 = vmul.f32 %v2943, 1.442695
      %v2951 = vpow.pop %v2950
      %v2952 = vadd.f32 %v2945, 1.0
      %v2953 = vadd.f32 %v2947, 1.0
      %v2954 = vadd.f32 %v2949, 1.0
      %v2955 = vadd.f32 %v2951, 1.0
      %v2956 = vrcp.pop %v2952
      %v2957 = vrcp.pop %v2953
      %v2958 = vrcp.pop %v2954
      %v2959 = vrcp.pop %v2955
      %s2960 = sld [smem:[#allocation11 + $0x1]]
      %v2961 = vstv %s2960
      %v2962 = vmul.f32 %v118, %v2961
      %v2963 = vmul.f32 %v119, %v2961
      %v2964 = vmul.f32 %v120, %v2961
      %v2965 = vmul.f32 %v121, %v2961
      %s2966 = sld [smem:[#allocation11 + $0x81]]
      %v2967 = vstv %s2966
      %v2968 = vmul.f32 %v118, %v2967
      %v2969 = vmul.f32 %v119, %v2967
      %v2970 = vmul.f32 %v120, %v2967
      %v2971 = vmul.f32 %v121, %v2967
      %2976 = vrot.lane.b32.xlu0 %v2968, 127
      %v2977 = vpop.permute.xlu0 %2976
      %2978 = vrot.lane.b32.xlu0 %v2969, 127
      %v2979 = vpop.permute.xlu0 %2978
      %2980 = vrot.lane.b32.xlu0 %v2970, 127
      %v2981 = vpop.permute.xlu0 %2980
      %2982 = vrot.lane.b32.xlu0 %v2971, 127
      %v2983 = vpop.permute.xlu0 %2982
      %v2988 = vadd.f32 %v2962, %v2977
      %v2989 = vadd.f32 %v2963, %v2979
      %v2990 = vadd.f32 %v2964, %v2981
      %v2991 = vadd.f32 %v2965, %v2983
      %s2992 = sld [smem:[#allocation11 + $0x101]]
      %v2993 = vstv %s2992
      %v2994 = vmul.f32 %v118, %v2993
      %v2995 = vmul.f32 %v119, %v2993
      %v2996 = vmul.f32 %v120, %v2993
      %v2997 = vmul.f32 %v121, %v2993
      %3002 = vrot.lane.b32.xlu0 %v2994, 126
      %v3003 = vpop.permute.xlu0 %3002
      %3004 = vrot.lane.b32.xlu0 %v2995, 126
      %v3005 = vpop.permute.xlu0 %3004
      %3006 = vrot.lane.b32.xlu0 %v2996, 126
      %v3007 = vpop.permute.xlu0 %3006
      %3008 = vrot.lane.b32.xlu0 %v2997, 126
      %v3009 = vpop.permute.xlu0 %3008
      %v3014 = vadd.f32 %v2988, %v3003
      %v3015 = vadd.f32 %v2989, %v3005
      %v3016 = vadd.f32 %v2990, %v3007
      %v3017 = vadd.f32 %v2991, %v3009
      %3019 = vset.pattern.permute.xlu0 3
      %3020 = vperm.xlu0 %3019, %v3014
      %v3021 = vpop.permute.xlu0 %3020
      %3024 = vset.pattern.permute.xlu0 3
      %3025 = vperm.xlu0 %3024, %v3015
      %v3026 = vpop.permute.xlu0 %3025
      %3029 = vset.pattern.permute.xlu0 3
      %3030 = vperm.xlu0 %3029, %v3016
      %v3031 = vpop.permute.xlu0 %3030
      %3034 = vset.pattern.permute.xlu0 3
      %3035 = vperm.xlu0 %3034, %v3017
      %v3036 = vpop.permute.xlu0 %3035
      %v3038 = vadd.f32 %v2800, %v3021
      %v3039 = vadd.f32 %v2801, %v3026
      %v3040 = vadd.f32 %v2802, %v3031
      %v3041 = vadd.f32 %v2803, %v3036
      %s3042 = sld [smem:[#allocation10 + $0x1]]
      %v3043 = vstv %s3042
      %v3044 = vadd.f32 %v3038, %v3043
      %v3045 = vadd.f32 %v3039, %v3043
      %v3046 = vadd.f32 %v3040, %v3043
      %v3047 = vadd.f32 %v3041, %v3043
      %v3048 = vsub.f32 0.0, %v3044
      %v3049 = vsub.f32 0.0, %v3045
      %v3050 = vsub.f32 0.0, %v3046
      %v3051 = vsub.f32 0.0, %v3047
      %v3052 = vmul.f32 %v3048, 1.442695
      %v3053 = vpow.pop %v3052
      %v3054 = vmul.f32 %v3049, 1.442695
      %v3055 = vpow.pop %v3054
      %v3056 = vmul.f32 %v3050, 1.442695
      %v3057 = vpow.pop %v3056
      %v3058 = vmul.f32 %v3051, 1.442695
      %v3059 = vpow.pop %v3058
      %v3060 = vadd.f32 %v3053, 1.0
      %v3061 = vadd.f32 %v3055, 1.0
      %v3062 = vadd.f32 %v3057, 1.0
      %v3063 = vadd.f32 %v3059, 1.0
      %v3064 = vrcp.pop %v3060
      %v3065 = vrcp.pop %v3061
      %v3066 = vrcp.pop %v3062
      %v3067 = vrcp.pop %v3063
      %s3068 = sld [smem:[#allocation11 + $0x2]]
      %v3069 = vstv %s3068
      %v3070 = vmul.f32 %v118, %v3069
      %v3071 = vmul.f32 %v119, %v3069
      %v3072 = vmul.f32 %v120, %v3069
      %v3073 = vmul.f32 %v121, %v3069
      %s3074 = sld [smem:[#allocation11 + $0x82]]
      %v3075 = vstv %s3074
      %v3076 = vmul.f32 %v118, %v3075
      %v3077 = vmul.f32 %v119, %v3075
      %v3078 = vmul.f32 %v120, %v3075
      %v3079 = vmul.f32 %v121, %v3075
      %3084 = vrot.lane.b32.xlu0 %v3076, 127
      %v3085 = vpop.permute.xlu0 %3084
      %3086 = vrot.lane.b32.xlu0 %v3077, 127
      %v3087 = vpop.permute.xlu0 %3086
      %3088 = vrot.lane.b32.xlu0 %v3078, 127
      %v3089 = vpop.permute.xlu0 %3088
      %3090 = vrot.lane.b32.xlu0 %v3079, 127
      %v3091 = vpop.permute.xlu0 %3090
      %v3096 = vadd.f32 %v3070, %v3085
      %v3097 = vadd.f32 %v3071, %v3087
      %v3098 = vadd.f32 %v3072, %v3089
      %v3099 = vadd.f32 %v3073, %v3091
      %s3100 = sld [smem:[#allocation11 + $0x102]]
      %v3101 = vstv %s3100
      %v3102 = vmul.f32 %v118, %v3101
      %v3103 = vmul.f32 %v119, %v3101
      %v3104 = vmul.f32 %v120, %v3101
      %v3105 = vmul.f32 %v121, %v3101
      %3110 = vrot.lane.b32.xlu0 %v3102, 126
      %v3111 = vpop.permute.xlu0 %3110
      %3112 = vrot.lane.b32.xlu0 %v3103, 126
      %v3113 = vpop.permute.xlu0 %3112
      %3114 = vrot.lane.b32.xlu0 %v3104, 126
      %v3115 = vpop.permute.xlu0 %3114
      %3116 = vrot.lane.b32.xlu0 %v3105, 126
      %v3117 = vpop.permute.xlu0 %3116
      %v3122 = vadd.f32 %v3096, %v3111
      %v3123 = vadd.f32 %v3097, %v3113
      %v3124 = vadd.f32 %v3098, %v3115
      %v3125 = vadd.f32 %v3099, %v3117
      %3127 = vset.pattern.permute.xlu0 3
      %3128 = vperm.xlu0 %3127, %v3122
      %v3129 = vpop.permute.xlu0 %3128
      %3132 = vset.pattern.permute.xlu0 3
      %3133 = vperm.xlu0 %3132, %v3123
      %v3134 = vpop.permute.xlu0 %3133
      %3137 = vset.pattern.permute.xlu0 3
      %3138 = vperm.xlu0 %3137, %v3124
      %v3139 = vpop.permute.xlu0 %3138
      %3142 = vset.pattern.permute.xlu0 3
      %3143 = vperm.xlu0 %3142, %v3125
      %v3144 = vpop.permute.xlu0 %3143
      %v3146 = vadd.f32 %v2810, %v3129
      %v3147 = vadd.f32 %v2811, %v3134
      %v3148 = vadd.f32 %v2812, %v3139
      %v3149 = vadd.f32 %v2813, %v3144
      %s3150 = sld [smem:[#allocation10 + $0x2]]
      %v3151 = vstv %s3150
      %v3152 = vadd.f32 %v3146, %v3151
      %v3153 = vadd.f32 %v3147, %v3151
      %v3154 = vadd.f32 %v3148, %v3151
      %v3155 = vadd.f32 %v3149, %v3151
      %v3156 = vsub.f32 0.0, %v3152
      %v3157 = vsub.f32 0.0, %v3153
      %v3158 = vsub.f32 0.0, %v3154
      %v3159 = vsub.f32 0.0, %v3155
      %v3160 = vmul.f32 %v3156, 1.442695
      %v3161 = vpow.pop %v3160
      %v3162 = vmul.f32 %v3157, 1.442695
      %v3163 = vpow.pop %v3162
      %v3164 = vmul.f32 %v3158, 1.442695
      %v3165 = vpow.pop %v3164
      %v3166 = vmul.f32 %v3159, 1.442695
      %v3167 = vpow.pop %v3166
      %v3168 = vadd.f32 %v3161, 1.0
      %v3169 = vadd.f32 %v3163, 1.0
      %v3170 = vadd.f32 %v3165, 1.0
      %v3171 = vadd.f32 %v3167, 1.0
      %v3172 = vrcp.pop %v3168
      %v3173 = vrcp.pop %v3169
      %v3174 = vrcp.pop %v3170
      %v3175 = vrcp.pop %v3171
      %v3176 = vmul.f32 %v205, %v109
      %v3177 = vmul.f32 %v210, %v109
      %v3178 = vmul.f32 %v215, %v109
      %v3179 = vmul.f32 %v220, %v109
      %v3180 = vmul.f32 %v3176, %v2848
      %v3181 = vmul.f32 %v3177, %v2849
      %v3182 = vmul.f32 %v3178, %v2850
      %v3183 = vmul.f32 %v3179, %v2851
      %v3184 = vsub.f32 0.0, %v3180
      %v3185 = vsub.f32 0.0, %v3181
      %v3186 = vsub.f32 0.0, %v3182
      %v3187 = vsub.f32 0.0, %v3183
      %v3188 = vmul.f32 %v3184, 1.442695
      %v3189 = vpow.pop %v3188
      %v3190 = vmul.f32 %v3185, 1.442695
      %v3191 = vpow.pop %v3190
      %v3192 = vmul.f32 %v3186, 1.442695
      %v3193 = vpow.pop %v3192
      %v3194 = vmul.f32 %v3187, 1.442695
      %v3195 = vpow.pop %v3194
      %v3196 = vsub.f32 1.0, %v3189
      %v3197 = vsub.f32 1.0, %v3191
      %v3198 = vsub.f32 1.0, %v3193
      %v3199 = vsub.f32 1.0, %v3195
      %v3200 = vld [vmem:[%s1] sm:$0xff]
      %v3201 = vld [vmem:[%s1 + $0x8] sm:$0xff]
      %v3202 = vld [vmem:[%s1 + $0x10] sm:$0xff]
      %v3203 = vld [vmem:[%s1 + $0x18] sm:$0xff]
      %v3204 = vld [vmem:[%s1 + $0x20] sm:$0xff]
      %v3205 = vld [vmem:[%s1 + $0x28] sm:$0xff]
      %v3206 = vld [vmem:[%s1 + $0x30] sm:$0xff]
      %v3207 = vld [vmem:[%s1 + $0x38] sm:$0xff]
      %v3208 = vld [vmem:[%s1 + $0x40] sm:$0xff]
      %v3209 = vld [vmem:[%s1 + $0x48] sm:$0xff]
      %v3210 = vld [vmem:[%s1 + $0x50] sm:$0xff]
      %v3211 = vld [vmem:[%s1 + $0x58] sm:$0xff]
      %v3212 = vld [vmem:[%s1 + $0x60] sm:$0xff]
      %v3213 = vld [vmem:[%s1 + $0x68] sm:$0xff]
      %v3214 = vld [vmem:[%s1 + $0x70] sm:$0xff]
      %v3215 = vld [vmem:[%s1 + $0x78] sm:$0xff]
      %3216 = vmatprep.subr.mxu0 0.0
      %3217 = vmatpush1.msra.mxu0 %v3200
      %3218 = vmatprep.subr.mxu0 0.0
      %3219 = vmatpush1.msra.mxu0 %v3201
      %3220 = vmatprep.subr.mxu0 0.0
      %3221 = vmatpush1.msra.mxu0 %v3202
      %3222 = vmatprep.subr.mxu0 0.0
      %3223 = vmatpush1.msra.mxu0 %v3203
      %3224 = vmatprep.subr.mxu0 0.0
      %3225 = vmatpush1.msra.mxu0 %v3204
      %3226 = vmatprep.subr.mxu0 0.0
      %3227 = vmatpush1.msra.mxu0 %v3205
      %3228 = vmatprep.subr.mxu0 0.0
      %3229 = vmatpush1.msra.mxu0 %v3206
      %3230 = vmatprep.subr.mxu0 0.0
      %3231 = vmatpush1.msra.mxu0 %v3207
      %3232 = vmatprep.subr.mxu0 0.0
      %3233 = vmatpush1.msra.mxu0 %v3208
      %3234 = vmatprep.subr.mxu0 0.0
      %3235 = vmatpush1.msra.mxu0 %v3209
      %3236 = vmatprep.subr.mxu0 0.0
      %3237 = vmatpush1.msra.mxu0 %v3210
      %3238 = vmatprep.subr.mxu0 0.0
      %3239 = vmatpush1.msra.mxu0 %v3211
      %3240 = vmatprep.subr.mxu0 0.0
      %3241 = vmatpush1.msra.mxu0 %v3212
      %3242 = vmatprep.subr.mxu0 0.0
      %3243 = vmatpush1.msra.mxu0 %v3213
      %3244 = vmatprep.subr.mxu0 0.0
      %3245 = vmatpush1.msra.mxu0 %v3214
      %3246 = vmatprep.subr.mxu0 0.0
      %3247 = vmatpush1.msra.mxu0 %v3215
      %3248 = vmatprep.subr.mxu0 0.0
      %3249 = vmatpush1.msra.mxu0 0.0
      %3250 = vmatprep.subr.mxu0 0.0
      %3251 = vmatpush1.msra.mxu0 0.0
      %3252 = vmatprep.subr.mxu0 0.0
      %3253 = vmatpush1.msra.mxu0 0.0
      %3254 = vmatprep.subr.mxu0 0.0
      %3255 = vmatpush1.msra.mxu0 0.0
      %3256 = vmatprep.subr.mxu0 0.0
      %3257 = vmatpush1.msra.mxu0 0.0
      %3258 = vmatprep.subr.mxu0 0.0
      %3259 = vmatpush1.msra.mxu0 0.0
      %3260 = vmatprep.subr.mxu0 0.0
      %3261 = vmatpush1.msra.mxu0 0.0
      %3262 = vmatprep.subr.mxu0 0.0
      %3263 = vmatpush1.msra.mxu0 0.0
      %3264 = vmatprep.subr.mxu0 0.0
      %3265 = vmatpush1.msra.mxu0 0.0
      %3266 = vmatprep.subr.mxu0 0.0
      %3267 = vmatpush1.msra.mxu0 0.0
      %3268 = vmatprep.subr.mxu0 0.0
      %3269 = vmatpush1.msra.mxu0 0.0
      %3270 = vmatprep.subr.mxu0 0.0
      %3271 = vmatpush1.msra.mxu0 0.0
      %3272 = vmatprep.subr.mxu0 0.0
      %3273 = vmatpush1.msra.mxu0 0.0
      %3274 = vmatprep.subr.mxu0 0.0
      %3275 = vmatpush1.msra.mxu0 0.0
      %3276 = vmatprep.subr.mxu0 0.0
      %3277 = vmatpush1.msra.mxu0 0.0
      %3278 = vmatprep.subr.mxu0 0.0
      %3279 = vmatpush1.msra.mxu0 0.0
      %3280 = vmatprep.mubr.f32.mxu0 0.0
      %3281 = vmatmul.mubr.f32.gmra.mrb[0].mxu0 %v3184
      %v3282 = vpop.f32.mrb[0].mxu0
      %v3283 = vadd.f32 0.0, %v3282
      %v3284 = vpop.f32.mrb[0].mxu0
      %3285 = vmatprep.mubr.f32.mxu0 0.0
      %3286 = vmatmul.mubr.f32.gmra.mrb[0].mxu0 %v3185
      %v3287 = vpop.f32.mrb[0].mxu0
      %v3288 = vadd.f32 0.0, %v3287
      %v3289 = vpop.f32.mrb[0].mxu0
      %3290 = vmatprep.mubr.f32.mxu0 0.0
      %3291 = vmatmul.mubr.f32.gmra.mrb[0].mxu0 %v3186
      %v3292 = vpop.f32.mrb[0].mxu0
      %v3293 = vadd.f32 0.0, %v3292
      %v3294 = vpop.f32.mrb[0].mxu0
      %3295 = vmatprep.mubr.f32.mxu0 0.0
      %3296 = vmatmul.mubr.f32.gmra.mrb[0].mxu0 %v3187
      %v3297 = vpop.f32.mrb[0].mxu0
      %v3298 = vadd.f32 0.0, %v3297
      %v3299 = vpop.f32.mrb[0].mxu0
      %3300 = vdwg.mxu0
      %v3301 = vmul.f32 %v3283, 1.442695
      %v3302 = vpow.pop %v3301
      %v3303 = vmul.f32 %v3288, 1.442695
      %v3304 = vpow.pop %v3303
      %v3305 = vmul.f32 %v3293, 1.442695
      %v3306 = vpow.pop %v3305
      %v3307 = vmul.f32 %v3298, 1.442695
      %v3308 = vpow.pop %v3307
      %v3309 = vmul.f32 %v3196, %v3302
      %v3310 = vmul.f32 %v3197, %v3304
      %v3311 = vmul.f32 %v3198, %v3306
      %v3312 = vmul.f32 %v3199, %v3308
      %3313 = vadd.xlane.f32.xlu0 %v3309
      %v3314 = vpop.xlane.xlu0 %3313
      %3315 = vadd.xlane.f32.xlu0 %v3310
      %v3316 = vpop.xlane.xlu0 %3315
      %3317 = vadd.xlane.f32.xlu0 %v3311
      %v3318 = vpop.xlane.xlu0 %3317
      %3319 = vadd.xlane.f32.xlu0 %v3312
      %v3320 = vpop.xlane.xlu0 %3319
      %v3321 = vmul.f32 %v3309, %v246
      %v3322 = vmul.f32 %v3310, %v247
      %v3323 = vmul.f32 %v3311, %v248
      %v3324 = vmul.f32 %v3312, %v249
      %3325 = vadd.xlane.f32.xlu0 %v3321
      %v3326 = vpop.xlane.xlu0 %3325
      %3327 = vadd.xlane.f32.xlu0 %v3322
      %v3328 = vpop.xlane.xlu0 %3327
      %3329 = vadd.xlane.f32.xlu0 %v3323
      %v3330 = vpop.xlane.xlu0 %3329
      %3331 = vadd.xlane.f32.xlu0 %v3324
      %v3332 = vpop.xlane.xlu0 %3331
      %v3333 = vsub.f32 1.0, %v3314
      %v3334 = vsub.f32 1.0, %v3316
      %v3335 = vsub.f32 1.0, %v3318
      %v3336 = vsub.f32 1.0, %v3320
      %v3337 = vmul.f32 %v3309, %v2956
      %v3338 = vmul.f32 %v3310, %v2957
      %v3339 = vmul.f32 %v3311, %v2958
      %v3340 = vmul.f32 %v3312, %v2959
      %3341 = vadd.xlane.f32.xlu0 %v3337
      %v3342 = vpop.xlane.xlu0 %3341
      %3343 = vadd.xlane.f32.xlu0 %v3338
      %v3344 = vpop.xlane.xlu0 %3343
      %3345 = vadd.xlane.f32.xlu0 %v3339
      %v3346 = vpop.xlane.xlu0 %3345
      %3347 = vadd.xlane.f32.xlu0 %v3340
      %v3348 = vpop.xlane.xlu0 %3347
      %v3349 = vadd.f32 %v3342, %v3333
      %v3350 = vadd.f32 %v3344, %v3334
      %v3351 = vadd.f32 %v3346, %v3335
      %v3352 = vadd.f32 %v3348, %v3336
      %v3353 = vmul.f32 %v3309, %v3064
      %v3354 = vmul.f32 %v3310, %v3065
      %v3355 = vmul.f32 %v3311, %v3066
      %v3356 = vmul.f32 %v3312, %v3067
      %3357 = vadd.xlane.f32.xlu0 %v3353
      %v3358 = vpop.xlane.xlu0 %3357
      %3359 = vadd.xlane.f32.xlu0 %v3354
      %v3360 = vpop.xlane.xlu0 %3359
      %3361 = vadd.xlane.f32.xlu0 %v3355
      %v3362 = vpop.xlane.xlu0 %3361
      %3363 = vadd.xlane.f32.xlu0 %v3356
      %v3364 = vpop.xlane.xlu0 %3363
      %v3365 = vadd.f32 %v3358, %v3333
      %v3366 = vadd.f32 %v3360, %v3334
      %v3367 = vadd.f32 %v3362, %v3335
      %v3368 = vadd.f32 %v3364, %v3336
      %v3369 = vmul.f32 %v3309, %v3172
      %v3370 = vmul.f32 %v3310, %v3173
      %v3371 = vmul.f32 %v3311, %v3174
      %v3372 = vmul.f32 %v3312, %v3175
      %3373 = vadd.xlane.f32.xlu0 %v3369
      %v3374 = vpop.xlane.xlu0 %3373
      %3375 = vadd.xlane.f32.xlu0 %v3370
      %v3376 = vpop.xlane.xlu0 %3375
      %3377 = vadd.xlane.f32.xlu0 %v3371
      %v3378 = vpop.xlane.xlu0 %3377
      %3379 = vadd.xlane.f32.xlu0 %v3372
      %v3380 = vpop.xlane.xlu0 %3379
      %v3381 = vadd.f32 %v3374, %v3333
      %v3382 = vadd.f32 %v3376, %v3334
      %v3383 = vadd.f32 %v3378, %v3335
      %v3384 = vadd.f32 %v3380, %v3336
      %vm3385 = vcmp.lt.f32.partialorder %v190, %v194
      %vm3386 = vcmp.lt.f32.partialorder %v191, %v195
      %vm3387 = vcmp.lt.f32.partialorder %v192, %v196
      %vm3388 = vcmp.lt.f32.partialorder %v193, %v197
      %v3389 = vsel %vm3385, 1.0, 0.0
      %v3390 = vsel %vm3386, 1.0, 0.0
      %v3391 = vsel %vm3387, 1.0, 0.0
      %v3392 = vsel %vm3388, 1.0, 0.0
      %vm3393 = vcmp.eq.s32.totalorder %v105, 0
      %v3394 = vsel %vm3393, 1, 0
      %vm3395 = vcmp.eq.s32.totalorder %v3394, 1
      %v3396 = vsel %vm3395, %v3349, 0.0
      %v3397 = vsel %vm3395, %v3350, 0.0
      %v3398 = vsel %vm3395, %v3351, 0.0
      %v3399 = vsel %vm3395, %v3352, 0.0
      %vm3400 = vcmp.eq.s32.totalorder %v105, 1
      %v3401 = vsel %vm3400, 1, 0
      %vm3402 = vcmp.eq.s32.totalorder %v3401, 1
      %v3403 = vsel %vm3402, %v3365, 0.0
      %v3404 = vsel %vm3402, %v3366, 0.0
      %v3405 = vsel %vm3402, %v3367, 0.0
      %v3406 = vsel %vm3402, %v3368, 0.0
      %v3407 = vadd.f32 %v3396, %v3403
      %v3408 = vadd.f32 %v3397, %v3404
      %v3409 = vadd.f32 %v3398, %v3405
      %v3410 = vadd.f32 %v3399, %v3406
      %vm3411 = vcmp.eq.s32.totalorder %v105, 2
      %v3412 = vsel %vm3411, 1, 0
      %vm3413 = vcmp.eq.s32.totalorder %v3412, 1
      %v3414 = vsel %vm3413, %v3381, 0.0
      %v3415 = vsel %vm3413, %v3382, 0.0
      %v3416 = vsel %vm3413, %v3383, 0.0
      %v3417 = vsel %vm3413, %v3384, 0.0
      %v3418 = vadd.f32 %v3407, %v3414
      %v3419 = vadd.f32 %v3408, %v3415
      %v3420 = vadd.f32 %v3409, %v3416
      %v3421 = vadd.f32 %v3410, %v3417
      %vm3422 = vcmp.eq.s32.totalorder %v105, 3
      %v3423 = vsel %vm3422, 1, 0
      %vm3424 = vcmp.eq.s32.totalorder %v3423, 1
      %v3425 = vsel %vm3424, %v3326, 0.0
      %v3426 = vsel %vm3424, %v3328, 0.0
      %v3427 = vsel %vm3424, %v3330, 0.0
      %v3428 = vsel %vm3424, %v3332, 0.0
      %v3429 = vadd.f32 %v3418, %v3425
      %v3430 = vadd.f32 %v3419, %v3426
      %v3431 = vadd.f32 %v3420, %v3427
      %v3432 = vadd.f32 %v3421, %v3428
      %vm3433 = vcmp.eq.s32.totalorder %v105, 4
      %v3434 = vsel %vm3433, 1, 0
      %vm3435 = vcmp.eq.s32.totalorder %v3434, 1
      %v3436 = vsel %vm3435, %v3314, 0.0
      %v3437 = vsel %vm3435, %v3316, 0.0
      %v3438 = vsel %vm3435, %v3318, 0.0
      %v3439 = vsel %vm3435, %v3320, 0.0
      %v3440 = vadd.f32 %v3429, %v3436
      %v3441 = vadd.f32 %v3430, %v3437
      %v3442 = vadd.f32 %v3431, %v3438
      %v3443 = vadd.f32 %v3432, %v3439
      %vm3444 = vcmp.eq.s32.totalorder %v105, 5
      %v3445 = vsel %vm3444, 1, 0
      %vm3446 = vcmp.eq.s32.totalorder %v3445, 1
      %3448 = vset.pattern.permute.xlu0 0
      %3449 = vperm.xlu0 %3448, %v3389
      %v3450 = vpop.permute.xlu0 %3449
      %3453 = vset.pattern.permute.xlu0 0
      %3454 = vperm.xlu0 %3453, %v3390
      %v3455 = vpop.permute.xlu0 %3454
      %3458 = vset.pattern.permute.xlu0 0
      %3459 = vperm.xlu0 %3458, %v3391
      %v3460 = vpop.permute.xlu0 %3459
      %3463 = vset.pattern.permute.xlu0 0
      %3464 = vperm.xlu0 %3463, %v3392
      %v3465 = vpop.permute.xlu0 %3464
      %v3467 = vsel %vm3446, %v3450, 0.0
      %v3468 = vsel %vm3446, %v3455, 0.0
      %v3469 = vsel %vm3446, %v3460, 0.0
      %v3470 = vsel %vm3446, %v3465, 0.0
      %v3471 = vadd.f32 %v3440, %v3467
      %v3472 = vadd.f32 %v3441, %v3468
      %v3473 = vadd.f32 %v3442, %v3469
      %v3474 = vadd.f32 %v3443, %v3470
      %s3475 = scalar_lea.vmem %s9, %s116
      %vm3476 = vcmask 64512
      %3477 = vst.msk [vmem:[%s3475] sm:$0xff] %vm3476, %v3471
      %3478 = vst.msk [vmem:[%s3475 + $0x8] sm:$0xff] %vm3476, %v3472
      %3479 = vst.msk [vmem:[%s3475 + $0x10] sm:$0xff] %vm3476, %v3473
      %3480 = vst.msk [vmem:[%s3475 + $0x18] sm:$0xff] %vm3476, %v3474
    $region66: #{tpu_custom_call.1} parent=1 // loop_footer
      %s115 = sadd.s32 1, %s111
    $region67: #{tpu_custom_call.1} parent=1 // loop_footer_branch
      %110 = sbr.rel target = $region63
    $region68: #{tpu_custom_call.1} parent=1 // loop_exit
      _
    // Predicated region
    $region69: #{tpu_custom_call.1} parent=1 // pred_check
      _
    $region70: #{tpu_custom_call.1} parent=1 // pred_check_branch
      %3482 = sbr.rel (0) target = $region72
    $region71: #{tpu_custom_call.1} parent=1 // pred_region
      _
    $region72: #{tpu_custom_call.1} parent=1 // pred_fallthru
      _
    // Predicated region
    $region73: #{tpu_custom_call.1} parent=1 // pred_check
      _
    $region74: #{tpu_custom_call.1} parent=1 // pred_check_branch
      %3484 = sbr.rel (0) target = $region76
    $region75: #{tpu_custom_call.1} parent=1 // pred_region
      _
    $region76: #{tpu_custom_call.1} parent=1 // pred_fallthru
      _
    %3485 = vsyncpa [#allocation4], 1
    %3486 = vsyncpa [#allocation6], 1
    %3487 = vsyncpa [#allocation9], 1
    %3488 = vsyncpa [#allocation12], 1

</llo_original>
